<compile_context>
chip_gen: v7x
topology: tpu7x:2x2x1
jax: 0.10.0
libtpu: 0.0.40
codegen_flags: <defaults>
</compile_context>

<pallas_src>
import math

import jax
import jax.numpy as jnp
from jax import lax
from jax.experimental import pallas as pl
from jax.experimental.pallas import tpu as pltpu


# ---------------------------------------------------------------------------
# Fused kernel: trilinear grid_sample (dense hat-weight matmul, batch in lanes)
# fused with the full decoder MLP and the final [data_min, data_max] rescale.
# Grid = (batch tiles, DHW tiles); the DHW axis is the reduction axis.
# ---------------------------------------------------------------------------
def _make_fused_kernel(n_grids, n_mid, out_scale, out_offset, dot_dtype):
    def kernel(coords_ref, planes_ref, m_ref, b1_ref, *rest):
        acc_ref = rest[-1]            # VMEM scratch [nodes, TB] f32
        out_ref = rest[-2]            # [n_out, TB]
        layer_refs = rest[:-2]        # (W_t, b_t)*n_mid + (W_last_t, b_last_t)

        k = pl.program_id(1)

        @pl.when(k == 0)
        def _init():
            acc_ref[...] = jnp.zeros_like(acc_ref)

        # Precomputed f32 index planes for this DHW chunk, as column vectors.
        wp = planes_ref[:, 0:1]       # [tk, 1]  (x -> W axis)
        hp = planes_ref[:, 1:2]       # [tk, 1]  (y -> H axis)
        dp = planes_ref[:, 2:3]       # [tk, 1]  (z -> D axis)

        def hat(plane_col, coord_row):
            # Trilinear "hat" weight; zero outside the grid.  The index
            # difference is computed in f32 (exact index math), the rest in the
            # dot dtype (bf16 halves VALU + MXU work on v6e/v7x).
            d = (plane_col - coord_row).astype(dot_dtype)     # [tk, TB]
            return jnp.maximum(1.0 - jnp.abs(d), 0.0)

        def g_body(g, carry):
            cg = coords_ref[g]                                # [3, TB]
            w_t = (hat(wp, cg[0:1, :]) *
                   hat(hp, cg[1:2, :]) *
                   hat(dp, cg[2:3, :]))                       # [tk, TB]
            # fused encoder + decoder layer 1 (grid g's contribution)
            acc_ref[...] += jnp.dot(m_ref[g], w_t,
                                    preferred_element_type=jnp.float32)
            return carry

        lax.fori_loop(0, n_grids, g_body, 0)

        @pl.when(k == pl.num_programs(1) - 1)
        def _finalize():
            h = jnp.maximum(acc_ref[...] + b1_ref[...], 0.0)  # layer-1 ReLU, [nodes, TB]
            for i in range(n_mid):
                w_t = layer_refs[2 * i][...]                  # [nodes, nodes]
                b_t = layer_refs[2 * i + 1][...]              # [nodes, 1]
                h = jnp.maximum(
                    jnp.dot(w_t, h, preferred_element_type=jnp.float32) + b_t, 0.0)
            w_last = layer_refs[2 * n_mid][...]               # [n_out, nodes]
            b_last = layer_refs[2 * n_mid + 1][...]           # [n_out, 1]
            y_t = jnp.dot(w_last, h, preferred_element_type=jnp.float32) + b_last
            out_ref[...] = y_t * out_scale + out_offset       # [n_out, TB] lane-dense

    return kernel


# ---------------------------------------------------------------------------
# Full AMGSRN_old forward.
# ---------------------------------------------------------------------------
def amgsrn_forward(x, tm, fg, weights, biases, opt, *, tb=512, tk_max=1024,
                   precision='bf16'):
    G, F = fg.shape[0], fg.shape[1]
    D, H, W = fg.shape[2], fg.shape[3], fg.shape[4]
    DHW = D * H * W
    B = x.shape[0]
    nodes = weights[0].shape[1]
    n_out = weights[-1].shape[1]
    n_linear = len(weights)
    assert n_linear >= 2, "decoder must have at least 2 linear layers (n_layers >= 1)"
    assert tb % 128 == 0 and tk_max % 128 == 0
    n_mid = n_linear - 2
    GF = G * F
    dot_dtype = jnp.bfloat16 if precision == 'bf16' else jnp.float32
    hi = jax.lax.Precision.HIGHEST

    x = x.astype(jnp.float32)

    # --- per-grid affine transform + scale to index space (tiny; done in XLA),
    #     emitted directly in lane-dense [G, 3, B] layout ---
    A = tm[:, 0:3, 0:3]
    t = tm[:, 0:3, 3]
    local_t = jnp.einsum('gij,bj->gib', A, x, precision=hi) + t[:, :, None]   # [G,3,B]
    idx_scale = jnp.array([0.5 * (W - 1), 0.5 * (H - 1), 0.5 * (D - 1)], jnp.float32)
    coords_t = (local_t + 1.0) * idx_scale[None, :, None]                     # [G,3,B]

    # --- tile / pad the batch (batch is the MXU lane dimension) ---
    TB = tb
    n_btiles = pl.cdiv(B, TB)
    B_pad = TB * n_btiles
    if B_pad != B:
        coords_t = jnp.pad(coords_t, ((0, 0), (0, 0), (0, B_pad - B)))

    # --- DHW reduction tiling: zero-pad instead of asserting divisibility ---
    def _round_up(a, m):
        return ((a + m - 1) // m) * m
    tk = _round_up(DHW, 128) if DHW <= tk_max else tk_max
    DHW_pad = _round_up(DHW, tk)
    n_k = DHW_pad // tk

    # --- grid-invariant f32 index planes as [DHW, 3] column vectors ---
    idx = jnp.arange(DHW, dtype=jnp.int32)
    planes = jnp.stack([(idx % W).astype(jnp.float32),
                        ((idx // W) % H).astype(jnp.float32),
                        (idx // (W * H)).astype(jnp.float32)], axis=1)        # [DHW, 3]
    if DHW_pad != DHW:
        planes = jnp.pad(planes, ((0, DHW_pad - DHW), (0, 0)))

    # --- fuse encoder with decoder layer 1, transposed: M_t[g] = W1_g^T @ fg_g ---
    W1 = weights[0].astype(jnp.float32)
    b1_eff = biases[0].reshape(-1).astype(jnp.float32)
    W1_g = W1[:GF].reshape(G, F, nodes)
    M_t = jnp.einsum('gfd,gfn->gnd', fg.reshape(G, F, DHW).astype(jnp.float32),
                     W1_g, precision=hi)                                      # [G,nodes,DHW]
    if opt['requires_padded_feats']:
        # padded feats are constant 1.0 -> fold their layer-1 term into the bias
        b1_eff = b1_eff + jnp.sum(W1[GF:], axis=0)
    if DHW_pad != DHW:
        M_t = jnp.pad(M_t, ((0, 0), (0, 0), (0, DHW_pad - DHW)))
    M_t = M_t.astype(dot_dtype)
    b1_t = b1_eff.reshape(nodes, 1)

    # --- remaining decoder layers, pre-transposed to [out, in] / [out, 1] ---
    layer_args = []
    for i in range(1, n_linear - 1):
        layer_args += [jnp.transpose(weights[i]).astype(jnp.float32),
                       biases[i].reshape(-1, 1).astype(jnp.float32)]
    layer_args += [jnp.transpose(weights[-1]).astype(jnp.float32),
                   biases[-1].reshape(-1, 1).astype(jnp.float32)]

    const_map = lambda b, k: (0, 0)
    in_specs = [
        pl.BlockSpec((G, 3, TB), lambda b, k: (0, 0, b)),       # coords [G,3,TB]
        pl.BlockSpec((tk, 3), lambda b, k: (k, 0)),             # index planes [tk,3]
        pl.BlockSpec((G, nodes, tk), lambda b, k: (0, 0, k)),   # fused W1^T fg [G,nodes,tk]
        pl.BlockSpec((nodes, 1), const_map),                    # effective layer-1 bias
    ]
    args = [coords_t, planes, M_t, b1_t]
    for a in layer_args:
        in_specs.append(pl.BlockSpec(a.shape, const_map))
        args.append(a)

    out_scale = float(opt['data_max']) - float(opt['data_min'])
    out_offset = float(opt['data_min'])

    y_t = pl.pallas_call(
        _make_fused_kernel(G, n_mid, out_scale, out_offset, dot_dtype),
        out_shape=jax.ShapeDtypeStruct((n_out, B_pad), jnp.float32),
        grid=(n_btiles, n_k),
        in_specs=in_specs,
        out_specs=pl.BlockSpec((n_out, TB), lambda b, k: (0, b)),
        scratch_shapes=[pltpu.VMEM((nodes, TB), jnp.float32)],
        compiler_params=pltpu.CompilerParams(
            dimension_semantics=("parallel", "arbitrary"),
            vmem_limit_bytes=32 * 1024 * 1024),
    )(*args)

    return jnp.transpose(y_t)[:B]                                             # [B, n_out]


# ---------------------------------------------------------------------------
# Deterministic parameter initialization (mirrors module __init__ semantics).
# ---------------------------------------------------------------------------
def init_params(opt, key):
    G, F = opt['n_grids'], opt['n_features']
    D, H, W = opt['feature_grid_shape']
    n_linear = opt['n_layers'] + 1
    GF = G * F
    first_in = GF
    if opt['requires_padded_feats']:
        first_in = GF + (16 * int(math.ceil(max(1, GF / 16))) - GF)

    keys = jax.random.split(key, 2 + 2 * n_linear)
    k_tm, k_fg, k_dec = keys[0], keys[1], keys[2:]

    # randomize_grids(): identity + N(0, 0.05) on first 3 rows, last row [0,0,0,1]
    tm = jnp.tile(jnp.eye(4, dtype=jnp.float32)[None], (G, 1, 1))
    noise = jax.random.normal(k_tm, (G, 3, 4), dtype=jnp.float32) * 0.05
    tm = tm.at[:, 0:3, :].add(noise)

    # feature grids ~ U(-1e-4, 1e-4)
    fg = jax.random.uniform(k_fg, (G, F, D, H, W), dtype=jnp.float32,
                            minval=-1e-4, maxval=1e-4)

    # decoder: ReLULayer(first_in, nodes), ReLULayer(nodes,nodes)*(n_layers-1), Linear(nodes, n_out)
    sizes = [first_in] + [opt['nodes_per_layer']] * opt['n_layers'] + [opt['n_outputs']]
    weights, biases = [], []
    for i, (fin, fout) in enumerate(zip(sizes[:-1], sizes[1:])):
        std = math.sqrt(2.0 / (fin + fout))  # xavier_normal_
        weights.append(jax.random.normal(k_dec[2 * i], (fin, fout), jnp.float32) * std)
        biases.append(jax.random.normal(k_dec[2 * i + 1], (1, fout), jnp.float32) * 0.001)
    return tm, fg, weights, biases


# ---------------------------------------------------------------------------
# Pure-JAX reference (explicit trilinear gather, unfused MLP) for validation.
# ---------------------------------------------------------------------------
def reference_forward(x, tm, fg, weights, biases, opt):
    G, F, D, H, W = fg.shape
    hi = jax.lax.Precision.HIGHEST
    A, t = tm[:, 0:3, 0:3], tm[:, 0:3, 3]
    local = jnp.einsum('gij,bj->gbi', A, x, precision=hi) + t[:, None, :]     # [G, B, 3]
    ix = (local[..., 0] + 1.0) * 0.5 * (W - 1)
    iy = (local[..., 1] + 1.0) * 0.5 * (H - 1)
    iz = (local[..., 2] + 1.0) * 0.5 * (D - 1)
    d0 = jnp.floor(iz).astype(jnp.int32)
    h0 = jnp.floor(iy).astype(jnp.int32)
    w0 = jnp.floor(ix).astype(jnp.int32)
    fg_t = jnp.transpose(fg, (0, 2, 3, 4, 1))                                 # [G, D, H, W, F]
    g_idx = jnp.arange(G)[:, None]
    out = jnp.zeros((G, x.shape[0], F), jnp.float32)
    for dd in (0, 1):
        for hh in (0, 1):
            for ww in (0, 1):
                di, hi_, wi = d0 + dd, h0 + hh, w0 + ww
                wgt = ((1.0 - jnp.abs(iz - di)) *
                       (1.0 - jnp.abs(iy - hi_)) *
                       (1.0 - jnp.abs(ix - wi)))
                valid = ((di >= 0) & (di < D) & (hi_ >= 0) & (hi_ < H) &
                         (wi >= 0) & (wi < W))
                vals = fg_t[g_idx, jnp.clip(di, 0, D - 1),
                            jnp.clip(hi_, 0, H - 1), jnp.clip(wi, 0, W - 1)]
                out = out + jnp.where(valid[..., None], wgt[..., None] * vals, 0.0)
    feats = jnp.transpose(out, (1, 0, 2)).reshape(x.shape[0], G * F)
    if opt['requires_padded_feats']:
        gf = G * F
        pad = 16 * int(math.ceil(max(1, gf / 16))) - gf
        feats = jnp.pad(feats, ((0, 0), (0, pad)), constant_values=1.0)
    h = feats
    for i, (w, b) in enumerate(zip(weights, biases)):
        h = h @ w + b
        if i < len(weights) - 1:
            h = jnp.maximum(h, 0.0)
    return h * (opt['data_max'] - opt['data_min']) + opt['data_min']


def _check(name, y, y_ref, rtol, atol):
    err = float(jnp.max(jnp.abs(y - y_ref)))
    assert jnp.allclose(y, y_ref, rtol=rtol, atol=atol), f"{name}: max abs diff {err}"


if __name__ == "__main__":
    key = jax.random.PRNGKey(0)
    k1, k2, kx = jax.random.split(key, 3)

    B = 600  # exercises batch padding (600 -> 1024 with TB=512, 2 batch tiles)
    x = jax.random.uniform(kx, (B, 3), jnp.float32, minval=-1.0, maxval=1.0)

    # --- Test 1: default config (no padded feats) ---
    opt1 = {
        'n_grids': 4, 'n_features': 2, 'feature_grid_shape': [8, 8, 8],  # [D, H, W]
        'n_dims': 3, 'n_outputs': 1, 'nodes_per_layer': 64, 'n_layers': 2,
        'requires_padded_feats': False, 'data_min': -0.5, 'data_max': 2.0,
    }
    tm1, fg1, w1, b1 = init_params(opt1, k1)
    y1_ref = jax.block_until_ready(reference_forward(x, tm1, fg1, w1, b1, opt1))
    y1_f32 = jax.block_until_ready(
        amgsrn_forward(x, tm1, fg1, w1, b1, opt1, precision='f32'))
    assert y1_f32.shape == (B, opt1['n_outputs'])
    _check("cfg1/f32", y1_f32, y1_ref, rtol=2e-3, atol=5e-5)
    y1_bf16 = jax.block_until_ready(amgsrn_forward(x, tm1, fg1, w1, b1, opt1))
    _check("cfg1/bf16", y1_bf16, y1_ref, rtol=1e-2, atol=2e-3)

    # --- Test 2: padded feats, non-cube grid (DHW not a multiple of 128), 1 hidden layer ---
    opt2 = {
        'n_grids': 3, 'n_features': 2, 'feature_grid_shape': [4, 6, 8],  # [D, H, W]
        'n_dims': 3, 'n_outputs': 1, 'nodes_per_layer': 32, 'n_layers': 1,
        'requires_padded_feats': True, 'data_min': 0.0, 'data_max': 1.0,
    }
    tm2, fg2, w2, b2 = init_params(opt2, k2)
    y2_ref = jax.block_until_ready(reference_forward(x, tm2, fg2, w2, b2, opt2))
    y2_f32 = jax.block_until_ready(
        amgsrn_forward(x, tm2, fg2, w2, b2, opt2, precision='f32'))
    assert y2_f32.shape == (B, opt2['n_outputs'])
    _check("cfg2/f32", y2_f32, y2_ref, rtol=2e-3, atol=5e-5)
    y2_bf16 = jax.block_until_ready(amgsrn_forward(x, tm2, fg2, w2, b2, opt2))
    _check("cfg2/bf16", y2_bf16, y2_ref, rtol=1e-2, atol=2e-3)

    print("KERNEL_OK")
</pallas_src>

<mosaic_0001>
module attributes {stable_mosaic.version = 11 : i64} {
  func.func @kernel(%arg0: i32, %arg1: i32, %arg2: memref<4x3x512xf32, #tpu.memory_space<vmem>>, %arg3: memref<512x3xf32, #tpu.memory_space<vmem>>, %arg4: memref<4x64x512xf32, #tpu.memory_space<vmem>>, %arg5: memref<64x1xf32, #tpu.memory_space<vmem>>, %arg6: memref<64x64xf32, #tpu.memory_space<vmem>>, %arg7: memref<64x1xf32, #tpu.memory_space<vmem>>, %arg8: memref<1x64xf32, #tpu.memory_space<vmem>>, %arg9: memref<1x1xf32, #tpu.memory_space<vmem>>, %arg10: memref<1x512xf32, #tpu.memory_space<vmem>>, %arg11: memref<64x512xf32, #tpu.memory_space<vmem>>) attributes {dimension_semantics = [#tpu.dimension_semantics<parallel>, #tpu.dimension_semantics<arbitrary>], iteration_bounds = array<i64: 2, 1>, scalar_prefetch = 0 : i64, scratch_operands = 1 : i64, tpu.core_type = #tpu.core_type<tc>, window_params = [{transform_indices = @transform_0, window_bounds = array<i64: 4, 3, 512>}, {transform_indices = @transform_1, window_bounds = array<i64: 512, 3>}, {transform_indices = @transform_2, window_bounds = array<i64: 4, 64, 512>}, {pipeline_mode = #tpu.pipeline_mode<synchronous>, transform_indices = @transform_3, window_bounds = array<i64: 64, 1>}, {pipeline_mode = #tpu.pipeline_mode<synchronous>, transform_indices = @transform_4, window_bounds = array<i64: 64, 64>}, {pipeline_mode = #tpu.pipeline_mode<synchronous>, transform_indices = @transform_5, window_bounds = array<i64: 64, 1>}, {pipeline_mode = #tpu.pipeline_mode<synchronous>, transform_indices = @transform_6, window_bounds = array<i64: 1, 64>}, {pipeline_mode = #tpu.pipeline_mode<synchronous>, transform_indices = @transform_7, window_bounds = array<i64: 1, 1>}, {transform_indices = @transform_8, window_bounds = array<i64: 1, 512>}]} {
    %c0_i32 = arith.constant 0 : i32
    %0 = arith.cmpi eq, %arg1, %c0_i32 : i32
    %1 = arith.extui %0 : i1 to i32
    %c0_i32_0 = arith.constant 0 : i32
    %2 = arith.cmpi ne, %1, %c0_i32_0 : i32
    scf.if %2 {
      %cst = arith.constant 0.000000e+00 : f32
      %10 = vector.broadcast %cst : f32 to vector<64x512xf32>
      %c0_8 = arith.constant 0 : index
      %c0_9 = arith.constant 0 : index
      %11 = vector.load %arg11[%c0_8, %c0_9] : memref<64x512xf32, #tpu.memory_space<vmem>>, vector<64x512xf32>
      tpu.vector_store %arg11[%c0_8, %c0_9], %10 {strides = array<i32>} : memref<64x512xf32, #tpu.memory_space<vmem>>, vector<64x512xf32>,
    } else {
    }
    %c0 = arith.constant 0 : index
    %c0_1 = arith.constant 0 : index
    %3 = vector.load %arg3[%c0, %c0_1] : memref<512x3xf32, #tpu.memory_space<vmem>>, vector<512x1xf32>
    %c0_2 = arith.constant 0 : index
    %c1 = arith.constant 1 : index
    %4 = vector.load %arg3[%c0_2, %c1] : memref<512x3xf32, #tpu.memory_space<vmem>>, vector<512x1xf32>
    %c0_3 = arith.constant 0 : index
    %c2 = arith.constant 2 : index
    %5 = vector.load %arg3[%c0_3, %c2] : memref<512x3xf32, #tpu.memory_space<vmem>>, vector<512x1xf32>
    %c0_i32_4 = arith.constant 0 : i32
    %c4_i32 = arith.constant 4 : i32
    %6 = arith.addi %c0_i32_4, %c4_i32 : i32
    %c1_i32 = arith.constant 1 : i32
    scf.for %arg12 = %c0_i32_4 to %6 step %c1_i32  : i32 {
      %10 = arith.index_cast %arg12 : i32 to index
      %c0_8 = arith.constant 0 : index
      %c0_9 = arith.constant 0 : index
      %11 = vector.load %arg2[%10, %c0_8, %c0_9] : memref<4x3x512xf32, #tpu.memory_space<vmem>>, vector<1x3x512xf32>
      %12 = vector.shape_cast %11 : vector<1x3x512xf32> to vector<3x512xf32>
      %13 = vector.extract_strided_slice %12 {offsets = [0, 0], sizes = [1, 512], strides = [1, 1]} : vector<3x512xf32> to vector<1x512xf32>
      %14 = vector.broadcast %3 : vector<512x1xf32> to vector<512x512xf32>
      %15 = vector.broadcast %13 : vector<1x512xf32> to vector<512x512xf32>
      %16 = arith.subf %14, %15 : vector<512x512xf32>
      %17 = math.absf %16 : vector<512x512xf32>
      %cst = arith.constant 1.000000e+00 : f32
      %18 = vector.broadcast %cst : f32 to vector<512x512xf32>
      %19 = arith.subf %18, %17 : vector<512x512xf32>
      %cst_10 = arith.constant 0.000000e+00 : f32
      %20 = vector.broadcast %cst_10 : f32 to vector<512x512xf32>
      %21 = arith.maximumf %19, %20 : vector<512x512xf32>
      %22 = vector.extract_strided_slice %12 {offsets = [1, 0], sizes = [1, 512], strides = [1, 1]} : vector<3x512xf32> to vector<1x512xf32>
      %23 = vector.broadcast %4 : vector<512x1xf32> to vector<512x512xf32>
      %24 = vector.broadcast %22 : vector<1x512xf32> to vector<512x512xf32>
      %25 = arith.subf %23, %24 : vector<512x512xf32>
      %26 = math.absf %25 : vector<512x512xf32>
      %cst_11 = arith.constant 1.000000e+00 : f32
      %27 = vector.broadcast %cst_11 : f32 to vector<512x512xf32>
      %28 = arith.subf %27, %26 : vector<512x512xf32>
      %cst_12 = arith.constant 0.000000e+00 : f32
      %29 = vector.broadcast %cst_12 : f32 to vector<512x512xf32>
      %30 = arith.maximumf %28, %29 : vector<512x512xf32>
      %31 = arith.mulf %21, %30 : vector<512x512xf32>
      %32 = vector.extract_strided_slice %12 {offsets = [2, 0], sizes = [1, 512], strides = [1, 1]} : vector<3x512xf32> to vector<1x512xf32>
      %33 = vector.broadcast %5 : vector<512x1xf32> to vector<512x512xf32>
      %34 = vector.broadcast %32 : vector<1x512xf32> to vector<512x512xf32>
      %35 = arith.subf %33, %34 : vector<512x512xf32>
      %36 = math.absf %35 : vector<512x512xf32>
      %cst_13 = arith.constant 1.000000e+00 : f32
      %37 = vector.broadcast %cst_13 : f32 to vector<512x512xf32>
      %38 = arith.subf %37, %36 : vector<512x512xf32>
      %cst_14 = arith.constant 0.000000e+00 : f32
      %39 = vector.broadcast %cst_14 : f32 to vector<512x512xf32>
      %40 = arith.maximumf %38, %39 : vector<512x512xf32>
      %41 = arith.mulf %31, %40 : vector<512x512xf32>
      %c0_15 = arith.constant 0 : index
      %c0_16 = arith.constant 0 : index
      %42 = vector.load %arg11[%c0_15, %c0_16] : memref<64x512xf32, #tpu.memory_space<vmem>>, vector<64x512xf32>
      %43 = arith.index_cast %arg12 : i32 to index
      %c0_17 = arith.constant 0 : index
      %c0_18 = arith.constant 0 : index
      %44 = vector.load %arg4[%43, %c0_17, %c0_18] : memref<4x64x512xf32, #tpu.memory_space<vmem>>, vector<1x64x512xf32>
      %45 = vector.shape_cast %44 : vector<1x64x512xf32> to vector<64x512xf32>
      %cst_19 = arith.constant dense<0.000000e+00> : vector<64x512xf32>
      %46 = tpu.matmul %45, %41, %cst_19 {dimension_numbers = #tpu.dot_dimension_numbers<[1], [0], [0], [1], [0, 0, 1, 1], [], []>} : vector<64x512xf32>, vector<512x512xf32>, vector<64x512xf32> -> vector<64x512xf32>
      %47 = arith.addf %42, %46 : vector<64x512xf32>
      %c0_20 = arith.constant 0 : index
      %c0_21 = arith.constant 0 : index
      %48 = vector.load %arg11[%c0_20, %c0_21] : memref<64x512xf32, #tpu.memory_space<vmem>>, vector<64x512xf32>
      tpu.vector_store %arg11[%c0_20, %c0_21], %47 {strides = array<i32>} : memref<64x512xf32, #tpu.memory_space<vmem>>, vector<64x512xf32>,
    }
    %c4_i32_5 = arith.constant 4 : i32
    %c0_i32_6 = arith.constant 0 : i32
    %7 = arith.cmpi eq, %arg1, %c0_i32_6 : i32
    %8 = arith.extui %7 : i1 to i32
    %c0_i32_7 = arith.constant 0 : i32
    %9 = arith.cmpi ne, %8, %c0_i32_7 : i32
    scf.if %9 {
      %c0_8 = arith.constant 0 : index
      %c0_9 = arith.constant 0 : index
      %10 = vector.load %arg11[%c0_8, %c0_9] : memref<64x512xf32, #tpu.memory_space<vmem>>, vector<64x512xf32>
      %c0_10 = arith.constant 0 : index
      %c0_11 = arith.constant 0 : index
      %11 = vector.load %arg5[%c0_10, %c0_11] : memref<64x1xf32, #tpu.memory_space<vmem>>, vector<64x1xf32>
      %12 = vector.broadcast %11 : vector<64x1xf32> to vector<64x512xf32>
      %13 = arith.addf %10, %12 : vector<64x512xf32>
      %cst = arith.constant 0.000000e+00 : f32
      %14 = vector.broadcast %cst : f32 to vector<64x512xf32>
      %15 = arith.maximumf %13, %14 : vector<64x512xf32>
      %c0_12 = arith.constant 0 : index
      %c0_13 = arith.constant 0 : index
      %16 = vector.load %arg6[%c0_12, %c0_13] : memref<64x64xf32, #tpu.memory_space<vmem>>, vector<64x64xf32>
      %c0_14 = arith.constant 0 : index
      %c0_15 = arith.constant 0 : index
      %17 = vector.load %arg7[%c0_14, %c0_15] : memref<64x1xf32, #tpu.memory_space<vmem>>, vector<64x1xf32>
      %cst_16 = arith.constant dense<0.000000e+00> : vector<64x512xf32>
      %18 = tpu.matmul %16, %15, %cst_16 {dimension_numbers = #tpu.dot_dimension_numbers<[1], [0], [0], [1], [0, 0, 1, 1], [], []>} : vector<64x64xf32>, vector<64x512xf32>, vector<64x512xf32> -> vector<64x512xf32>
      %19 = vector.broadcast %17 : vector<64x1xf32> to vector<64x512xf32>
      %20 = arith.addf %18, %19 : vector<64x512xf32>
      %cst_17 = arith.constant 0.000000e+00 : f32
      %21 = vector.broadcast %cst_17 : f32 to vector<64x512xf32>
      %22 = arith.maximumf %20, %21 : vector<64x512xf32>
      %c0_18 = arith.constant 0 : index
      %c0_19 = arith.constant 0 : index
      %23 = vector.load %arg8[%c0_18, %c0_19] : memref<1x64xf32, #tpu.memory_space<vmem>>, vector<1x64xf32>
      %c0_20 = arith.constant 0 : index
      %c0_21 = arith.constant 0 : index
      %24 = vector.load %arg9[%c0_20, %c0_21] : memref<1x1xf32, #tpu.memory_space<vmem>>, vector<1x1xf32>
      %cst_22 = arith.constant dense<0.000000e+00> : vector<1x512xf32>
      %25 = tpu.matmul %23, %22, %cst_22 {dimension_numbers = #tpu.dot_dimension_numbers<[1], [0], [0], [1], [0, 0, 1, 1], [], []>} : vector<1x64xf32>, vector<64x512xf32>, vector<1x512xf32> -> vector<1x512xf32>
      %26 = vector.broadcast %24 : vector<1x1xf32> to vector<1x512xf32>
      %27 = arith.addf %25, %26 : vector<1x512xf32>
      %cst_23 = arith.constant 2.500000e+00 : f32
      %28 = vector.broadcast %cst_23 : f32 to vector<1x512xf32>
      %29 = arith.mulf %27, %28 : vector<1x512xf32>
      %cst_24 = arith.constant -5.000000e-01 : f32
      %30 = vector.broadcast %cst_24 : f32 to vector<1x512xf32>
      %31 = arith.addf %29, %30 : vector<1x512xf32>
      %c0_25 = arith.constant 0 : index
      %c0_26 = arith.constant 0 : index
      %32 = vector.load %arg10[%c0_25, %c0_26] : memref<1x512xf32, #tpu.memory_space<vmem>>, vector<1x512xf32>
      tpu.vector_store %arg10[%c0_25, %c0_26], %31 {strides = array<i32>} : memref<1x512xf32, #tpu.memory_space<vmem>>, vector<1x512xf32>,
    } else {
    }
    return
  }
  func.func @transform_0(%arg0: i32, %arg1: i32) -> (i32, i32, i32) {
    %c0_i32 = arith.constant 0 : i32
    %c0_i32_0 = arith.constant 0 : i32
    %c0_i32_1 = arith.constant 0 : i32
    return %c0_i32, %c0_i32_0, %arg0 : i32, i32, i32
  }
  func.func @transform_1(%arg0: i32, %arg1: i32) -> (i32, i32) {
    %c0_i32 = arith.constant 0 : i32
    %c0_i32_0 = arith.constant 0 : i32
    return %arg1, %c0_i32 : i32, i32
  }
  func.func @transform_2(%arg0: i32, %arg1: i32) -> (i32, i32, i32) {
    %c0_i32 = arith.constant 0 : i32
    %c0_i32_0 = arith.constant 0 : i32
    %c0_i32_1 = arith.constant 0 : i32
    return %c0_i32, %c0_i32_0, %arg1 : i32, i32, i32
  }
  func.func @transform_3(%arg0: i32, %arg1: i32) -> (i32, i32) {
    %c0_i32 = arith.constant 0 : i32
    %c0_i32_0 = arith.constant 0 : i32
    %c0_i32_1 = arith.constant 0 : i32
    return %c0_i32, %c0_i32_0 : i32, i32
  }
  func.func @transform_4(%arg0: i32, %arg1: i32) -> (i32, i32) {
    %c0_i32 = arith.constant 0 : i32
    %c0_i32_0 = arith.constant 0 : i32
    %c0_i32_1 = arith.constant 0 : i32
    return %c0_i32, %c0_i32_0 : i32, i32
  }
  func.func @transform_5(%arg0: i32, %arg1: i32) -> (i32, i32) {
    %c0_i32 = arith.constant 0 : i32
    %c0_i32_0 = arith.constant 0 : i32
    %c0_i32_1 = arith.constant 0 : i32
    return %c0_i32, %c0_i32_0 : i32, i32
  }
  func.func @transform_6(%arg0: i32, %arg1: i32) -> (i32, i32) {
    %c0_i32 = arith.constant 0 : i32
    %c0_i32_0 = arith.constant 0 : i32
    %c0_i32_1 = arith.constant 0 : i32
    return %c0_i32, %c0_i32_0 : i32, i32
  }
  func.func @transform_7(%arg0: i32, %arg1: i32) -> (i32, i32) {
    %c0_i32 = arith.constant 0 : i32
    %c0_i32_0 = arith.constant 0 : i32
    %c0_i32_1 = arith.constant 0 : i32
    return %c0_i32, %c0_i32_0 : i32, i32
  }
  func.func @transform_8(%arg0: i32, %arg1: i32) -> (i32, i32) {
    %c0_i32 = arith.constant 0 : i32
    %c0_i32_0 = arith.constant 0 : i32
    return %c0_i32, %arg0 : i32, i32
  }
}

</mosaic_0001>

<llo_original>
// kernel: tpu_custom_call.1
$region0: #{tpu_custom_call.1}
  #allocation0 [shape = 'u32[]', space=smem, size = 0x4, offset = 0x4, fixed_abs, tag = 'smem constant byte address 0x4 - core index']
  #allocation1 [shape = 'u32[144,128]{1,0:T(1,128)}', space=vmem, size = 0x12000, scoped, tag = 'internal scratch']
  #allocation2 [shape = 'f32[64,512]{1,0:T(8,128)}', space=vmem, size = 0x20000, scoped, tag = 'scratch operand']
  #allocation3 [shape = 'f32[1,1]{1,0:T(1,128)S(1)}', space=vmem, size = 0x200, scoped, tag = 'scoped memory for tpu_custom_call.1']
  %s0 = inlined_call_operand.vmem [shape: f32[4,3,1024], index: 0, kind: input, shape index: {}]
  %s1 = inlined_call_operand.vmem [shape: f32[512,3], index: 1, kind: input, shape index: {}]
  %s2 = inlined_call_operand.hbm [shape: f32[4,64,512], index: 2, kind: input, shape index: {}]
  %s3 = inlined_call_operand.vmem [shape: f32[64,1], index: 3, kind: input, shape index: {}]
  %s4 = inlined_call_operand.vmem [shape: f32[64,64], index: 4, kind: input, shape index: {}]
  %s5 = inlined_call_operand.vmem [shape: f32[64,1], index: 5, kind: input, shape index: {}]
  %s6 = inlined_call_operand.vmem [shape: f32[1,64], index: 6, kind: input, shape index: {}]
  %s7 = inlined_call_operand.<no memory space> [shape: f32[1,1], index: 7, kind: input, shape index: {}]
  %s8 = inlined_call_operand.hbm [shape: f32[1,1024], index: 8, kind: output, shape index: {}]
  %s9 = sld [smem:[#allocation0]]
  $region107: #{tpu_custom_call.1} parent=0
    _
  %s11 = ssub.s32 1, %s9
  %s12 = scalar_select 0, %s11, %s9
  %v13 = vstv %s7
  %14 = vst [vmem:[#allocation3] sm:$0x1] %v13
  $region1: #{tpu_custom_call.1} parent=0
    #allocation4 [shape = 'u8[65536]{0}', space=vmem, size = 0x10000, scoped, tag = 'input window, operand 0']
    #allocation5 [shape = 'u8[524288]{0}', space=vmem, size = 0x80000, scoped, tag = 'input window, operand 2, single buffered']
    #allocation6 [shape = 's32[2]{0}', space=sflag, size = 0x8, scoped, tag = 'scoped memory for tpu_custom_call.1']
    #allocation7 [shape = 's32[2]{0}', space=sflag, size = 0x8, scoped, tag = 'scoped memory for tpu_custom_call.1']
    #allocation8 [shape = 'u8[4096]{0}', space=vmem, size = 0x1000, scoped, tag = 'output window, operand 0']
    %15 = vsyncpa [#allocation6], 0
    %16 = vsyncpa [#allocation7], 0
    %s17 = scalar_lea.sflag [#allocation7], 1
    %18 = vsyncpa %s17, 0
    loop: start=0, step=1, limit=4
    $region2: #{tpu_custom_call.1} parent=1 // loop_pre_header
      _
    $region3: #{tpu_custom_call.1} parent=1 // loop_header
      %s20 = sphi 0, %s24
      %p21 = scmp.ge.s32.totalorder %s20, 4
      %s27 = sphi 0, %s39
      %s28 = sphi 0, %s35
      %s29 = sphi 0, %s27
      %s30 = sphi 0, %s28
      %s31 = sphi 0, %s29
      %s32 = sphi 0, %s30
      %s42 = sphi 0, %s44
      %s45 = sphi 0, %s42
      %s46 = sphi 0, %s45
      %s62 = sphi 0, %s46
      %s68 = sphi 0, %s70
      %s71 = sphi 0, %s68
      %s72 = sphi 0, %s71
      %s88 = sphi 0, %s72
      %s94 = sphi 0, %s96
      %s97 = sphi 0, %s94
      %s98 = sphi 0, %s97
      %s114 = sphi 0, %s98
      %s118 = sphi 0, %s118
      %s120 = sphi 0, %s118
      %s121 = sphi 0, %s120
      %s135 = sphi 0, %s121
      %s139 = sphi 0, %s139
      %s141 = sphi 0, %s139
      %s142 = sphi 0, %s141
      %s156 = sphi 0, %s142
      %s160 = sphi 0, %s160
      %s162 = sphi 0, %s160
      %s163 = sphi 0, %s162
      %s177 = sphi 0, %s163
      %s181 = sphi 0, %s181
      %s183 = sphi 0, %s181
      %s184 = sphi 0, %s183
      %s198 = sphi 0, %s184
      %s202 = sphi 0, %s202
      %s204 = sphi 0, %s202
      %s205 = sphi 0, %s204
      %s219 = sphi 0, %s205
      %s225 = sphi 0, %s227
      %s228 = sphi 0, %s225
      %s229 = sphi 0, %s228
      %s245 = sphi 0, %s229
    $region4: #{tpu_custom_call.1} parent=1 // loop_header_branch
      %23 = sbr.rel (%p21) target = $region8
    $region5: #{tpu_custom_call.1} parent=1 // loop_body
      %s25 = ssub.s32 %s20, 1
      %s26 = ssub.s32 %s20, 2
      %s33 = sadd.s32 1, %s28
      %p34 = scmp.ge.s32.totalorder %s33, 1
      %s35 = scalar_select %p34, 0, %s33
      %s36 = sadd.s32 1, %s27
      %s37 = scalar_select %p34, %s36, %s27
      %p38 = scmp.ge.s32.totalorder %s37, 2
      %s39 = scalar_select %p38, 0, %s37
      %s40 = ssub.s32 %s27, %s39
      %p41 = scmp.eq.s32.totalorder %s40, 0
      %s43 = sadd.s32 %s42, 1
      %s44 = scalar_select %p41, %s42, %s43
      %p47 = pneg %p41
      %p48 = scmp.eq.s32.totalorder %s20, 1
      %p49 = por %p47, %p48
      %p50 = scmp.ne.s32.totalorder %s42, %s45
      %p51 = scmp.eq.s32.totalorder %s20, 0
      %p52 = por %p50, %p51
      %p53 = scmp.ne.s32.totalorder %s42, %s45
      %p54 = scmp.eq.s32.totalorder %s25, 1
      %p55 = por %p53, %p54
      %p56 = scmp.ne.s32.totalorder %s45, %s46
      %p57 = scmp.eq.s32.totalorder %s25, 0
      %p58 = por %p56, %p57
      %p59 = scmp.ne.s32.totalorder %s45, %s46
      %p60 = scmp.eq.s32.totalorder %s26, 1
      %p61 = por %p59, %p60
      %p63 = scmp.ne.s32.totalorder %s46, %s62
      %p64 = scmp.eq.s32.totalorder %s26, 0
      %p65 = por %p63, %p64
      %s66 = ssub.s32 %s28, %s35
      %p67 = scmp.eq.s32.totalorder %s66, 0
      %s69 = sadd.s32 %s68, 1
      %s70 = scalar_select %p67, %s68, %s69
      %p73 = pneg %p67
      %p74 = scmp.eq.s32.totalorder %s20, 1
      %p75 = por %p73, %p74
      %p76 = scmp.ne.s32.totalorder %s68, %s71
      %p77 = scmp.eq.s32.totalorder %s20, 0
      %p78 = por %p76, %p77
      %p79 = scmp.ne.s32.totalorder %s68, %s71
      %p80 = scmp.eq.s32.totalorder %s25, 1
      %p81 = por %p79, %p80
      %p82 = scmp.ne.s32.totalorder %s71, %s72
      %p83 = scmp.eq.s32.totalorder %s25, 0
      %p84 = por %p82, %p83
      %p85 = scmp.ne.s32.totalorder %s71, %s72
      %p86 = scmp.eq.s32.totalorder %s26, 1
      %p87 = por %p85, %p86
      %p89 = scmp.ne.s32.totalorder %s72, %s88
      %p90 = scmp.eq.s32.totalorder %s26, 0
      %p91 = por %p89, %p90
      %s92 = ssub.s32 %s28, %s35
      %p93 = scmp.eq.s32.totalorder %s92, 0
      %s95 = sadd.s32 %s94, 1
      %s96 = scalar_select %p93, %s94, %s95
      %p99 = pneg %p93
      %p100 = scmp.eq.s32.totalorder %s20, 1
      %p101 = por %p99, %p100
      %p102 = scmp.ne.s32.totalorder %s94, %s97
      %p103 = scmp.eq.s32.totalorder %s20, 0
      %p104 = por %p102, %p103
      %p105 = scmp.ne.s32.totalorder %s94, %s97
      %p106 = scmp.eq.s32.totalorder %s25, 1
      %p107 = por %p105, %p106
      %p108 = scmp.ne.s32.totalorder %s97, %s98
      %p109 = scmp.eq.s32.totalorder %s25, 0
      %p110 = por %p108, %p109
      %p111 = scmp.ne.s32.totalorder %s97, %s98
      %p112 = scmp.eq.s32.totalorder %s26, 1
      %p113 = por %p111, %p112
      %p115 = scmp.ne.s32.totalorder %s98, %s114
      %p116 = scmp.eq.s32.totalorder %s26, 0
      %p117 = por %p115, %p116
      %s119 = sadd.s32 %s118, 1
      %p122 = scmp.eq.s32.totalorder %s20, 1
      %p123 = scmp.ne.s32.totalorder %s118, %s120
      %p124 = scmp.eq.s32.totalorder %s20, 0
      %p125 = por %p123, %p124
      %p126 = scmp.ne.s32.totalorder %s118, %s120
      %p127 = scmp.eq.s32.totalorder %s25, 1
      %p128 = por %p126, %p127
      %p129 = scmp.ne.s32.totalorder %s120, %s121
      %p130 = scmp.eq.s32.totalorder %s25, 0
      %p131 = por %p129, %p130
      %p132 = scmp.ne.s32.totalorder %s120, %s121
      %p133 = scmp.eq.s32.totalorder %s26, 1
      %p134 = por %p132, %p133
      %p136 = scmp.ne.s32.totalorder %s121, %s135
      %p137 = scmp.eq.s32.totalorder %s26, 0
      %p138 = por %p136, %p137
      %s140 = sadd.s32 %s139, 1
      %p143 = scmp.eq.s32.totalorder %s20, 1
      %p144 = scmp.ne.s32.totalorder %s139, %s141
      %p145 = scmp.eq.s32.totalorder %s20, 0
      %p146 = por %p144, %p145
      %p147 = scmp.ne.s32.totalorder %s139, %s141
      %p148 = scmp.eq.s32.totalorder %s25, 1
      %p149 = por %p147, %p148
      %p150 = scmp.ne.s32.totalorder %s141, %s142
      %p151 = scmp.eq.s32.totalorder %s25, 0
      %p152 = por %p150, %p151
      %p153 = scmp.ne.s32.totalorder %s141, %s142
      %p154 = scmp.eq.s32.totalorder %s26, 1
      %p155 = por %p153, %p154
      %p157 = scmp.ne.s32.totalorder %s142, %s156
      %p158 = scmp.eq.s32.totalorder %s26, 0
      %p159 = por %p157, %p158
      %s161 = sadd.s32 %s160, 1
      %p164 = scmp.eq.s32.totalorder %s20, 1
      %p165 = scmp.ne.s32.totalorder %s160, %s162
      %p166 = scmp.eq.s32.totalorder %s20, 0
      %p167 = por %p165, %p166
      %p168 = scmp.ne.s32.totalorder %s160, %s162
      %p169 = scmp.eq.s32.totalorder %s25, 1
      %p170 = por %p168, %p169
      %p171 = scmp.ne.s32.totalorder %s162, %s163
      %p172 = scmp.eq.s32.totalorder %s25, 0
      %p173 = por %p171, %p172
      %p174 = scmp.ne.s32.totalorder %s162, %s163
      %p175 = scmp.eq.s32.totalorder %s26, 1
      %p176 = por %p174, %p175
      %p178 = scmp.ne.s32.totalorder %s163, %s177
      %p179 = scmp.eq.s32.totalorder %s26, 0
      %p180 = por %p178, %p179
      %s182 = sadd.s32 %s181, 1
      %p185 = scmp.eq.s32.totalorder %s20, 1
      %p186 = scmp.ne.s32.totalorder %s181, %s183
      %p187 = scmp.eq.s32.totalorder %s20, 0
      %p188 = por %p186, %p187
      %p189 = scmp.ne.s32.totalorder %s181, %s183
      %p190 = scmp.eq.s32.totalorder %s25, 1
      %p191 = por %p189, %p190
      %p192 = scmp.ne.s32.totalorder %s183, %s184
      %p193 = scmp.eq.s32.totalorder %s25, 0
      %p194 = por %p192, %p193
      %p195 = scmp.ne.s32.totalorder %s183, %s184
      %p196 = scmp.eq.s32.totalorder %s26, 1
      %p197 = por %p195, %p196
      %p199 = scmp.ne.s32.totalorder %s184, %s198
      %p200 = scmp.eq.s32.totalorder %s26, 0
      %p201 = por %p199, %p200
      %s203 = sadd.s32 %s202, 1
      %p206 = scmp.eq.s32.totalorder %s20, 1
      %p207 = scmp.ne.s32.totalorder %s202, %s204
      %p208 = scmp.eq.s32.totalorder %s20, 0
      %p209 = por %p207, %p208
      %p210 = scmp.ne.s32.totalorder %s202, %s204
      %p211 = scmp.eq.s32.totalorder %s25, 1
      %p212 = por %p210, %p211
      %p213 = scmp.ne.s32.totalorder %s204, %s205
      %p214 = scmp.eq.s32.totalorder %s25, 0
      %p215 = por %p213, %p214
      %p216 = scmp.ne.s32.totalorder %s204, %s205
      %p217 = scmp.eq.s32.totalorder %s26, 1
      %p218 = por %p216, %p217
      %p220 = scmp.ne.s32.totalorder %s205, %s219
      %p221 = scmp.eq.s32.totalorder %s26, 0
      %p222 = por %p220, %p221
      %s223 = ssub.s32 %s27, %s39
      %p224 = scmp.eq.s32.totalorder %s223, 0
      %s226 = sadd.s32 %s225, 1
      %s227 = scalar_select %p224, %s225, %s226
      %p230 = pneg %p224
      %p231 = scmp.eq.s32.totalorder %s20, 1
      %p232 = por %p230, %p231
      %p233 = scmp.ne.s32.totalorder %s225, %s228
      %p234 = scmp.eq.s32.totalorder %s20, 0
      %p235 = por %p233, %p234
      %p236 = scmp.ne.s32.totalorder %s225, %s228
      %p237 = scmp.eq.s32.totalorder %s25, 1
      %p238 = por %p236, %p237
      %p239 = scmp.ne.s32.totalorder %s228, %s229
      %p240 = scmp.eq.s32.totalorder %s25, 0
      %p241 = por %p239, %p240
      %p242 = scmp.ne.s32.totalorder %s228, %s229
      %p243 = scmp.eq.s32.totalorder %s26, 1
      %p244 = por %p242, %p243
      %p246 = scmp.ne.s32.totalorder %s229, %s245
      %p247 = scmp.eq.s32.totalorder %s26, 0
      %p248 = por %p246, %p247
      %p249 = scmp.le.s32.totalorder 1, %s20
      %p250 = scmp.lt.s32.totalorder %s20, 3
      %p251 = pnand %p249, %p250
      %p252 = pneg %p251
      // Predicated region
      $region9: #{tpu_custom_call.1} parent=5 // pred_check
        _
      $region10: #{tpu_custom_call.1} parent=5 // pred_check_branch
        %254 = sbr.rel (%p251) target = $region12
      $region11: #{tpu_custom_call.1} parent=5 // pred_region
        %s255 = ssub.s32 %s20, 1
        // Predicated region
        $region13: #{tpu_custom_call.1} parent=11 // pred_check
          %p256 = pneg %p84
        $region14: #{tpu_custom_call.1} parent=11 // pred_check_branch
          %258 = sbr.rel (%p256) target = $region16
        $region15: #{tpu_custom_call.1} parent=11 // pred_region
          %s259 = smul.u32 64, %s30
          %p260 = scmp.lt.s32.totalorder %s259, 63
          %s261 = scalar_select %p260, %s259, 63
          %s262 = smul.addr %s261, 8
          %s263 = scalar_lea.vmem %s1, %s262
          %s264 = smul.u32 64, %s30
        $region16: #{tpu_custom_call.1} parent=11 // pred_fallthru
          _
        // Predicated region
        $region17: #{tpu_custom_call.1} parent=11 // pred_check
          %p265 = pneg %p110
        $region18: #{tpu_custom_call.1} parent=11 // pred_check_branch
          %267 = sbr.rel (%p265) target = $region20
        $region19: #{tpu_custom_call.1} parent=11 // pred_region
          %s268 = smul.u32 4, %s30
          %s270 = ssub.s32 16384, 16384
          %271 = vsyncadd [#allocation6], %s270
          %s272 = smul.addr %s268, 128
          %s273 = scalar_lea.hbm %s2, %s272
          %s274 = sshll.u32 [#allocation5], 4
          %s275 = int_to_ptr.vmem [resolvable:$true] %s274
          %280 = dma.hbm_to_vmem [thread:$0]  %s273, 16384, %s275, [#allocation6], 512, 512, 32
        $region20: #{tpu_custom_call.1} parent=11 // pred_fallthru
          _
        // Predicated region
        $region21: #{tpu_custom_call.1} parent=11 // pred_check
          %p281 = pneg %p131
        $region22: #{tpu_custom_call.1} parent=11 // pred_check_branch
          %283 = sbr.rel (%p281) target = $region24
        $region23: #{tpu_custom_call.1} parent=11 // pred_region
          _
        $region24: #{tpu_custom_call.1} parent=11 // pred_fallthru
          _
        // Predicated region
        $region25: #{tpu_custom_call.1} parent=11 // pred_check
          %p284 = pneg %p152
        $region26: #{tpu_custom_call.1} parent=11 // pred_check_branch
          %286 = sbr.rel (%p284) target = $region28
        $region27: #{tpu_custom_call.1} parent=11 // pred_region
          _
        $region28: #{tpu_custom_call.1} parent=11 // pred_fallthru
          _
        // Predicated region
        $region29: #{tpu_custom_call.1} parent=11 // pred_check
          %p287 = pneg %p173
        $region30: #{tpu_custom_call.1} parent=11 // pred_check_branch
          %289 = sbr.rel (%p287) target = $region32
        $region31: #{tpu_custom_call.1} parent=11 // pred_region
          _
        $region32: #{tpu_custom_call.1} parent=11 // pred_fallthru
          _
        // Predicated region
        $region33: #{tpu_custom_call.1} parent=11 // pred_check
          %p290 = pneg %p194
        $region34: #{tpu_custom_call.1} parent=11 // pred_check_branch
          %292 = sbr.rel (%p290) target = $region36
        $region35: #{tpu_custom_call.1} parent=11 // pred_region
          _
        $region36: #{tpu_custom_call.1} parent=11 // pred_fallthru
          _
        // Predicated region
        $region37: #{tpu_custom_call.1} parent=11 // pred_check
          %p293 = pneg %p215
        $region38: #{tpu_custom_call.1} parent=11 // pred_check_branch
          %295 = sbr.rel (%p293) target = $region40
        $region39: #{tpu_custom_call.1} parent=11 // pred_region
          _
        $region40: #{tpu_custom_call.1} parent=11 // pred_fallthru
          _
      $region12: #{tpu_custom_call.1} parent=5 // pred_fallthru
        _
      %p296 = scmp.lt.s32.totalorder %s20, 2
      // Predicated region
      $region41: #{tpu_custom_call.1} parent=5 // pred_check
        %p297 = pneg %p296
      $region42: #{tpu_custom_call.1} parent=5 // pred_check_branch
        %299 = sbr.rel (%p297) target = $region44
      $region43: #{tpu_custom_call.1} parent=5 // pred_region
        // Predicated region
        $region45: #{tpu_custom_call.1} parent=43 // pred_check
          %p300 = pneg %p52
        $region46: #{tpu_custom_call.1} parent=43 // pred_check_branch
          %302 = sbr.rel (%p300) target = $region48
        $region47: #{tpu_custom_call.1} parent=43 // pred_region
          %s303 = sand.u32 %s42, 1
          %s304 = sand.u32 %s42, 1
          %s305 = smul.addr %s304, 64
          %s306 = scalar_lea.vmem [#allocation4], %s305
          %s307 = smul.u32 4, %s27
          %s308 = smul.addr %s307, 4
          %s309 = scalar_lea.vmem %s0, %s308
          // Predicated region
          $region49: #{tpu_custom_call.1} parent=47 // pred_check
            _
          $region50: #{tpu_custom_call.1} parent=47 // pred_check_branch
            %311 = sbr.rel (0) target = $region52
          $region51: #{tpu_custom_call.1} parent=47 // pred_region
            // Predicated region
            $region53: #{tpu_custom_call.1} parent=51 // pred_check
              _
            $region54: #{tpu_custom_call.1} parent=51 // pred_check_branch
              %313 = sbr.rel (0) target = $region56
            $region55: #{tpu_custom_call.1} parent=51 // pred_region
              loop: start=0, step=1, limit=1
              $region57: #{tpu_custom_call.1} parent=55 // loop_pre_header
                _
              $region58: #{tpu_custom_call.1} parent=55 // loop_header
                %s315 = sphi 0, %s319
                %p316 = scmp.ge.s32.totalorder %s315, 1
                %s320 = sphi %s309, %s309
                %s321 = sphi %s306, %s306
              $region59: #{tpu_custom_call.1} parent=55 // loop_header_branch
                %318 = sbr.rel (%p316) target = $region63
              $region60: #{tpu_custom_call.1} parent=55 // loop_body
                %v322 = vld [vmem:[%s320] sm:$0xff]
                %323 = vst [vmem:[%s321] sm:$0xff] %v322
                %v324 = vld [vmem:[%s320 + $0x8] sm:$0xff]
                %325 = vst [vmem:[%s321 + $0x8] sm:$0xff] %v324
                %v326 = vld [vmem:[%s320 + $0x20] sm:$0xff]
                %327 = vst [vmem:[%s321 + $0x10] sm:$0xff] %v326
                %v328 = vld [vmem:[%s320 + $0x28] sm:$0xff]
                %329 = vst [vmem:[%s321 + $0x18] sm:$0xff] %v328
                %v330 = vld [vmem:[%s320 + $0x40] sm:$0xff]
                %331 = vst [vmem:[%s321 + $0x20] sm:$0xff] %v330
                %v332 = vld [vmem:[%s320 + $0x48] sm:$0xff]
                %333 = vst [vmem:[%s321 + $0x28] sm:$0xff] %v332
                %v334 = vld [vmem:[%s320 + $0x60] sm:$0xff]
                %335 = vst [vmem:[%s321 + $0x30] sm:$0xff] %v334
                %v336 = vld [vmem:[%s320 + $0x68] sm:$0xff]
                %337 = vst [vmem:[%s321 + $0x38] sm:$0xff] %v336
              $region61: #{tpu_custom_call.1} parent=55 // loop_footer
                %s319 = sadd.s32 1, %s315
              $region62: #{tpu_custom_call.1} parent=55 // loop_footer_branch
                %314 = sbr.rel target = $region58
              $region63: #{tpu_custom_call.1} parent=55 // loop_exit
                _
            $region56: #{tpu_custom_call.1} parent=51 // pred_fallthru
              _
            // Predicated region
            $region64: #{tpu_custom_call.1} parent=51 // pred_check
              _
            $region65: #{tpu_custom_call.1} parent=51 // pred_check_branch
              %339 = sbr.rel target = $region67
            $region66: #{tpu_custom_call.1} parent=51 // pred_region
              _
            $region67: #{tpu_custom_call.1} parent=51 // pred_fallthru
              _
          $region52: #{tpu_custom_call.1} parent=47 // pred_fallthru
            _
          %340 = vnop
        $region48: #{tpu_custom_call.1} parent=43 // pred_fallthru
          _
      $region44: #{tpu_custom_call.1} parent=5 // pred_fallthru
        _
      %p341 = scmp.le.s32.totalorder 1, %s20
      %p342 = scmp.lt.s32.totalorder %s20, 3
      %p343 = pnand %p341, %p342
      %p344 = pneg %p343
      // Predicated region
      $region68: #{tpu_custom_call.1} parent=5 // pred_check
        _
      $region69: #{tpu_custom_call.1} parent=5 // pred_check_branch
        %346 = sbr.rel (%p343) target = $region71
      $region70: #{tpu_custom_call.1} parent=5 // pred_region
        %s347 = ssub.s32 %s20, 1
        %s348 = sand.u32 %s45, 1
        %s349 = sand.u32 %s45, 1
        %s350 = smul.addr %s349, 64
        %s351 = scalar_lea.vmem [#allocation4], %s350
        // Predicated region
        $region72: #{tpu_custom_call.1} parent=70 // pred_check
          %p352 = pneg %p58
        $region73: #{tpu_custom_call.1} parent=70 // pred_check_branch
          %354 = sbr.rel (%p352) target = $region75
        $region74: #{tpu_custom_call.1} parent=70 // pred_region
          _
        $region75: #{tpu_custom_call.1} parent=70 // pred_fallthru
          _
        // Predicated region
        $region76: #{tpu_custom_call.1} parent=70 // pred_check
          %p355 = pneg %p110
        $region77: #{tpu_custom_call.1} parent=70 // pred_check_branch
          %357 = sbr.rel (%p355) target = $region79
        $region78: #{tpu_custom_call.1} parent=70 // pred_region
          %358 = dma.done [#allocation6], 16384
        $region79: #{tpu_custom_call.1} parent=70 // pred_fallthru
          _
        %s359 = sand.u32 %s45, 1
        %s360 = sand.u32 %s45, 1
        %s361 = smul.addr %s360, 64
        %s362 = scalar_lea.vmem [#allocation4], %s361
        %p363 = pneg %p58
        %p364 = pneg %p55
        %s365 = smul.u32 64, %s30
        %p366 = scmp.lt.s32.totalorder %s365, 63
        %s367 = scalar_select %p366, %s365, 63
        %s368 = smul.addr %s367, 8
        %s369 = scalar_lea.vmem %s1, %s368
        %p370 = pneg %p84
        %p371 = pneg %p81
        %p372 = pneg %p110
        %p373 = pneg %p107
        %p374 = pneg %p131
        %p375 = pneg %p128
        %p376 = pneg %p152
        %p377 = pneg %p149
        %p378 = pneg %p173
        %p379 = pneg %p170
        %p380 = pneg %p194
        %p381 = pneg %p191
        %p382 = pneg %p215
        %p383 = pneg %p212
        %p384 = pneg %p241
        %p385 = pneg %p238
        %s386 = sand.u32 %s228, 1
        %s387 = scalar_lea.sflag [#allocation7], %s386
        %s388 = sand.u32 %s228, 1
        %s389 = smul.addr %s388, 4
        %s390 = scalar_lea.vmem [#allocation8], %s389
        %s391 = smul.u32 4, %s29
        %s392 = smul.u32 64, %s30
        %p393 = scmp.lt.s32.totalorder %s392, 63
        %s394 = scalar_select %p393, %s392, 63
        %s395 = smul.addr %s394, 8
        %s396 = scalar_lea.vmem %s1, %s395
        %s397 = smul.u32 64, %s30
        %s398 = smul.u32 4, %s30
        %s399 = smul.u32 4, %s29
        %p400 = scmp.eq.s32.totalorder %s30, 0
        // Predicated region
        $region80: #{tpu_custom_call.1} parent=70 // pred_check
          %p401 = pneg %p400
        $region81: #{tpu_custom_call.1} parent=70 // pred_check_branch
          %403 = sbr.rel (%p401) target = $region83
        $region82: #{tpu_custom_call.1} parent=70 // pred_region
          %404 = vst [vmem:[#allocation2] sm:$0xff] 0.0
          %405 = vst [vmem:[#allocation2 + $0x8] sm:$0xff] 0.0
          %406 = vst [vmem:[#allocation2 + $0x10] sm:$0xff] 0.0
          %407 = vst [vmem:[#allocation2 + $0x18] sm:$0xff] 0.0
          %408 = vst [vmem:[#allocation2 + $0x20] sm:$0xff] 0.0
          %409 = vst [vmem:[#allocation2 + $0x28] sm:$0xff] 0.0
          %410 = vst [vmem:[#allocation2 + $0x30] sm:$0xff] 0.0
          %411 = vst [vmem:[#allocation2 + $0x38] sm:$0xff] 0.0
          %412 = vst [vmem:[#allocation2 + $0x40] sm:$0xff] 0.0
          %413 = vst [vmem:[#allocation2 + $0x48] sm:$0xff] 0.0
          %414 = vst [vmem:[#allocation2 + $0x50] sm:$0xff] 0.0
          %415 = vst [vmem:[#allocation2 + $0x58] sm:$0xff] 0.0
          %416 = vst [vmem:[#allocation2 + $0x60] sm:$0xff] 0.0
          %417 = vst [vmem:[#allocation2 + $0x68] sm:$0xff] 0.0
          %418 = vst [vmem:[#allocation2 + $0x70] sm:$0xff] 0.0
          %419 = vst [vmem:[#allocation2 + $0x78] sm:$0xff] 0.0
          %420 = vst [vmem:[#allocation2 + $0x80] sm:$0xff] 0.0
          %421 = vst [vmem:[#allocation2 + $0x88] sm:$0xff] 0.0
          %422 = vst [vmem:[#allocation2 + $0x90] sm:$0xff] 0.0
          %423 = vst [vmem:[#allocation2 + $0x98] sm:$0xff] 0.0
          %424 = vst [vmem:[#allocation2 + $0xa0] sm:$0xff] 0.0
          %425 = vst [vmem:[#allocation2 + $0xa8] sm:$0xff] 0.0
          %426 = vst [vmem:[#allocation2 + $0xb0] sm:$0xff] 0.0
          %427 = vst [vmem:[#allocation2 + $0xb8] sm:$0xff] 0.0
          %428 = vst [vmem:[#allocation2 + $0xc0] sm:$0xff] 0.0
          %429 = vst [vmem:[#allocation2 + $0xc8] sm:$0xff] 0.0
          %430 = vst [vmem:[#allocation2 + $0xd0] sm:$0xff] 0.0
          %431 = vst [vmem:[#allocation2 + $0xd8] sm:$0xff] 0.0
          %432 = vst [vmem:[#allocation2 + $0xe0] sm:$0xff] 0.0
          %433 = vst [vmem:[#allocation2 + $0xe8] sm:$0xff] 0.0
          %434 = vst [vmem:[#allocation2 + $0xf0] sm:$0xff] 0.0
          %435 = vst [vmem:[#allocation2 + $0xf8] sm:$0xff] 0.0
        $region83: #{tpu_custom_call.1} parent=70 // pred_fallthru
          _
        %v436 = vld [vmem:[%s396] sm:$0xff]
        %v437 = vld [vmem:[%s396 + $0x8] sm:$0xff]
        %v438 = vld [vmem:[%s396 + $0x10] sm:$0xff]
        %v439 = vld [vmem:[%s396 + $0x18] sm:$0xff]
        %v440 = vld [vmem:[%s396 + $0x20] sm:$0xff]
        %v441 = vld [vmem:[%s396 + $0x28] sm:$0xff]
        %v442 = vld [vmem:[%s396 + $0x30] sm:$0xff]
        %v443 = vld [vmem:[%s396 + $0x38] sm:$0xff]
        %v444 = vld [vmem:[%s396 + $0x40] sm:$0xff]
        %v445 = vld [vmem:[%s396 + $0x48] sm:$0xff]
        %v446 = vld [vmem:[%s396 + $0x50] sm:$0xff]
        %v447 = vld [vmem:[%s396 + $0x58] sm:$0xff]
        %v448 = vld [vmem:[%s396 + $0x60] sm:$0xff]
        %v449 = vld [vmem:[%s396 + $0x68] sm:$0xff]
        %v450 = vld [vmem:[%s396 + $0x70] sm:$0xff]
        %v451 = vld [vmem:[%s396 + $0x78] sm:$0xff]
        %v452 = vld [vmem:[%s396 + $0x80] sm:$0xff]
        %v453 = vld [vmem:[%s396 + $0x88] sm:$0xff]
        %v454 = vld [vmem:[%s396 + $0x90] sm:$0xff]
        %v455 = vld [vmem:[%s396 + $0x98] sm:$0xff]
        %v456 = vld [vmem:[%s396 + $0xa0] sm:$0xff]
        %v457 = vld [vmem:[%s396 + $0xa8] sm:$0xff]
        %v458 = vld [vmem:[%s396 + $0xb0] sm:$0xff]
        %v459 = vld [vmem:[%s396 + $0xb8] sm:$0xff]
        %v460 = vld [vmem:[%s396 + $0xc0] sm:$0xff]
        %v461 = vld [vmem:[%s396 + $0xc8] sm:$0xff]
        %v462 = vld [vmem:[%s396 + $0xd0] sm:$0xff]
        %v463 = vld [vmem:[%s396 + $0xd8] sm:$0xff]
        %v464 = vld [vmem:[%s396 + $0xe0] sm:$0xff]
        %v465 = vld [vmem:[%s396 + $0xe8] sm:$0xff]
        %v466 = vld [vmem:[%s396 + $0xf0] sm:$0xff]
        %v467 = vld [vmem:[%s396 + $0xf8] sm:$0xff]
        %v468 = vld [vmem:[%s396 + $0x100] sm:$0xff]
        %v469 = vld [vmem:[%s396 + $0x108] sm:$0xff]
        %v470 = vld [vmem:[%s396 + $0x110] sm:$0xff]
        %v471 = vld [vmem:[%s396 + $0x118] sm:$0xff]
        %v472 = vld [vmem:[%s396 + $0x120] sm:$0xff]
        %v473 = vld [vmem:[%s396 + $0x128] sm:$0xff]
        %v474 = vld [vmem:[%s396 + $0x130] sm:$0xff]
        %v475 = vld [vmem:[%s396 + $0x138] sm:$0xff]
        %v476 = vld [vmem:[%s396 + $0x140] sm:$0xff]
        %v477 = vld [vmem:[%s396 + $0x148] sm:$0xff]
        %v478 = vld [vmem:[%s396 + $0x150] sm:$0xff]
        %v479 = vld [vmem:[%s396 + $0x158] sm:$0xff]
        %v480 = vld [vmem:[%s396 + $0x160] sm:$0xff]
        %v481 = vld [vmem:[%s396 + $0x168] sm:$0xff]
        %v482 = vld [vmem:[%s396 + $0x170] sm:$0xff]
        %v483 = vld [vmem:[%s396 + $0x178] sm:$0xff]
        %v484 = vld [vmem:[%s396 + $0x180] sm:$0xff]
        %v485 = vld [vmem:[%s396 + $0x188] sm:$0xff]
        %v486 = vld [vmem:[%s396 + $0x190] sm:$0xff]
        %v487 = vld [vmem:[%s396 + $0x198] sm:$0xff]
        %v488 = vld [vmem:[%s396 + $0x1a0] sm:$0xff]
        %v489 = vld [vmem:[%s396 + $0x1a8] sm:$0xff]
        %v490 = vld [vmem:[%s396 + $0x1b0] sm:$0xff]
        %v491 = vld [vmem:[%s396 + $0x1b8] sm:$0xff]
        %v492 = vld [vmem:[%s396 + $0x1c0] sm:$0xff]
        %v493 = vld [vmem:[%s396 + $0x1c8] sm:$0xff]
        %v494 = vld [vmem:[%s396 + $0x1d0] sm:$0xff]
        %v495 = vld [vmem:[%s396 + $0x1d8] sm:$0xff]
        %v496 = vld [vmem:[%s396 + $0x1e0] sm:$0xff]
        %v497 = vld [vmem:[%s396 + $0x1e8] sm:$0xff]
        %v498 = vld [vmem:[%s396 + $0x1f0] sm:$0xff]
        %v499 = vld [vmem:[%s396 + $0x1f8] sm:$0xff]
        loop: start=0, step=1, limit=4
        $region84: #{tpu_custom_call.1} parent=70 // loop_pre_header
          _
        $region85: #{tpu_custom_call.1} parent=70 // loop_header
          %s501 = sphi 0, %s505
          %p502 = scmp.ge.s32.totalorder %s501, 4
        $region86: #{tpu_custom_call.1} parent=70 // loop_header_branch
          %504 = sbr.rel (%p502) target = $region90
        $region87: #{tpu_custom_call.1} parent=70 // loop_body
          %s506 = smul.u32 %s501, 4
          %s507 = smul.addr %s506, 4
          %s508 = scalar_lea.vmem %s351, %s507 [#allocation4]
          %v509 = vld [vmem:[%s508] sm:$0x77]
          %v510 = vld [vmem:[%s508 + $0x8] sm:$0x77]
          %512 = vset.pattern.permute.xlu0 0
          %513 = vperm.xlu0 %512, %v436
          %v514 = vpop.permute.xlu0 %513
          %517 = vset.pattern.permute.xlu0 0
          %518 = vperm.xlu0 %517, %v437
          %v519 = vpop.permute.xlu0 %518
          %522 = vset.pattern.permute.xlu0 0
          %523 = vperm.xlu0 %522, %v438
          %v524 = vpop.permute.xlu0 %523
          %527 = vset.pattern.permute.xlu0 0
          %528 = vperm.xlu0 %527, %v439
          %v529 = vpop.permute.xlu0 %528
          %532 = vset.pattern.permute.xlu0 0
          %533 = vperm.xlu0 %532, %v440
          %v534 = vpop.permute.xlu0 %533
          %537 = vset.pattern.permute.xlu0 0
          %538 = vperm.xlu0 %537, %v441
          %v539 = vpop.permute.xlu0 %538
          %542 = vset.pattern.permute.xlu0 0
          %543 = vperm.xlu0 %542, %v442
          %v544 = vpop.permute.xlu0 %543
          %547 = vset.pattern.permute.xlu0 0
          %548 = vperm.xlu0 %547, %v443
          %v549 = vpop.permute.xlu0 %548
          %552 = vset.pattern.permute.xlu0 0
          %553 = vperm.xlu0 %552, %v444
          %v554 = vpop.permute.xlu0 %553
          %557 = vset.pattern.permute.xlu0 0
          %558 = vperm.xlu0 %557, %v445
          %v559 = vpop.permute.xlu0 %558
          %562 = vset.pattern.permute.xlu0 0
          %563 = vperm.xlu0 %562, %v446
          %v564 = vpop.permute.xlu0 %563
          %567 = vset.pattern.permute.xlu0 0
          %568 = vperm.xlu0 %567, %v447
          %v569 = vpop.permute.xlu0 %568
          %572 = vset.pattern.permute.xlu0 0
          %573 = vperm.xlu0 %572, %v448
          %v574 = vpop.permute.xlu0 %573
          %577 = vset.pattern.permute.xlu0 0
          %578 = vperm.xlu0 %577, %v449
          %v579 = vpop.permute.xlu0 %578
          %582 = vset.pattern.permute.xlu0 0
          %583 = vperm.xlu0 %582, %v450
          %v584 = vpop.permute.xlu0 %583
          %587 = vset.pattern.permute.xlu0 0
          %588 = vperm.xlu0 %587, %v451
          %v589 = vpop.permute.xlu0 %588
          %592 = vset.pattern.permute.xlu0 0
          %593 = vperm.xlu0 %592, %v452
          %v594 = vpop.permute.xlu0 %593
          %597 = vset.pattern.permute.xlu0 0
          %598 = vperm.xlu0 %597, %v453
          %v599 = vpop.permute.xlu0 %598
          %602 = vset.pattern.permute.xlu0 0
          %603 = vperm.xlu0 %602, %v454
          %v604 = vpop.permute.xlu0 %603
          %607 = vset.pattern.permute.xlu0 0
          %608 = vperm.xlu0 %607, %v455
          %v609 = vpop.permute.xlu0 %608
          %612 = vset.pattern.permute.xlu0 0
          %613 = vperm.xlu0 %612, %v456
          %v614 = vpop.permute.xlu0 %613
          %617 = vset.pattern.permute.xlu0 0
          %618 = vperm.xlu0 %617, %v457
          %v619 = vpop.permute.xlu0 %618
          %622 = vset.pattern.permute.xlu0 0
          %623 = vperm.xlu0 %622, %v458
          %v624 = vpop.permute.xlu0 %623
          %627 = vset.pattern.permute.xlu0 0
          %628 = vperm.xlu0 %627, %v459
          %v629 = vpop.permute.xlu0 %628
          %632 = vset.pattern.permute.xlu0 0
          %633 = vperm.xlu0 %632, %v460
          %v634 = vpop.permute.xlu0 %633
          %637 = vset.pattern.permute.xlu0 0
          %638 = vperm.xlu0 %637, %v461
          %v639 = vpop.permute.xlu0 %638
          %642 = vset.pattern.permute.xlu0 0
          %643 = vperm.xlu0 %642, %v462
          %v644 = vpop.permute.xlu0 %643
          %647 = vset.pattern.permute.xlu0 0
          %648 = vperm.xlu0 %647, %v463
          %v649 = vpop.permute.xlu0 %648
          %652 = vset.pattern.permute.xlu0 0
          %653 = vperm.xlu0 %652, %v464
          %v654 = vpop.permute.xlu0 %653
          %657 = vset.pattern.permute.xlu0 0
          %658 = vperm.xlu0 %657, %v465
          %v659 = vpop.permute.xlu0 %658
          %662 = vset.pattern.permute.xlu0 0
          %663 = vperm.xlu0 %662, %v466
          %v664 = vpop.permute.xlu0 %663
          %667 = vset.pattern.permute.xlu0 0
          %668 = vperm.xlu0 %667, %v467
          %v669 = vpop.permute.xlu0 %668
          %672 = vset.pattern.permute.xlu0 0
          %673 = vperm.xlu0 %672, %v468
          %v674 = vpop.permute.xlu0 %673
          %677 = vset.pattern.permute.xlu0 0
          %678 = vperm.xlu0 %677, %v469
          %v679 = vpop.permute.xlu0 %678
          %682 = vset.pattern.permute.xlu0 0
          %683 = vperm.xlu0 %682, %v470
          %v684 = vpop.permute.xlu0 %683
          %687 = vset.pattern.permute.xlu0 0
          %688 = vperm.xlu0 %687, %v471
          %v689 = vpop.permute.xlu0 %688
          %692 = vset.pattern.permute.xlu0 0
          %693 = vperm.xlu0 %692, %v472
          %v694 = vpop.permute.xlu0 %693
          %697 = vset.pattern.permute.xlu0 0
          %698 = vperm.xlu0 %697, %v473
          %v699 = vpop.permute.xlu0 %698
          %702 = vset.pattern.permute.xlu0 0
          %703 = vperm.xlu0 %702, %v474
          %v704 = vpop.permute.xlu0 %703
          %707 = vset.pattern.permute.xlu0 0
          %708 = vperm.xlu0 %707, %v475
          %v709 = vpop.permute.xlu0 %708
          %712 = vset.pattern.permute.xlu0 0
          %713 = vperm.xlu0 %712, %v476
          %v714 = vpop.permute.xlu0 %713
          %717 = vset.pattern.permute.xlu0 0
          %718 = vperm.xlu0 %717, %v477
          %v719 = vpop.permute.xlu0 %718
          %722 = vset.pattern.permute.xlu0 0
          %723 = vperm.xlu0 %722, %v478
          %v724 = vpop.permute.xlu0 %723
          %727 = vset.pattern.permute.xlu0 0
          %728 = vperm.xlu0 %727, %v479
          %v729 = vpop.permute.xlu0 %728
          %732 = vset.pattern.permute.xlu0 0
          %733 = vperm.xlu0 %732, %v480
          %v734 = vpop.permute.xlu0 %733
          %737 = vset.pattern.permute.xlu0 0
          %738 = vperm.xlu0 %737, %v481
          %v739 = vpop.permute.xlu0 %738
          %742 = vset.pattern.permute.xlu0 0
          %743 = vperm.xlu0 %742, %v482
          %v744 = vpop.permute.xlu0 %743
          %747 = vset.pattern.permute.xlu0 0
          %748 = vperm.xlu0 %747, %v483
          %v749 = vpop.permute.xlu0 %748
          %752 = vset.pattern.permute.xlu0 0
          %753 = vperm.xlu0 %752, %v484
          %v754 = vpop.permute.xlu0 %753
          %757 = vset.pattern.permute.xlu0 0
          %758 = vperm.xlu0 %757, %v485
          %v759 = vpop.permute.xlu0 %758
          %762 = vset.pattern.permute.xlu0 0
          %763 = vperm.xlu0 %762, %v486
          %v764 = vpop.permute.xlu0 %763
          %767 = vset.pattern.permute.xlu0 0
          %768 = vperm.xlu0 %767, %v487
          %v769 = vpop.permute.xlu0 %768
          %772 = vset.pattern.permute.xlu0 0
          %773 = vperm.xlu0 %772, %v488
          %v774 = vpop.permute.xlu0 %773
          %777 = vset.pattern.permute.xlu0 0
          %778 = vperm.xlu0 %777, %v489
          %v779 = vpop.permute.xlu0 %778
          %782 = vset.pattern.permute.xlu0 0
          %783 = vperm.xlu0 %782, %v490
          %v784 = vpop.permute.xlu0 %783
          %787 = vset.pattern.permute.xlu0 0
          %788 = vperm.xlu0 %787, %v491
          %v789 = vpop.permute.xlu0 %788
          %792 = vset.pattern.permute.xlu0 0
          %793 = vperm.xlu0 %792, %v492
          %v794 = vpop.permute.xlu0 %793
          %797 = vset.pattern.permute.xlu0 0
          %798 = vperm.xlu0 %797, %v493
          %v799 = vpop.permute.xlu0 %798
          %802 = vset.pattern.permute.xlu0 0
          %803 = vperm.xlu0 %802, %v494
          %v804 = vpop.permute.xlu0 %803
          %807 = vset.pattern.permute.xlu0 0
          %808 = vperm.xlu0 %807, %v495
          %v809 = vpop.permute.xlu0 %808
          %812 = vset.pattern.permute.xlu0 0
          %813 = vperm.xlu0 %812, %v496
          %v814 = vpop.permute.xlu0 %813
          %817 = vset.pattern.permute.xlu0 0
          %818 = vperm.xlu0 %817, %v497
          %v819 = vpop.permute.xlu0 %818
          %822 = vset.pattern.permute.xlu0 0
          %823 = vperm.xlu0 %822, %v498
          %v824 = vpop.permute.xlu0 %823
          %827 = vset.pattern.permute.xlu0 0
          %828 = vperm.xlu0 %827, %v499
          %v829 = vpop.permute.xlu0 %828
          %v833 = vlaneseq
          %v834 = vshrl.u32 %v833, 7
          %v835 = vsub.s32 0, %v834
          %v836 = vrot.slane %v509, %v835
          %v837 = vlaneseq
          %v838 = vshrl.u32 %v837, 7
          %v839 = vsub.s32 4, %v838
          %v840 = vrot.slane %v509, %v839
          %v841 = vlaneseq
          %v842 = vshrl.u32 %v841, 7
          %v843 = vsub.s32 0, %v842
          %v844 = vrot.slane %v510, %v843
          %v845 = vlaneseq
          %v846 = vshrl.u32 %v845, 7
          %v847 = vsub.s32 4, %v846
          %v848 = vrot.slane %v510, %v847
          %v853 = vlaneseq
          %v854 = vshrl.u32 %v853, 7
          %v855 = vsub.s32 0, %v854
          %v856 = vrot.slane %v836, %v855
          %v857 = vlaneseq
          %v858 = vshrl.u32 %v857, 7
          %v859 = vsub.s32 0, %v858
          %v860 = vrot.slane %v840, %v859
          %v861 = vlaneseq
          %v862 = vshrl.u32 %v861, 7
          %v863 = vsub.s32 0, %v862
          %v864 = vrot.slane %v844, %v863
          %v865 = vlaneseq
          %v866 = vshrl.u32 %v865, 7
          %v867 = vsub.s32 0, %v866
          %v868 = vrot.slane %v848, %v867
          %v869 = vsub.f32 %v514, %v856
          %v870 = vsub.f32 %v514, %v860
          %v871 = vsub.f32 %v514, %v864
          %v872 = vsub.f32 %v514, %v868
          %v873 = vsub.f32 %v519, %v856
          %v874 = vsub.f32 %v519, %v860
          %v875 = vsub.f32 %v519, %v864
          %v876 = vsub.f32 %v519, %v868
          %v877 = vsub.f32 %v524, %v856
          %v878 = vsub.f32 %v524, %v860
          %v879 = vsub.f32 %v524, %v864
          %v880 = vsub.f32 %v524, %v868
          %v881 = vsub.f32 %v529, %v856
          %v882 = vsub.f32 %v529, %v860
          %v883 = vsub.f32 %v529, %v864
          %v884 = vsub.f32 %v529, %v868
          %v885 = vsub.f32 %v534, %v856
          %v886 = vsub.f32 %v534, %v860
          %v887 = vsub.f32 %v534, %v864
          %v888 = vsub.f32 %v534, %v868
          %v889 = vsub.f32 %v539, %v856
          %v890 = vsub.f32 %v539, %v860
          %v891 = vsub.f32 %v539, %v864
          %v892 = vsub.f32 %v539, %v868
          %v893 = vsub.f32 %v544, %v856
          %v894 = vsub.f32 %v544, %v860
          %v895 = vsub.f32 %v544, %v864
          %v896 = vsub.f32 %v544, %v868
          %v897 = vsub.f32 %v549, %v856
          %v898 = vsub.f32 %v549, %v860
          %v899 = vsub.f32 %v549, %v864
          %v900 = vsub.f32 %v549, %v868
          %v901 = vsub.f32 %v554, %v856
          %v902 = vsub.f32 %v554, %v860
          %v903 = vsub.f32 %v554, %v864
          %v904 = vsub.f32 %v554, %v868
          %v905 = vsub.f32 %v559, %v856
          %v906 = vsub.f32 %v559, %v860
          %v907 = vsub.f32 %v559, %v864
          %v908 = vsub.f32 %v559, %v868
          %v909 = vsub.f32 %v564, %v856
          %v910 = vsub.f32 %v564, %v860
          %v911 = vsub.f32 %v564, %v864
          %v912 = vsub.f32 %v564, %v868
          %v913 = vsub.f32 %v569, %v856
          %v914 = vsub.f32 %v569, %v860
          %v915 = vsub.f32 %v569, %v864
          %v916 = vsub.f32 %v569, %v868
          %v917 = vsub.f32 %v574, %v856
          %v918 = vsub.f32 %v574, %v860
          %v919 = vsub.f32 %v574, %v864
          %v920 = vsub.f32 %v574, %v868
          %v921 = vsub.f32 %v579, %v856
          %v922 = vsub.f32 %v579, %v860
          %v923 = vsub.f32 %v579, %v864
          %v924 = vsub.f32 %v579, %v868
          %v925 = vsub.f32 %v584, %v856
          %v926 = vsub.f32 %v584, %v860
          %v927 = vsub.f32 %v584, %v864
          %v928 = vsub.f32 %v584, %v868
          %v929 = vsub.f32 %v589, %v856
          %v930 = vsub.f32 %v589, %v860
          %v931 = vsub.f32 %v589, %v864
          %v932 = vsub.f32 %v589, %v868
          %v933 = vsub.f32 %v594, %v856
          %v934 = vsub.f32 %v594, %v860
          %v935 = vsub.f32 %v594, %v864
          %v936 = vsub.f32 %v594, %v868
          %v937 = vsub.f32 %v599, %v856
          %v938 = vsub.f32 %v599, %v860
          %v939 = vsub.f32 %v599, %v864
          %v940 = vsub.f32 %v599, %v868
          %v941 = vsub.f32 %v604, %v856
          %v942 = vsub.f32 %v604, %v860
          %v943 = vsub.f32 %v604, %v864
          %v944 = vsub.f32 %v604, %v868
          %v945 = vsub.f32 %v609, %v856
          %v946 = vsub.f32 %v609, %v860
          %v947 = vsub.f32 %v609, %v864
          %v948 = vsub.f32 %v609, %v868
          %v949 = vsub.f32 %v614, %v856
          %v950 = vsub.f32 %v614, %v860
          %v951 = vsub.f32 %v614, %v864
          %v952 = vsub.f32 %v614, %v868
          %v953 = vsub.f32 %v619, %v856
          %v954 = vsub.f32 %v619, %v860
          %v955 = vsub.f32 %v619, %v864
          %v956 = vsub.f32 %v619, %v868
          %v957 = vsub.f32 %v624, %v856
          %v958 = vsub.f32 %v624, %v860
          %v959 = vsub.f32 %v624, %v864
          %v960 = vsub.f32 %v624, %v868
          %v961 = vsub.f32 %v629, %v856
          %v962 = vsub.f32 %v629, %v860
          %v963 = vsub.f32 %v629, %v864
          %v964 = vsub.f32 %v629, %v868
          %v965 = vsub.f32 %v634, %v856
          %v966 = vsub.f32 %v634, %v860
          %v967 = vsub.f32 %v634, %v864
          %v968 = vsub.f32 %v634, %v868
          %v969 = vsub.f32 %v639, %v856
          %v970 = vsub.f32 %v639, %v860
          %v971 = vsub.f32 %v639, %v864
          %v972 = vsub.f32 %v639, %v868
          %v973 = vsub.f32 %v644, %v856
          %v974 = vsub.f32 %v644, %v860
          %v975 = vsub.f32 %v644, %v864
          %v976 = vsub.f32 %v644, %v868
          %v977 = vsub.f32 %v649, %v856
          %v978 = vsub.f32 %v649, %v860
          %v979 = vsub.f32 %v649, %v864
          %v980 = vsub.f32 %v649, %v868
          %v981 = vsub.f32 %v654, %v856
          %v982 = vsub.f32 %v654, %v860
          %v983 = vsub.f32 %v654, %v864
          %v984 = vsub.f32 %v654, %v868
          %v985 = vsub.f32 %v659, %v856
          %v986 = vsub.f32 %v659, %v860
          %v987 = vsub.f32 %v659, %v864
          %v988 = vsub.f32 %v659, %v868
          %v989 = vsub.f32 %v664, %v856
          %v990 = vsub.f32 %v664, %v860
          %v991 = vsub.f32 %v664, %v864
          %v992 = vsub.f32 %v664, %v868
          %v993 = vsub.f32 %v669, %v856
          %v994 = vsub.f32 %v669, %v860
          %v995 = vsub.f32 %v669, %v864
          %v996 = vsub.f32 %v669, %v868
          %v997 = vsub.f32 %v674, %v856
          %v998 = vsub.f32 %v674, %v860
          %v999 = vsub.f32 %v674, %v864
          %v1000 = vsub.f32 %v674, %v868
          %v1001 = vsub.f32 %v679, %v856
          %v1002 = vsub.f32 %v679, %v860
          %v1003 = vsub.f32 %v679, %v864
          %v1004 = vsub.f32 %v679, %v868
          %v1005 = vsub.f32 %v684, %v856
          %v1006 = vsub.f32 %v684, %v860
          %v1007 = vsub.f32 %v684, %v864
          %v1008 = vsub.f32 %v684, %v868
          %v1009 = vsub.f32 %v689, %v856
          %v1010 = vsub.f32 %v689, %v860
          %v1011 = vsub.f32 %v689, %v864
          %v1012 = vsub.f32 %v689, %v868
          %v1013 = vsub.f32 %v694, %v856
          %v1014 = vsub.f32 %v694, %v860
          %v1015 = vsub.f32 %v694, %v864
          %v1016 = vsub.f32 %v694, %v868
          %v1017 = vsub.f32 %v699, %v856
          %v1018 = vsub.f32 %v699, %v860
          %v1019 = vsub.f32 %v699, %v864
          %v1020 = vsub.f32 %v699, %v868
          %v1021 = vsub.f32 %v704, %v856
          %v1022 = vsub.f32 %v704, %v860
          %v1023 = vsub.f32 %v704, %v864
          %v1024 = vsub.f32 %v704, %v868
          %v1025 = vsub.f32 %v709, %v856
          %v1026 = vsub.f32 %v709, %v860
          %v1027 = vsub.f32 %v709, %v864
          %v1028 = vsub.f32 %v709, %v868
          %v1029 = vsub.f32 %v714, %v856
          %v1030 = vsub.f32 %v714, %v860
          %v1031 = vsub.f32 %v714, %v864
          %v1032 = vsub.f32 %v714, %v868
          %v1033 = vsub.f32 %v719, %v856
          %v1034 = vsub.f32 %v719, %v860
          %v1035 = vsub.f32 %v719, %v864
          %v1036 = vsub.f32 %v719, %v868
          %v1037 = vsub.f32 %v724, %v856
          %v1038 = vsub.f32 %v724, %v860
          %v1039 = vsub.f32 %v724, %v864
          %v1040 = vsub.f32 %v724, %v868
          %v1041 = vsub.f32 %v729, %v856
          %v1042 = vsub.f32 %v729, %v860
          %v1043 = vsub.f32 %v729, %v864
          %v1044 = vsub.f32 %v729, %v868
          %v1045 = vsub.f32 %v734, %v856
          %v1046 = vsub.f32 %v734, %v860
          %v1047 = vsub.f32 %v734, %v864
          %v1048 = vsub.f32 %v734, %v868
          %v1049 = vsub.f32 %v739, %v856
          %v1050 = vsub.f32 %v739, %v860
          %v1051 = vsub.f32 %v739, %v864
          %v1052 = vsub.f32 %v739, %v868
          %v1053 = vsub.f32 %v744, %v856
          %v1054 = vsub.f32 %v744, %v860
          %v1055 = vsub.f32 %v744, %v864
          %v1056 = vsub.f32 %v744, %v868
          %v1057 = vsub.f32 %v749, %v856
          %v1058 = vsub.f32 %v749, %v860
          %v1059 = vsub.f32 %v749, %v864
          %v1060 = vsub.f32 %v749, %v868
          %v1061 = vsub.f32 %v754, %v856
          %v1062 = vsub.f32 %v754, %v860
          %v1063 = vsub.f32 %v754, %v864
          %v1064 = vsub.f32 %v754, %v868
          %v1065 = vsub.f32 %v759, %v856
          %v1066 = vsub.f32 %v759, %v860
          %v1067 = vsub.f32 %v759, %v864
          %v1068 = vsub.f32 %v759, %v868
          %v1069 = vsub.f32 %v764, %v856
          %v1070 = vsub.f32 %v764, %v860
          %v1071 = vsub.f32 %v764, %v864
          %v1072 = vsub.f32 %v764, %v868
          %v1073 = vsub.f32 %v769, %v856
          %v1074 = vsub.f32 %v769, %v860
          %v1075 = vsub.f32 %v769, %v864
          %v1076 = vsub.f32 %v769, %v868
          %v1077 = vsub.f32 %v774, %v856
          %v1078 = vsub.f32 %v774, %v860
          %v1079 = vsub.f32 %v774, %v864
          %v1080 = vsub.f32 %v774, %v868
          %v1081 = vsub.f32 %v779, %v856
          %v1082 = vsub.f32 %v779, %v860
          %v1083 = vsub.f32 %v779, %v864
          %v1084 = vsub.f32 %v779, %v868
          %v1085 = vsub.f32 %v784, %v856
          %v1086 = vsub.f32 %v784, %v860
          %v1087 = vsub.f32 %v784, %v864
          %v1088 = vsub.f32 %v784, %v868
          %v1089 = vsub.f32 %v789, %v856
          %v1090 = vsub.f32 %v789, %v860
          %v1091 = vsub.f32 %v789, %v864
          %v1092 = vsub.f32 %v789, %v868
          %v1093 = vsub.f32 %v794, %v856
          %v1094 = vsub.f32 %v794, %v860
          %v1095 = vsub.f32 %v794, %v864
          %v1096 = vsub.f32 %v794, %v868
          %v1097 = vsub.f32 %v799, %v856
          %v1098 = vsub.f32 %v799, %v860
          %v1099 = vsub.f32 %v799, %v864
          %v1100 = vsub.f32 %v799, %v868
          %v1101 = vsub.f32 %v804, %v856
          %v1102 = vsub.f32 %v804, %v860
          %v1103 = vsub.f32 %v804, %v864
          %v1104 = vsub.f32 %v804, %v868
          %v1105 = vsub.f32 %v809, %v856
          %v1106 = vsub.f32 %v809, %v860
          %v1107 = vsub.f32 %v809, %v864
          %v1108 = vsub.f32 %v809, %v868
          %v1109 = vsub.f32 %v814, %v856
          %v1110 = vsub.f32 %v814, %v860
          %v1111 = vsub.f32 %v814, %v864
          %v1112 = vsub.f32 %v814, %v868
          %v1113 = vsub.f32 %v819, %v856
          %v1114 = vsub.f32 %v819, %v860
          %v1115 = vsub.f32 %v819, %v864
          %v1116 = vsub.f32 %v819, %v868
          %v1117 = vsub.f32 %v824, %v856
          %v1118 = vsub.f32 %v824, %v860
          %v1119 = vsub.f32 %v824, %v864
          %v1120 = vsub.f32 %v824, %v868
          %v1121 = vsub.f32 %v829, %v856
          %v1122 = vsub.f32 %v829, %v860
          %v1123 = vsub.f32 %v829, %v864
          %v1124 = vsub.f32 %v829, %v868
          %v1125 = vand.u32 2147483647, %v869
          %v1126 = vand.u32 2147483647, %v870
          %v1127 = vand.u32 2147483647, %v871
          %v1128 = vand.u32 2147483647, %v872
          %v1129 = vand.u32 2147483647, %v873
          %v1130 = vand.u32 2147483647, %v874
          %v1131 = vand.u32 2147483647, %v875
          %v1132 = vand.u32 2147483647, %v876
          %v1133 = vand.u32 2147483647, %v877
          %v1134 = vand.u32 2147483647, %v878
          %v1135 = vand.u32 2147483647, %v879
          %v1136 = vand.u32 2147483647, %v880
          %v1137 = vand.u32 2147483647, %v881
          %v1138 = vand.u32 2147483647, %v882
          %v1139 = vand.u32 2147483647, %v883
          %v1140 = vand.u32 2147483647, %v884
          %v1141 = vand.u32 2147483647, %v885
          %v1142 = vand.u32 2147483647, %v886
          %v1143 = vand.u32 2147483647, %v887
          %v1144 = vand.u32 2147483647, %v888
          %v1145 = vand.u32 2147483647, %v889
          %v1146 = vand.u32 2147483647, %v890
          %v1147 = vand.u32 2147483647, %v891
          %v1148 = vand.u32 2147483647, %v892
          %v1149 = vand.u32 2147483647, %v893
          %v1150 = vand.u32 2147483647, %v894
          %v1151 = vand.u32 2147483647, %v895
          %v1152 = vand.u32 2147483647, %v896
          %v1153 = vand.u32 2147483647, %v897
          %v1154 = vand.u32 2147483647, %v898
          %v1155 = vand.u32 2147483647, %v899
          %v1156 = vand.u32 2147483647, %v900
          %v1157 = vand.u32 2147483647, %v901
          %v1158 = vand.u32 2147483647, %v902
          %v1159 = vand.u32 2147483647, %v903
          %v1160 = vand.u32 2147483647, %v904
          %v1161 = vand.u32 2147483647, %v905
          %v1162 = vand.u32 2147483647, %v906
          %v1163 = vand.u32 2147483647, %v907
          %v1164 = vand.u32 2147483647, %v908
          %v1165 = vand.u32 2147483647, %v909
          %v1166 = vand.u32 2147483647, %v910
          %v1167 = vand.u32 2147483647, %v911
          %v1168 = vand.u32 2147483647, %v912
          %v1169 = vand.u32 2147483647, %v913
          %v1170 = vand.u32 2147483647, %v914
          %v1171 = vand.u32 2147483647, %v915
          %v1172 = vand.u32 2147483647, %v916
          %v1173 = vand.u32 2147483647, %v917
          %v1174 = vand.u32 2147483647, %v918
          %v1175 = vand.u32 2147483647, %v919
          %v1176 = vand.u32 2147483647, %v920
          %v1177 = vand.u32 2147483647, %v921
          %v1178 = vand.u32 2147483647, %v922
          %v1179 = vand.u32 2147483647, %v923
          %v1180 = vand.u32 2147483647, %v924
          %v1181 = vand.u32 2147483647, %v925
          %v1182 = vand.u32 2147483647, %v926
          %v1183 = vand.u32 2147483647, %v927
          %v1184 = vand.u32 2147483647, %v928
          %v1185 = vand.u32 2147483647, %v929
          %v1186 = vand.u32 2147483647, %v930
          %v1187 = vand.u32 2147483647, %v931
          %v1188 = vand.u32 2147483647, %v932
          %v1189 = vand.u32 2147483647, %v933
          %v1190 = vand.u32 2147483647, %v934
          %v1191 = vand.u32 2147483647, %v935
          %v1192 = vand.u32 2147483647, %v936
          %v1193 = vand.u32 2147483647, %v937
          %v1194 = vand.u32 2147483647, %v938
          %v1195 = vand.u32 2147483647, %v939
          %v1196 = vand.u32 2147483647, %v940
          %v1197 = vand.u32 2147483647, %v941
          %v1198 = vand.u32 2147483647, %v942
          %v1199 = vand.u32 2147483647, %v943
          %v1200 = vand.u32 2147483647, %v944
          %v1201 = vand.u32 2147483647, %v945
          %v1202 = vand.u32 2147483647, %v946
          %v1203 = vand.u32 2147483647, %v947
          %v1204 = vand.u32 2147483647, %v948
          %v1205 = vand.u32 2147483647, %v949
          %v1206 = vand.u32 2147483647, %v950
          %v1207 = vand.u32 2147483647, %v951
          %v1208 = vand.u32 2147483647, %v952
          %v1209 = vand.u32 2147483647, %v953
          %v1210 = vand.u32 2147483647, %v954
          %v1211 = vand.u32 2147483647, %v955
          %v1212 = vand.u32 2147483647, %v956
          %v1213 = vand.u32 2147483647, %v957
          %v1214 = vand.u32 2147483647, %v958
          %v1215 = vand.u32 2147483647, %v959
          %v1216 = vand.u32 2147483647, %v960
          %v1217 = vand.u32 2147483647, %v961
          %v1218 = vand.u32 2147483647, %v962
          %v1219 = vand.u32 2147483647, %v963
          %v1220 = vand.u32 2147483647, %v964
          %v1221 = vand.u32 2147483647, %v965
          %v1222 = vand.u32 2147483647, %v966
          %v1223 = vand.u32 2147483647, %v967
          %v1224 = vand.u32 2147483647, %v968
          %v1225 = vand.u32 2147483647, %v969
          %v1226 = vand.u32 2147483647, %v970
          %v1227 = vand.u32 2147483647, %v971
          %v1228 = vand.u32 2147483647, %v972
          %v1229 = vand.u32 2147483647, %v973
          %v1230 = vand.u32 2147483647, %v974
          %v1231 = vand.u32 2147483647, %v975
          %v1232 = vand.u32 2147483647, %v976
          %v1233 = vand.u32 2147483647, %v977
          %v1234 = vand.u32 2147483647, %v978
          %v1235 = vand.u32 2147483647, %v979
          %v1236 = vand.u32 2147483647, %v980
          %v1237 = vand.u32 2147483647, %v981
          %v1238 = vand.u32 2147483647, %v982
          %v1239 = vand.u32 2147483647, %v983
          %v1240 = vand.u32 2147483647, %v984
          %v1241 = vand.u32 2147483647, %v985
          %v1242 = vand.u32 2147483647, %v986
          %v1243 = vand.u32 2147483647, %v987
          %v1244 = vand.u32 2147483647, %v988
          %v1245 = vand.u32 2147483647, %v989
          %v1246 = vand.u32 2147483647, %v990
          %v1247 = vand.u32 2147483647, %v991
          %v1248 = vand.u32 2147483647, %v992
          %v1249 = vand.u32 2147483647, %v993
          %v1250 = vand.u32 2147483647, %v994
          %v1251 = vand.u32 2147483647, %v995
          %v1252 = vand.u32 2147483647, %v996
          %v1253 = vand.u32 2147483647, %v997
          %v1254 = vand.u32 2147483647, %v998
          %v1255 = vand.u32 2147483647, %v999
          %v1256 = vand.u32 2147483647, %v1000
          %v1257 = vand.u32 2147483647, %v1001
          %v1258 = vand.u32 2147483647, %v1002
          %v1259 = vand.u32 2147483647, %v1003
          %v1260 = vand.u32 2147483647, %v1004
          %v1261 = vand.u32 2147483647, %v1005
          %v1262 = vand.u32 2147483647, %v1006
          %v1263 = vand.u32 2147483647, %v1007
          %v1264 = vand.u32 2147483647, %v1008
          %v1265 = vand.u32 2147483647, %v1009
          %v1266 = vand.u32 2147483647, %v1010
          %v1267 = vand.u32 2147483647, %v1011
          %v1268 = vand.u32 2147483647, %v1012
          %v1269 = vand.u32 2147483647, %v1013
          %v1270 = vand.u32 2147483647, %v1014
          %v1271 = vand.u32 2147483647, %v1015
          %v1272 = vand.u32 2147483647, %v1016
          %v1273 = vand.u32 2147483647, %v1017
          %v1274 = vand.u32 2147483647, %v1018
          %v1275 = vand.u32 2147483647, %v1019
          %v1276 = vand.u32 2147483647, %v1020
          %v1277 = vand.u32 2147483647, %v1021
          %v1278 = vand.u32 2147483647, %v1022
          %v1279 = vand.u32 2147483647, %v1023
          %v1280 = vand.u32 2147483647, %v1024
          %v1281 = vand.u32 2147483647, %v1025
          %v1282 = vand.u32 2147483647, %v1026
          %v1283 = vand.u32 2147483647, %v1027
          %v1284 = vand.u32 2147483647, %v1028
          %v1285 = vand.u32 2147483647, %v1029
          %v1286 = vand.u32 2147483647, %v1030
          %v1287 = vand.u32 2147483647, %v1031
          %v1288 = vand.u32 2147483647, %v1032
          %v1289 = vand.u32 2147483647, %v1033
          %v1290 = vand.u32 2147483647, %v1034
          %v1291 = vand.u32 2147483647, %v1035
          %v1292 = vand.u32 2147483647, %v1036
          %v1293 = vand.u32 2147483647, %v1037
          %v1294 = vand.u32 2147483647, %v1038
          %v1295 = vand.u32 2147483647, %v1039
          %v1296 = vand.u32 2147483647, %v1040
          %v1297 = vand.u32 2147483647, %v1041
          %v1298 = vand.u32 2147483647, %v1042
          %v1299 = vand.u32 2147483647, %v1043
          %v1300 = vand.u32 2147483647, %v1044
          %v1301 = vand.u32 2147483647, %v1045
          %v1302 = vand.u32 2147483647, %v1046
          %v1303 = vand.u32 2147483647, %v1047
          %v1304 = vand.u32 2147483647, %v1048
          %v1305 = vand.u32 2147483647, %v1049
          %v1306 = vand.u32 2147483647, %v1050
          %v1307 = vand.u32 2147483647, %v1051
          %v1308 = vand.u32 2147483647, %v1052
          %v1309 = vand.u32 2147483647, %v1053
          %v1310 = vand.u32 2147483647, %v1054
          %v1311 = vand.u32 2147483647, %v1055
          %v1312 = vand.u32 2147483647, %v1056
          %v1313 = vand.u32 2147483647, %v1057
          %v1314 = vand.u32 2147483647, %v1058
          %v1315 = vand.u32 2147483647, %v1059
          %v1316 = vand.u32 2147483647, %v1060
          %v1317 = vand.u32 2147483647, %v1061
          %v1318 = vand.u32 2147483647, %v1062
          %v1319 = vand.u32 2147483647, %v1063
          %v1320 = vand.u32 2147483647, %v1064
          %v1321 = vand.u32 2147483647, %v1065
          %v1322 = vand.u32 2147483647, %v1066
          %v1323 = vand.u32 2147483647, %v1067
          %v1324 = vand.u32 2147483647, %v1068
          %v1325 = vand.u32 2147483647, %v1069
          %v1326 = vand.u32 2147483647, %v1070
          %v1327 = vand.u32 2147483647, %v1071
          %v1328 = vand.u32 2147483647, %v1072
          %v1329 = vand.u32 2147483647, %v1073
          %v1330 = vand.u32 2147483647, %v1074
          %v1331 = vand.u32 2147483647, %v1075
          %v1332 = vand.u32 2147483647, %v1076
          %v1333 = vand.u32 2147483647, %v1077
          %v1334 = vand.u32 2147483647, %v1078
          %v1335 = vand.u32 2147483647, %v1079
          %v1336 = vand.u32 2147483647, %v1080
          %v1337 = vand.u32 2147483647, %v1081
          %v1338 = vand.u32 2147483647, %v1082
          %v1339 = vand.u32 2147483647, %v1083
          %v1340 = vand.u32 2147483647, %v1084
          %v1341 = vand.u32 2147483647, %v1085
          %v1342 = vand.u32 2147483647, %v1086
          %v1343 = vand.u32 2147483647, %v1087
          %v1344 = vand.u32 2147483647, %v1088
          %v1345 = vand.u32 2147483647, %v1089
          %v1346 = vand.u32 2147483647, %v1090
          %v1347 = vand.u32 2147483647, %v1091
          %v1348 = vand.u32 2147483647, %v1092
          %v1349 = vand.u32 2147483647, %v1093
          %v1350 = vand.u32 2147483647, %v1094
          %v1351 = vand.u32 2147483647, %v1095
          %v1352 = vand.u32 2147483647, %v1096
          %v1353 = vand.u32 2147483647, %v1097
          %v1354 = vand.u32 2147483647, %v1098
          %v1355 = vand.u32 2147483647, %v1099
          %v1356 = vand.u32 2147483647, %v1100
          %v1357 = vand.u32 2147483647, %v1101
          %v1358 = vand.u32 2147483647, %v1102
          %v1359 = vand.u32 2147483647, %v1103
          %v1360 = vand.u32 2147483647, %v1104
          %v1361 = vand.u32 2147483647, %v1105
          %v1362 = vand.u32 2147483647, %v1106
          %v1363 = vand.u32 2147483647, %v1107
          %v1364 = vand.u32 2147483647, %v1108
          %v1365 = vand.u32 2147483647, %v1109
          %v1366 = vand.u32 2147483647, %v1110
          %v1367 = vand.u32 2147483647, %v1111
          %v1368 = vand.u32 2147483647, %v1112
          %v1369 = vand.u32 2147483647, %v1113
          %v1370 = vand.u32 2147483647, %v1114
          %v1371 = vand.u32 2147483647, %v1115
          %v1372 = vand.u32 2147483647, %v1116
          %v1373 = vand.u32 2147483647, %v1117
          %v1374 = vand.u32 2147483647, %v1118
          %v1375 = vand.u32 2147483647, %v1119
          %v1376 = vand.u32 2147483647, %v1120
          %v1377 = vand.u32 2147483647, %v1121
          %v1378 = vand.u32 2147483647, %v1122
          %v1379 = vand.u32 2147483647, %v1123
          %v1380 = vand.u32 2147483647, %v1124
          %v1381 = vsub.f32 1.0, %v1125
          %v1382 = vsub.f32 1.0, %v1126
          %v1383 = vsub.f32 1.0, %v1127
          %v1384 = vsub.f32 1.0, %v1128
          %v1385 = vsub.f32 1.0, %v1129
          %v1386 = vsub.f32 1.0, %v1130
          %v1387 = vsub.f32 1.0, %v1131
          %v1388 = vsub.f32 1.0, %v1132
          %v1389 = vsub.f32 1.0, %v1133
          %v1390 = vsub.f32 1.0, %v1134
          %v1391 = vsub.f32 1.0, %v1135
          %v1392 = vsub.f32 1.0, %v1136
          %v1393 = vsub.f32 1.0, %v1137
          %v1394 = vsub.f32 1.0, %v1138
          %v1395 = vsub.f32 1.0, %v1139
          %v1396 = vsub.f32 1.0, %v1140
          %v1397 = vsub.f32 1.0, %v1141
          %v1398 = vsub.f32 1.0, %v1142
          %v1399 = vsub.f32 1.0, %v1143
          %v1400 = vsub.f32 1.0, %v1144
          %v1401 = vsub.f32 1.0, %v1145
          %v1402 = vsub.f32 1.0, %v1146
          %v1403 = vsub.f32 1.0, %v1147
          %v1404 = vsub.f32 1.0, %v1148
          %v1405 = vsub.f32 1.0, %v1149
          %v1406 = vsub.f32 1.0, %v1150
          %v1407 = vsub.f32 1.0, %v1151
          %v1408 = vsub.f32 1.0, %v1152
          %v1409 = vsub.f32 1.0, %v1153
          %v1410 = vsub.f32 1.0, %v1154
          %v1411 = vsub.f32 1.0, %v1155
          %v1412 = vsub.f32 1.0, %v1156
          %v1413 = vsub.f32 1.0, %v1157
          %v1414 = vsub.f32 1.0, %v1158
          %v1415 = vsub.f32 1.0, %v1159
          %v1416 = vsub.f32 1.0, %v1160
          %v1417 = vsub.f32 1.0, %v1161
          %v1418 = vsub.f32 1.0, %v1162
          %v1419 = vsub.f32 1.0, %v1163
          %v1420 = vsub.f32 1.0, %v1164
          %v1421 = vsub.f32 1.0, %v1165
          %v1422 = vsub.f32 1.0, %v1166
          %v1423 = vsub.f32 1.0, %v1167
          %v1424 = vsub.f32 1.0, %v1168
          %v1425 = vsub.f32 1.0, %v1169
          %v1426 = vsub.f32 1.0, %v1170
          %v1427 = vsub.f32 1.0, %v1171
          %v1428 = vsub.f32 1.0, %v1172
          %v1429 = vsub.f32 1.0, %v1173
          %v1430 = vsub.f32 1.0, %v1174
          %v1431 = vsub.f32 1.0, %v1175
          %v1432 = vsub.f32 1.0, %v1176
          %v1433 = vsub.f32 1.0, %v1177
          %v1434 = vsub.f32 1.0, %v1178
          %v1435 = vsub.f32 1.0, %v1179
          %v1436 = vsub.f32 1.0, %v1180
          %v1437 = vsub.f32 1.0, %v1181
          %v1438 = vsub.f32 1.0, %v1182
          %v1439 = vsub.f32 1.0, %v1183
          %v1440 = vsub.f32 1.0, %v1184
          %v1441 = vsub.f32 1.0, %v1185
          %v1442 = vsub.f32 1.0, %v1186
          %v1443 = vsub.f32 1.0, %v1187
          %v1444 = vsub.f32 1.0, %v1188
          %v1445 = vsub.f32 1.0, %v1189
          %v1446 = vsub.f32 1.0, %v1190
          %v1447 = vsub.f32 1.0, %v1191
          %v1448 = vsub.f32 1.0, %v1192
          %v1449 = vsub.f32 1.0, %v1193
          %v1450 = vsub.f32 1.0, %v1194
          %v1451 = vsub.f32 1.0, %v1195
          %v1452 = vsub.f32 1.0, %v1196
          %v1453 = vsub.f32 1.0, %v1197
          %v1454 = vsub.f32 1.0, %v1198
          %v1455 = vsub.f32 1.0, %v1199
          %v1456 = vsub.f32 1.0, %v1200
          %v1457 = vsub.f32 1.0, %v1201
          %v1458 = vsub.f32 1.0, %v1202
          %v1459 = vsub.f32 1.0, %v1203
          %v1460 = vsub.f32 1.0, %v1204
          %v1461 = vsub.f32 1.0, %v1205
          %v1462 = vsub.f32 1.0, %v1206
          %v1463 = vsub.f32 1.0, %v1207
          %v1464 = vsub.f32 1.0, %v1208
          %v1465 = vsub.f32 1.0, %v1209
          %v1466 = vsub.f32 1.0, %v1210
          %v1467 = vsub.f32 1.0, %v1211
          %v1468 = vsub.f32 1.0, %v1212
          %v1469 = vsub.f32 1.0, %v1213
          %v1470 = vsub.f32 1.0, %v1214
          %v1471 = vsub.f32 1.0, %v1215
          %v1472 = vsub.f32 1.0, %v1216
          %v1473 = vsub.f32 1.0, %v1217
          %v1474 = vsub.f32 1.0, %v1218
          %v1475 = vsub.f32 1.0, %v1219
          %v1476 = vsub.f32 1.0, %v1220
          %v1477 = vsub.f32 1.0, %v1221
          %v1478 = vsub.f32 1.0, %v1222
          %v1479 = vsub.f32 1.0, %v1223
          %v1480 = vsub.f32 1.0, %v1224
          %v1481 = vsub.f32 1.0, %v1225
          %v1482 = vsub.f32 1.0, %v1226
          %v1483 = vsub.f32 1.0, %v1227
          %v1484 = vsub.f32 1.0, %v1228
          %v1485 = vsub.f32 1.0, %v1229
          %v1486 = vsub.f32 1.0, %v1230
          %v1487 = vsub.f32 1.0, %v1231
          %v1488 = vsub.f32 1.0, %v1232
          %v1489 = vsub.f32 1.0, %v1233
          %v1490 = vsub.f32 1.0, %v1234
          %v1491 = vsub.f32 1.0, %v1235
          %v1492 = vsub.f32 1.0, %v1236
          %v1493 = vsub.f32 1.0, %v1237
          %v1494 = vsub.f32 1.0, %v1238
          %v1495 = vsub.f32 1.0, %v1239
          %v1496 = vsub.f32 1.0, %v1240
          %v1497 = vsub.f32 1.0, %v1241
          %v1498 = vsub.f32 1.0, %v1242
          %v1499 = vsub.f32 1.0, %v1243
          %v1500 = vsub.f32 1.0, %v1244
          %v1501 = vsub.f32 1.0, %v1245
          %v1502 = vsub.f32 1.0, %v1246
          %v1503 = vsub.f32 1.0, %v1247
          %v1504 = vsub.f32 1.0, %v1248
          %v1505 = vsub.f32 1.0, %v1249
          %v1506 = vsub.f32 1.0, %v1250
          %v1507 = vsub.f32 1.0, %v1251
          %v1508 = vsub.f32 1.0, %v1252
          %v1509 = vsub.f32 1.0, %v1253
          %v1510 = vsub.f32 1.0, %v1254
          %v1511 = vsub.f32 1.0, %v1255
          %v1512 = vsub.f32 1.0, %v1256
          %v1513 = vsub.f32 1.0, %v1257
          %v1514 = vsub.f32 1.0, %v1258
          %v1515 = vsub.f32 1.0, %v1259
          %v1516 = vsub.f32 1.0, %v1260
          %v1517 = vsub.f32 1.0, %v1261
          %v1518 = vsub.f32 1.0, %v1262
          %v1519 = vsub.f32 1.0, %v1263
          %v1520 = vsub.f32 1.0, %v1264
          %v1521 = vsub.f32 1.0, %v1265
          %v1522 = vsub.f32 1.0, %v1266
          %v1523 = vsub.f32 1.0, %v1267
          %v1524 = vsub.f32 1.0, %v1268
          %v1525 = vsub.f32 1.0, %v1269
          %v1526 = vsub.f32 1.0, %v1270
          %v1527 = vsub.f32 1.0, %v1271
          %v1528 = vsub.f32 1.0, %v1272
          %v1529 = vsub.f32 1.0, %v1273
          %v1530 = vsub.f32 1.0, %v1274
          %v1531 = vsub.f32 1.0, %v1275
          %v1532 = vsub.f32 1.0, %v1276
          %v1533 = vsub.f32 1.0, %v1277
          %v1534 = vsub.f32 1.0, %v1278
          %v1535 = vsub.f32 1.0, %v1279
          %v1536 = vsub.f32 1.0, %v1280
          %v1537 = vsub.f32 1.0, %v1281
          %v1538 = vsub.f32 1.0, %v1282
          %v1539 = vsub.f32 1.0, %v1283
          %v1540 = vsub.f32 1.0, %v1284
          %v1541 = vsub.f32 1.0, %v1285
          %v1542 = vsub.f32 1.0, %v1286
          %v1543 = vsub.f32 1.0, %v1287
          %v1544 = vsub.f32 1.0, %v1288
          %v1545 = vsub.f32 1.0, %v1289
          %v1546 = vsub.f32 1.0, %v1290
          %v1547 = vsub.f32 1.0, %v1291
          %v1548 = vsub.f32 1.0, %v1292
          %v1549 = vsub.f32 1.0, %v1293
          %v1550 = vsub.f32 1.0, %v1294
          %v1551 = vsub.f32 1.0, %v1295
          %v1552 = vsub.f32 1.0, %v1296
          %v1553 = vsub.f32 1.0, %v1297
          %v1554 = vsub.f32 1.0, %v1298
          %v1555 = vsub.f32 1.0, %v1299
          %v1556 = vsub.f32 1.0, %v1300
          %v1557 = vsub.f32 1.0, %v1301
          %v1558 = vsub.f32 1.0, %v1302
          %v1559 = vsub.f32 1.0, %v1303
          %v1560 = vsub.f32 1.0, %v1304
          %v1561 = vsub.f32 1.0, %v1305
          %v1562 = vsub.f32 1.0, %v1306
          %v1563 = vsub.f32 1.0, %v1307
          %v1564 = vsub.f32 1.0, %v1308
          %v1565 = vsub.f32 1.0, %v1309
          %v1566 = vsub.f32 1.0, %v1310
          %v1567 = vsub.f32 1.0, %v1311
          %v1568 = vsub.f32 1.0, %v1312
          %v1569 = vsub.f32 1.0, %v1313
          %v1570 = vsub.f32 1.0, %v1314
          %v1571 = vsub.f32 1.0, %v1315
          %v1572 = vsub.f32 1.0, %v1316
          %v1573 = vsub.f32 1.0, %v1317
          %v1574 = vsub.f32 1.0, %v1318
          %v1575 = vsub.f32 1.0, %v1319
          %v1576 = vsub.f32 1.0, %v1320
          %v1577 = vsub.f32 1.0, %v1321
          %v1578 = vsub.f32 1.0, %v1322
          %v1579 = vsub.f32 1.0, %v1323
          %v1580 = vsub.f32 1.0, %v1324
          %v1581 = vsub.f32 1.0, %v1325
          %v1582 = vsub.f32 1.0, %v1326
          %v1583 = vsub.f32 1.0, %v1327
          %v1584 = vsub.f32 1.0, %v1328
          %v1585 = vsub.f32 1.0, %v1329
          %v1586 = vsub.f32 1.0, %v1330
          %v1587 = vsub.f32 1.0, %v1331
          %v1588 = vsub.f32 1.0, %v1332
          %v1589 = vsub.f32 1.0, %v1333
          %v1590 = vsub.f32 1.0, %v1334
          %v1591 = vsub.f32 1.0, %v1335
          %v1592 = vsub.f32 1.0, %v1336
          %v1593 = vsub.f32 1.0, %v1337
          %v1594 = vsub.f32 1.0, %v1338
          %v1595 = vsub.f32 1.0, %v1339
          %v1596 = vsub.f32 1.0, %v1340
          %v1597 = vsub.f32 1.0, %v1341
          %v1598 = vsub.f32 1.0, %v1342
          %v1599 = vsub.f32 1.0, %v1343
          %v1600 = vsub.f32 1.0, %v1344
          %v1601 = vsub.f32 1.0, %v1345
          %v1602 = vsub.f32 1.0, %v1346
          %v1603 = vsub.f32 1.0, %v1347
          %v1604 = vsub.f32 1.0, %v1348
          %v1605 = vsub.f32 1.0, %v1349
          %v1606 = vsub.f32 1.0, %v1350
          %v1607 = vsub.f32 1.0, %v1351
          %v1608 = vsub.f32 1.0, %v1352
          %v1609 = vsub.f32 1.0, %v1353
          %v1610 = vsub.f32 1.0, %v1354
          %v1611 = vsub.f32 1.0, %v1355
          %v1612 = vsub.f32 1.0, %v1356
          %v1613 = vsub.f32 1.0, %v1357
          %v1614 = vsub.f32 1.0, %v1358
          %v1615 = vsub.f32 1.0, %v1359
          %v1616 = vsub.f32 1.0, %v1360
          %v1617 = vsub.f32 1.0, %v1361
          %v1618 = vsub.f32 1.0, %v1362
          %v1619 = vsub.f32 1.0, %v1363
          %v1620 = vsub.f32 1.0, %v1364
          %v1621 = vsub.f32 1.0, %v1365
          %v1622 = vsub.f32 1.0, %v1366
          %v1623 = vsub.f32 1.0, %v1367
          %v1624 = vsub.f32 1.0, %v1368
          %v1625 = vsub.f32 1.0, %v1369
          %v1626 = vsub.f32 1.0, %v1370
          %v1627 = vsub.f32 1.0, %v1371
          %v1628 = vsub.f32 1.0, %v1372
          %v1629 = vsub.f32 1.0, %v1373
          %v1630 = vsub.f32 1.0, %v1374
          %v1631 = vsub.f32 1.0, %v1375
          %v1632 = vsub.f32 1.0, %v1376
          %v1633 = vsub.f32 1.0, %v1377
          %v1634 = vsub.f32 1.0, %v1378
          %v1635 = vsub.f32 1.0, %v1379
          %v1636 = vsub.f32 1.0, %v1380
          %v1637 = vmax.f32 %v1381, 0.0
          %v1638 = vmax.f32 %v1382, 0.0
          %v1639 = vmax.f32 %v1383, 0.0
          %v1640 = vmax.f32 %v1384, 0.0
          %v1641 = vmax.f32 %v1385, 0.0
          %v1642 = vmax.f32 %v1386, 0.0
          %v1643 = vmax.f32 %v1387, 0.0
          %v1644 = vmax.f32 %v1388, 0.0
          %v1645 = vmax.f32 %v1389, 0.0
          %v1646 = vmax.f32 %v1390, 0.0
          %v1647 = vmax.f32 %v1391, 0.0
          %v1648 = vmax.f32 %v1392, 0.0
          %v1649 = vmax.f32 %v1393, 0.0
          %v1650 = vmax.f32 %v1394, 0.0
          %v1651 = vmax.f32 %v1395, 0.0
          %v1652 = vmax.f32 %v1396, 0.0
          %v1653 = vmax.f32 %v1397, 0.0
          %v1654 = vmax.f32 %v1398, 0.0
          %v1655 = vmax.f32 %v1399, 0.0
          %v1656 = vmax.f32 %v1400, 0.0
          %v1657 = vmax.f32 %v1401, 0.0
          %v1658 = vmax.f32 %v1402, 0.0
          %v1659 = vmax.f32 %v1403, 0.0
          %v1660 = vmax.f32 %v1404, 0.0
          %v1661 = vmax.f32 %v1405, 0.0
          %v1662 = vmax.f32 %v1406, 0.0
          %v1663 = vmax.f32 %v1407, 0.0
          %v1664 = vmax.f32 %v1408, 0.0
          %v1665 = vmax.f32 %v1409, 0.0
          %v1666 = vmax.f32 %v1410, 0.0
          %v1667 = vmax.f32 %v1411, 0.0
          %v1668 = vmax.f32 %v1412, 0.0
          %v1669 = vmax.f32 %v1413, 0.0
          %v1670 = vmax.f32 %v1414, 0.0
          %v1671 = vmax.f32 %v1415, 0.0
          %v1672 = vmax.f32 %v1416, 0.0
          %v1673 = vmax.f32 %v1417, 0.0
          %v1674 = vmax.f32 %v1418, 0.0
          %v1675 = vmax.f32 %v1419, 0.0
          %v1676 = vmax.f32 %v1420, 0.0
          %v1677 = vmax.f32 %v1421, 0.0
          %v1678 = vmax.f32 %v1422, 0.0
          %v1679 = vmax.f32 %v1423, 0.0
          %v1680 = vmax.f32 %v1424, 0.0
          %v1681 = vmax.f32 %v1425, 0.0
          %v1682 = vmax.f32 %v1426, 0.0
          %v1683 = vmax.f32 %v1427, 0.0
          %v1684 = vmax.f32 %v1428, 0.0
          %v1685 = vmax.f32 %v1429, 0.0
          %v1686 = vmax.f32 %v1430, 0.0
          %v1687 = vmax.f32 %v1431, 0.0
          %v1688 = vmax.f32 %v1432, 0.0
          %v1689 = vmax.f32 %v1433, 0.0
          %v1690 = vmax.f32 %v1434, 0.0
          %v1691 = vmax.f32 %v1435, 0.0
          %v1692 = vmax.f32 %v1436, 0.0
          %v1693 = vmax.f32 %v1437, 0.0
          %v1694 = vmax.f32 %v1438, 0.0
          %v1695 = vmax.f32 %v1439, 0.0
          %v1696 = vmax.f32 %v1440, 0.0
          %v1697 = vmax.f32 %v1441, 0.0
          %v1698 = vmax.f32 %v1442, 0.0
          %v1699 = vmax.f32 %v1443, 0.0
          %v1700 = vmax.f32 %v1444, 0.0
          %v1701 = vmax.f32 %v1445, 0.0
          %v1702 = vmax.f32 %v1446, 0.0
          %v1703 = vmax.f32 %v1447, 0.0
          %v1704 = vmax.f32 %v1448, 0.0
          %v1705 = vmax.f32 %v1449, 0.0
          %v1706 = vmax.f32 %v1450, 0.0
          %v1707 = vmax.f32 %v1451, 0.0
          %v1708 = vmax.f32 %v1452, 0.0
          %v1709 = vmax.f32 %v1453, 0.0
          %v1710 = vmax.f32 %v1454, 0.0
          %v1711 = vmax.f32 %v1455, 0.0
          %v1712 = vmax.f32 %v1456, 0.0
          %v1713 = vmax.f32 %v1457, 0.0
          %v1714 = vmax.f32 %v1458, 0.0
          %v1715 = vmax.f32 %v1459, 0.0
          %v1716 = vmax.f32 %v1460, 0.0
          %v1717 = vmax.f32 %v1461, 0.0
          %v1718 = vmax.f32 %v1462, 0.0
          %v1719 = vmax.f32 %v1463, 0.0
          %v1720 = vmax.f32 %v1464, 0.0
          %v1721 = vmax.f32 %v1465, 0.0
          %v1722 = vmax.f32 %v1466, 0.0
          %v1723 = vmax.f32 %v1467, 0.0
          %v1724 = vmax.f32 %v1468, 0.0
          %v1725 = vmax.f32 %v1469, 0.0
          %v1726 = vmax.f32 %v1470, 0.0
          %v1727 = vmax.f32 %v1471, 0.0
          %v1728 = vmax.f32 %v1472, 0.0
          %v1729 = vmax.f32 %v1473, 0.0
          %v1730 = vmax.f32 %v1474, 0.0
          %v1731 = vmax.f32 %v1475, 0.0
          %v1732 = vmax.f32 %v1476, 0.0
          %v1733 = vmax.f32 %v1477, 0.0
          %v1734 = vmax.f32 %v1478, 0.0
          %v1735 = vmax.f32 %v1479, 0.0
          %v1736 = vmax.f32 %v1480, 0.0
          %v1737 = vmax.f32 %v1481, 0.0
          %v1738 = vmax.f32 %v1482, 0.0
          %v1739 = vmax.f32 %v1483, 0.0
          %v1740 = vmax.f32 %v1484, 0.0
          %v1741 = vmax.f32 %v1485, 0.0
          %v1742 = vmax.f32 %v1486, 0.0
          %v1743 = vmax.f32 %v1487, 0.0
          %v1744 = vmax.f32 %v1488, 0.0
          %v1745 = vmax.f32 %v1489, 0.0
          %v1746 = vmax.f32 %v1490, 0.0
          %v1747 = vmax.f32 %v1491, 0.0
          %v1748 = vmax.f32 %v1492, 0.0
          %v1749 = vmax.f32 %v1493, 0.0
          %v1750 = vmax.f32 %v1494, 0.0
          %v1751 = vmax.f32 %v1495, 0.0
          %v1752 = vmax.f32 %v1496, 0.0
          %v1753 = vmax.f32 %v1497, 0.0
          %v1754 = vmax.f32 %v1498, 0.0
          %v1755 = vmax.f32 %v1499, 0.0
          %v1756 = vmax.f32 %v1500, 0.0
          %v1757 = vmax.f32 %v1501, 0.0
          %v1758 = vmax.f32 %v1502, 0.0
          %v1759 = vmax.f32 %v1503, 0.0
          %v1760 = vmax.f32 %v1504, 0.0
          %v1761 = vmax.f32 %v1505, 0.0
          %v1762 = vmax.f32 %v1506, 0.0
          %v1763 = vmax.f32 %v1507, 0.0
          %v1764 = vmax.f32 %v1508, 0.0
          %v1765 = vmax.f32 %v1509, 0.0
          %v1766 = vmax.f32 %v1510, 0.0
          %v1767 = vmax.f32 %v1511, 0.0
          %v1768 = vmax.f32 %v1512, 0.0
          %v1769 = vmax.f32 %v1513, 0.0
          %v1770 = vmax.f32 %v1514, 0.0
          %v1771 = vmax.f32 %v1515, 0.0
          %v1772 = vmax.f32 %v1516, 0.0
          %v1773 = vmax.f32 %v1517, 0.0
          %v1774 = vmax.f32 %v1518, 0.0
          %v1775 = vmax.f32 %v1519, 0.0
          %v1776 = vmax.f32 %v1520, 0.0
          %v1777 = vmax.f32 %v1521, 0.0
          %v1778 = vmax.f32 %v1522, 0.0
          %v1779 = vmax.f32 %v1523, 0.0
          %v1780 = vmax.f32 %v1524, 0.0
          %v1781 = vmax.f32 %v1525, 0.0
          %v1782 = vmax.f32 %v1526, 0.0
          %v1783 = vmax.f32 %v1527, 0.0
          %v1784 = vmax.f32 %v1528, 0.0
          %v1785 = vmax.f32 %v1529, 0.0
          %v1786 = vmax.f32 %v1530, 0.0
          %v1787 = vmax.f32 %v1531, 0.0
          %v1788 = vmax.f32 %v1532, 0.0
          %v1789 = vmax.f32 %v1533, 0.0
          %v1790 = vmax.f32 %v1534, 0.0
          %v1791 = vmax.f32 %v1535, 0.0
          %v1792 = vmax.f32 %v1536, 0.0
          %v1793 = vmax.f32 %v1537, 0.0
          %v1794 = vmax.f32 %v1538, 0.0
          %v1795 = vmax.f32 %v1539, 0.0
          %v1796 = vmax.f32 %v1540, 0.0
          %v1797 = vmax.f32 %v1541, 0.0
          %v1798 = vmax.f32 %v1542, 0.0
          %v1799 = vmax.f32 %v1543, 0.0
          %v1800 = vmax.f32 %v1544, 0.0
          %v1801 = vmax.f32 %v1545, 0.0
          %v1802 = vmax.f32 %v1546, 0.0
          %v1803 = vmax.f32 %v1547, 0.0
          %v1804 = vmax.f32 %v1548, 0.0
          %v1805 = vmax.f32 %v1549, 0.0
          %v1806 = vmax.f32 %v1550, 0.0
          %v1807 = vmax.f32 %v1551, 0.0
          %v1808 = vmax.f32 %v1552, 0.0
          %v1809 = vmax.f32 %v1553, 0.0
          %v1810 = vmax.f32 %v1554, 0.0
          %v1811 = vmax.f32 %v1555, 0.0
          %v1812 = vmax.f32 %v1556, 0.0
          %v1813 = vmax.f32 %v1557, 0.0
          %v1814 = vmax.f32 %v1558, 0.0
          %v1815 = vmax.f32 %v1559, 0.0
          %v1816 = vmax.f32 %v1560, 0.0
          %v1817 = vmax.f32 %v1561, 0.0
          %v1818 = vmax.f32 %v1562, 0.0
          %v1819 = vmax.f32 %v1563, 0.0
          %v1820 = vmax.f32 %v1564, 0.0
          %v1821 = vmax.f32 %v1565, 0.0
          %v1822 = vmax.f32 %v1566, 0.0
          %v1823 = vmax.f32 %v1567, 0.0
          %v1824 = vmax.f32 %v1568, 0.0
          %v1825 = vmax.f32 %v1569, 0.0
          %v1826 = vmax.f32 %v1570, 0.0
          %v1827 = vmax.f32 %v1571, 0.0
          %v1828 = vmax.f32 %v1572, 0.0
          %v1829 = vmax.f32 %v1573, 0.0
          %v1830 = vmax.f32 %v1574, 0.0
          %v1831 = vmax.f32 %v1575, 0.0
          %v1832 = vmax.f32 %v1576, 0.0
          %v1833 = vmax.f32 %v1577, 0.0
          %v1834 = vmax.f32 %v1578, 0.0
          %v1835 = vmax.f32 %v1579, 0.0
          %v1836 = vmax.f32 %v1580, 0.0
          %v1837 = vmax.f32 %v1581, 0.0
          %v1838 = vmax.f32 %v1582, 0.0
          %v1839 = vmax.f32 %v1583, 0.0
          %v1840 = vmax.f32 %v1584, 0.0
          %v1841 = vmax.f32 %v1585, 0.0
          %v1842 = vmax.f32 %v1586, 0.0
          %v1843 = vmax.f32 %v1587, 0.0
          %v1844 = vmax.f32 %v1588, 0.0
          %v1845 = vmax.f32 %v1589, 0.0
          %v1846 = vmax.f32 %v1590, 0.0
          %v1847 = vmax.f32 %v1591, 0.0
          %v1848 = vmax.f32 %v1592, 0.0
          %v1849 = vmax.f32 %v1593, 0.0
          %v1850 = vmax.f32 %v1594, 0.0
          %v1851 = vmax.f32 %v1595, 0.0
          %v1852 = vmax.f32 %v1596, 0.0
          %v1853 = vmax.f32 %v1597, 0.0
          %v1854 = vmax.f32 %v1598, 0.0
          %v1855 = vmax.f32 %v1599, 0.0
          %v1856 = vmax.f32 %v1600, 0.0
          %v1857 = vmax.f32 %v1601, 0.0
          %v1858 = vmax.f32 %v1602, 0.0
          %v1859 = vmax.f32 %v1603, 0.0
          %v1860 = vmax.f32 %v1604, 0.0
          %v1861 = vmax.f32 %v1605, 0.0
          %v1862 = vmax.f32 %v1606, 0.0
          %v1863 = vmax.f32 %v1607, 0.0
          %v1864 = vmax.f32 %v1608, 0.0
          %v1865 = vmax.f32 %v1609, 0.0
          %v1866 = vmax.f32 %v1610, 0.0
          %v1867 = vmax.f32 %v1611, 0.0
          %v1868 = vmax.f32 %v1612, 0.0
          %v1869 = vmax.f32 %v1613, 0.0
          %v1870 = vmax.f32 %v1614, 0.0
          %v1871 = vmax.f32 %v1615, 0.0
          %v1872 = vmax.f32 %v1616, 0.0
          %v1873 = vmax.f32 %v1617, 0.0
          %v1874 = vmax.f32 %v1618, 0.0
          %v1875 = vmax.f32 %v1619, 0.0
          %v1876 = vmax.f32 %v1620, 0.0
          %v1877 = vmax.f32 %v1621, 0.0
          %v1878 = vmax.f32 %v1622, 0.0
          %v1879 = vmax.f32 %v1623, 0.0
          %v1880 = vmax.f32 %v1624, 0.0
          %v1881 = vmax.f32 %v1625, 0.0
          %v1882 = vmax.f32 %v1626, 0.0
          %v1883 = vmax.f32 %v1627, 0.0
          %v1884 = vmax.f32 %v1628, 0.0
          %v1885 = vmax.f32 %v1629, 0.0
          %v1886 = vmax.f32 %v1630, 0.0
          %v1887 = vmax.f32 %v1631, 0.0
          %v1888 = vmax.f32 %v1632, 0.0
          %v1889 = vmax.f32 %v1633, 0.0
          %v1890 = vmax.f32 %v1634, 0.0
          %v1891 = vmax.f32 %v1635, 0.0
          %v1892 = vmax.f32 %v1636, 0.0
          %1893 = vset.pattern.permute.xlu0 1
          %1894 = vperm.xlu0 %1893, %v436
          %v1895 = vpop.permute.xlu0 %1894
          %1897 = vset.pattern.permute.xlu0 1
          %1898 = vperm.xlu0 %1897, %v437
          %v1899 = vpop.permute.xlu0 %1898
          %1901 = vset.pattern.permute.xlu0 1
          %1902 = vperm.xlu0 %1901, %v438
          %v1903 = vpop.permute.xlu0 %1902
          %1905 = vset.pattern.permute.xlu0 1
          %1906 = vperm.xlu0 %1905, %v439
          %v1907 = vpop.permute.xlu0 %1906
          %1909 = vset.pattern.permute.xlu0 1
          %1910 = vperm.xlu0 %1909, %v440
          %v1911 = vpop.permute.xlu0 %1910
          %1913 = vset.pattern.permute.xlu0 1
          %1914 = vperm.xlu0 %1913, %v441
          %v1915 = vpop.permute.xlu0 %1914
          %1917 = vset.pattern.permute.xlu0 1
          %1918 = vperm.xlu0 %1917, %v442
          %v1919 = vpop.permute.xlu0 %1918
          %1921 = vset.pattern.permute.xlu0 1
          %1922 = vperm.xlu0 %1921, %v443
          %v1923 = vpop.permute.xlu0 %1922
          %1925 = vset.pattern.permute.xlu0 1
          %1926 = vperm.xlu0 %1925, %v444
          %v1927 = vpop.permute.xlu0 %1926
          %1929 = vset.pattern.permute.xlu0 1
          %1930 = vperm.xlu0 %1929, %v445
          %v1931 = vpop.permute.xlu0 %1930
          %1933 = vset.pattern.permute.xlu0 1
          %1934 = vperm.xlu0 %1933, %v446
          %v1935 = vpop.permute.xlu0 %1934
          %1937 = vset.pattern.permute.xlu0 1
          %1938 = vperm.xlu0 %1937, %v447
          %v1939 = vpop.permute.xlu0 %1938
          %1941 = vset.pattern.permute.xlu0 1
          %1942 = vperm.xlu0 %1941, %v448
          %v1943 = vpop.permute.xlu0 %1942
          %1945 = vset.pattern.permute.xlu0 1
          %1946 = vperm.xlu0 %1945, %v449
          %v1947 = vpop.permute.xlu0 %1946
          %1949 = vset.pattern.permute.xlu0 1
          %1950 = vperm.xlu0 %1949, %v450
          %v1951 = vpop.permute.xlu0 %1950
          %1953 = vset.pattern.permute.xlu0 1
          %1954 = vperm.xlu0 %1953, %v451
          %v1955 = vpop.permute.xlu0 %1954
          %1957 = vset.pattern.permute.xlu0 1
          %1958 = vperm.xlu0 %1957, %v452
          %v1959 = vpop.permute.xlu0 %1958
          %1961 = vset.pattern.permute.xlu0 1
          %1962 = vperm.xlu0 %1961, %v453
          %v1963 = vpop.permute.xlu0 %1962
          %1965 = vset.pattern.permute.xlu0 1
          %1966 = vperm.xlu0 %1965, %v454
          %v1967 = vpop.permute.xlu0 %1966
          %1969 = vset.pattern.permute.xlu0 1
          %1970 = vperm.xlu0 %1969, %v455
          %v1971 = vpop.permute.xlu0 %1970
          %1973 = vset.pattern.permute.xlu0 1
          %1974 = vperm.xlu0 %1973, %v456
          %v1975 = vpop.permute.xlu0 %1974
          %1977 = vset.pattern.permute.xlu0 1
          %1978 = vperm.xlu0 %1977, %v457
          %v1979 = vpop.permute.xlu0 %1978
          %1981 = vset.pattern.permute.xlu0 1
          %1982 = vperm.xlu0 %1981, %v458
          %v1983 = vpop.permute.xlu0 %1982
          %1985 = vset.pattern.permute.xlu0 1
          %1986 = vperm.xlu0 %1985, %v459
          %v1987 = vpop.permute.xlu0 %1986
          %1989 = vset.pattern.permute.xlu0 1
          %1990 = vperm.xlu0 %1989, %v460
          %v1991 = vpop.permute.xlu0 %1990
          %1993 = vset.pattern.permute.xlu0 1
          %1994 = vperm.xlu0 %1993, %v461
          %v1995 = vpop.permute.xlu0 %1994
          %1997 = vset.pattern.permute.xlu0 1
          %1998 = vperm.xlu0 %1997, %v462
          %v1999 = vpop.permute.xlu0 %1998
          %2001 = vset.pattern.permute.xlu0 1
          %2002 = vperm.xlu0 %2001, %v463
          %v2003 = vpop.permute.xlu0 %2002
          %2005 = vset.pattern.permute.xlu0 1
          %2006 = vperm.xlu0 %2005, %v464
          %v2007 = vpop.permute.xlu0 %2006
          %2009 = vset.pattern.permute.xlu0 1
          %2010 = vperm.xlu0 %2009, %v465
          %v2011 = vpop.permute.xlu0 %2010
          %2013 = vset.pattern.permute.xlu0 1
          %2014 = vperm.xlu0 %2013, %v466
          %v2015 = vpop.permute.xlu0 %2014
          %2017 = vset.pattern.permute.xlu0 1
          %2018 = vperm.xlu0 %2017, %v467
          %v2019 = vpop.permute.xlu0 %2018
          %2021 = vset.pattern.permute.xlu0 1
          %2022 = vperm.xlu0 %2021, %v468
          %v2023 = vpop.permute.xlu0 %2022
          %2025 = vset.pattern.permute.xlu0 1
          %2026 = vperm.xlu0 %2025, %v469
          %v2027 = vpop.permute.xlu0 %2026
          %2029 = vset.pattern.permute.xlu0 1
          %2030 = vperm.xlu0 %2029, %v470
          %v2031 = vpop.permute.xlu0 %2030
          %2033 = vset.pattern.permute.xlu0 1
          %2034 = vperm.xlu0 %2033, %v471
          %v2035 = vpop.permute.xlu0 %2034
          %2037 = vset.pattern.permute.xlu0 1
          %2038 = vperm.xlu0 %2037, %v472
          %v2039 = vpop.permute.xlu0 %2038
          %2041 = vset.pattern.permute.xlu0 1
          %2042 = vperm.xlu0 %2041, %v473
          %v2043 = vpop.permute.xlu0 %2042
          %2045 = vset.pattern.permute.xlu0 1
          %2046 = vperm.xlu0 %2045, %v474
          %v2047 = vpop.permute.xlu0 %2046
          %2049 = vset.pattern.permute.xlu0 1
          %2050 = vperm.xlu0 %2049, %v475
          %v2051 = vpop.permute.xlu0 %2050
          %2053 = vset.pattern.permute.xlu0 1
          %2054 = vperm.xlu0 %2053, %v476
          %v2055 = vpop.permute.xlu0 %2054
          %2057 = vset.pattern.permute.xlu0 1
          %2058 = vperm.xlu0 %2057, %v477
          %v2059 = vpop.permute.xlu0 %2058
          %2061 = vset.pattern.permute.xlu0 1
          %2062 = vperm.xlu0 %2061, %v478
          %v2063 = vpop.permute.xlu0 %2062
          %2065 = vset.pattern.permute.xlu0 1
          %2066 = vperm.xlu0 %2065, %v479
          %v2067 = vpop.permute.xlu0 %2066
          %2069 = vset.pattern.permute.xlu0 1
          %2070 = vperm.xlu0 %2069, %v480
          %v2071 = vpop.permute.xlu0 %2070
          %2073 = vset.pattern.permute.xlu0 1
          %2074 = vperm.xlu0 %2073, %v481
          %v2075 = vpop.permute.xlu0 %2074
          %2077 = vset.pattern.permute.xlu0 1
          %2078 = vperm.xlu0 %2077, %v482
          %v2079 = vpop.permute.xlu0 %2078
          %2081 = vset.pattern.permute.xlu0 1
          %2082 = vperm.xlu0 %2081, %v483
          %v2083 = vpop.permute.xlu0 %2082
          %2085 = vset.pattern.permute.xlu0 1
          %2086 = vperm.xlu0 %2085, %v484
          %v2087 = vpop.permute.xlu0 %2086
          %2089 = vset.pattern.permute.xlu0 1
          %2090 = vperm.xlu0 %2089, %v485
          %v2091 = vpop.permute.xlu0 %2090
          %2093 = vset.pattern.permute.xlu0 1
          %2094 = vperm.xlu0 %2093, %v486
          %v2095 = vpop.permute.xlu0 %2094
          %2097 = vset.pattern.permute.xlu0 1
          %2098 = vperm.xlu0 %2097, %v487
          %v2099 = vpop.permute.xlu0 %2098
          %2101 = vset.pattern.permute.xlu0 1
          %2102 = vperm.xlu0 %2101, %v488
          %v2103 = vpop.permute.xlu0 %2102
          %2105 = vset.pattern.permute.xlu0 1
          %2106 = vperm.xlu0 %2105, %v489
          %v2107 = vpop.permute.xlu0 %2106
          %2109 = vset.pattern.permute.xlu0 1
          %2110 = vperm.xlu0 %2109, %v490
          %v2111 = vpop.permute.xlu0 %2110
          %2113 = vset.pattern.permute.xlu0 1
          %2114 = vperm.xlu0 %2113, %v491
          %v2115 = vpop.permute.xlu0 %2114
          %2117 = vset.pattern.permute.xlu0 1
          %2118 = vperm.xlu0 %2117, %v492
          %v2119 = vpop.permute.xlu0 %2118
          %2121 = vset.pattern.permute.xlu0 1
          %2122 = vperm.xlu0 %2121, %v493
          %v2123 = vpop.permute.xlu0 %2122
          %2125 = vset.pattern.permute.xlu0 1
          %2126 = vperm.xlu0 %2125, %v494
          %v2127 = vpop.permute.xlu0 %2126
          %2129 = vset.pattern.permute.xlu0 1
          %2130 = vperm.xlu0 %2129, %v495
          %v2131 = vpop.permute.xlu0 %2130
          %2133 = vset.pattern.permute.xlu0 1
          %2134 = vperm.xlu0 %2133, %v496
          %v2135 = vpop.permute.xlu0 %2134
          %2137 = vset.pattern.permute.xlu0 1
          %2138 = vperm.xlu0 %2137, %v497
          %v2139 = vpop.permute.xlu0 %2138
          %2141 = vset.pattern.permute.xlu0 1
          %2142 = vperm.xlu0 %2141, %v498
          %v2143 = vpop.permute.xlu0 %2142
          %2145 = vset.pattern.permute.xlu0 1
          %2146 = vperm.xlu0 %2145, %v499
          %v2147 = vpop.permute.xlu0 %2146
          %v2149 = vlaneseq
          %v2150 = vshrl.u32 %v2149, 7
          %v2151 = vsub.s32 1, %v2150
          %v2152 = vrot.slane %v509, %v2151
          %v2153 = vlaneseq
          %v2154 = vshrl.u32 %v2153, 7
          %v2155 = vsub.s32 5, %v2154
          %v2156 = vrot.slane %v509, %v2155
          %v2157 = vlaneseq
          %v2158 = vshrl.u32 %v2157, 7
          %v2159 = vsub.s32 1, %v2158
          %v2160 = vrot.slane %v510, %v2159
          %v2161 = vlaneseq
          %v2162 = vshrl.u32 %v2161, 7
          %v2163 = vsub.s32 5, %v2162
          %v2164 = vrot.slane %v510, %v2163
          %v2169 = vlaneseq
          %v2170 = vshrl.u32 %v2169, 7
          %v2171 = vsub.s32 1, %v2170
          %v2172 = vrot.slane %v2152, %v2171
          %v2173 = vlaneseq
          %v2174 = vshrl.u32 %v2173, 7
          %v2175 = vsub.s32 1, %v2174
          %v2176 = vrot.slane %v2156, %v2175
          %v2177 = vlaneseq
          %v2178 = vshrl.u32 %v2177, 7
          %v2179 = vsub.s32 1, %v2178
          %v2180 = vrot.slane %v2160, %v2179
          %v2181 = vlaneseq
          %v2182 = vshrl.u32 %v2181, 7
          %v2183 = vsub.s32 1, %v2182
          %v2184 = vrot.slane %v2164, %v2183
          %v2185 = vsub.f32 %v1895, %v2172
          %v2186 = vsub.f32 %v1895, %v2176
          %v2187 = vsub.f32 %v1895, %v2180
          %v2188 = vsub.f32 %v1895, %v2184
          %v2189 = vsub.f32 %v1899, %v2172
          %v2190 = vsub.f32 %v1899, %v2176
          %v2191 = vsub.f32 %v1899, %v2180
          %v2192 = vsub.f32 %v1899, %v2184
          %v2193 = vsub.f32 %v1903, %v2172
          %v2194 = vsub.f32 %v1903, %v2176
          %v2195 = vsub.f32 %v1903, %v2180
          %v2196 = vsub.f32 %v1903, %v2184
          %v2197 = vsub.f32 %v1907, %v2172
          %v2198 = vsub.f32 %v1907, %v2176
          %v2199 = vsub.f32 %v1907, %v2180
          %v2200 = vsub.f32 %v1907, %v2184
          %v2201 = vsub.f32 %v1911, %v2172
          %v2202 = vsub.f32 %v1911, %v2176
          %v2203 = vsub.f32 %v1911, %v2180
          %v2204 = vsub.f32 %v1911, %v2184
          %v2205 = vsub.f32 %v1915, %v2172
          %v2206 = vsub.f32 %v1915, %v2176
          %v2207 = vsub.f32 %v1915, %v2180
          %v2208 = vsub.f32 %v1915, %v2184
          %v2209 = vsub.f32 %v1919, %v2172
          %v2210 = vsub.f32 %v1919, %v2176
          %v2211 = vsub.f32 %v1919, %v2180
          %v2212 = vsub.f32 %v1919, %v2184
          %v2213 = vsub.f32 %v1923, %v2172
          %v2214 = vsub.f32 %v1923, %v2176
          %v2215 = vsub.f32 %v1923, %v2180
          %v2216 = vsub.f32 %v1923, %v2184
          %v2217 = vsub.f32 %v1927, %v2172
          %v2218 = vsub.f32 %v1927, %v2176
          %v2219 = vsub.f32 %v1927, %v2180
          %v2220 = vsub.f32 %v1927, %v2184
          %v2221 = vsub.f32 %v1931, %v2172
          %v2222 = vsub.f32 %v1931, %v2176
          %v2223 = vsub.f32 %v1931, %v2180
          %v2224 = vsub.f32 %v1931, %v2184
          %v2225 = vsub.f32 %v1935, %v2172
          %v2226 = vsub.f32 %v1935, %v2176
          %v2227 = vsub.f32 %v1935, %v2180
          %v2228 = vsub.f32 %v1935, %v2184
          %v2229 = vsub.f32 %v1939, %v2172
          %v2230 = vsub.f32 %v1939, %v2176
          %v2231 = vsub.f32 %v1939, %v2180
          %v2232 = vsub.f32 %v1939, %v2184
          %v2233 = vsub.f32 %v1943, %v2172
          %v2234 = vsub.f32 %v1943, %v2176
          %v2235 = vsub.f32 %v1943, %v2180
          %v2236 = vsub.f32 %v1943, %v2184
          %v2237 = vsub.f32 %v1947, %v2172
          %v2238 = vsub.f32 %v1947, %v2176
          %v2239 = vsub.f32 %v1947, %v2180
          %v2240 = vsub.f32 %v1947, %v2184
          %v2241 = vsub.f32 %v1951, %v2172
          %v2242 = vsub.f32 %v1951, %v2176
          %v2243 = vsub.f32 %v1951, %v2180
          %v2244 = vsub.f32 %v1951, %v2184
          %v2245 = vsub.f32 %v1955, %v2172
          %v2246 = vsub.f32 %v1955, %v2176
          %v2247 = vsub.f32 %v1955, %v2180
          %v2248 = vsub.f32 %v1955, %v2184
          %v2249 = vsub.f32 %v1959, %v2172
          %v2250 = vsub.f32 %v1959, %v2176
          %v2251 = vsub.f32 %v1959, %v2180
          %v2252 = vsub.f32 %v1959, %v2184
          %v2253 = vsub.f32 %v1963, %v2172
          %v2254 = vsub.f32 %v1963, %v2176
          %v2255 = vsub.f32 %v1963, %v2180
          %v2256 = vsub.f32 %v1963, %v2184
          %v2257 = vsub.f32 %v1967, %v2172
          %v2258 = vsub.f32 %v1967, %v2176
          %v2259 = vsub.f32 %v1967, %v2180
          %v2260 = vsub.f32 %v1967, %v2184
          %v2261 = vsub.f32 %v1971, %v2172
          %v2262 = vsub.f32 %v1971, %v2176
          %v2263 = vsub.f32 %v1971, %v2180
          %v2264 = vsub.f32 %v1971, %v2184
          %v2265 = vsub.f32 %v1975, %v2172
          %v2266 = vsub.f32 %v1975, %v2176
          %v2267 = vsub.f32 %v1975, %v2180
          %v2268 = vsub.f32 %v1975, %v2184
          %v2269 = vsub.f32 %v1979, %v2172
          %v2270 = vsub.f32 %v1979, %v2176
          %v2271 = vsub.f32 %v1979, %v2180
          %v2272 = vsub.f32 %v1979, %v2184
          %v2273 = vsub.f32 %v1983, %v2172
          %v2274 = vsub.f32 %v1983, %v2176
          %v2275 = vsub.f32 %v1983, %v2180
          %v2276 = vsub.f32 %v1983, %v2184
          %v2277 = vsub.f32 %v1987, %v2172
          %v2278 = vsub.f32 %v1987, %v2176
          %v2279 = vsub.f32 %v1987, %v2180
          %v2280 = vsub.f32 %v1987, %v2184
          %v2281 = vsub.f32 %v1991, %v2172
          %v2282 = vsub.f32 %v1991, %v2176
          %v2283 = vsub.f32 %v1991, %v2180
          %v2284 = vsub.f32 %v1991, %v2184
          %v2285 = vsub.f32 %v1995, %v2172
          %v2286 = vsub.f32 %v1995, %v2176
          %v2287 = vsub.f32 %v1995, %v2180
          %v2288 = vsub.f32 %v1995, %v2184
          %v2289 = vsub.f32 %v1999, %v2172
          %v2290 = vsub.f32 %v1999, %v2176
          %v2291 = vsub.f32 %v1999, %v2180
          %v2292 = vsub.f32 %v1999, %v2184
          %v2293 = vsub.f32 %v2003, %v2172
          %v2294 = vsub.f32 %v2003, %v2176
          %v2295 = vsub.f32 %v2003, %v2180
          %v2296 = vsub.f32 %v2003, %v2184
          %v2297 = vsub.f32 %v2007, %v2172
          %v2298 = vsub.f32 %v2007, %v2176
          %v2299 = vsub.f32 %v2007, %v2180
          %v2300 = vsub.f32 %v2007, %v2184
          %v2301 = vsub.f32 %v2011, %v2172
          %v2302 = vsub.f32 %v2011, %v2176
          %v2303 = vsub.f32 %v2011, %v2180
          %v2304 = vsub.f32 %v2011, %v2184
          %v2305 = vsub.f32 %v2015, %v2172
          %v2306 = vsub.f32 %v2015, %v2176
          %v2307 = vsub.f32 %v2015, %v2180
          %v2308 = vsub.f32 %v2015, %v2184
          %v2309 = vsub.f32 %v2019, %v2172
          %v2310 = vsub.f32 %v2019, %v2176
          %v2311 = vsub.f32 %v2019, %v2180
          %v2312 = vsub.f32 %v2019, %v2184
          %v2313 = vsub.f32 %v2023, %v2172
          %v2314 = vsub.f32 %v2023, %v2176
          %v2315 = vsub.f32 %v2023, %v2180
          %v2316 = vsub.f32 %v2023, %v2184
          %v2317 = vsub.f32 %v2027, %v2172
          %v2318 = vsub.f32 %v2027, %v2176
          %v2319 = vsub.f32 %v2027, %v2180
          %v2320 = vsub.f32 %v2027, %v2184
          %v2321 = vsub.f32 %v2031, %v2172
          %v2322 = vsub.f32 %v2031, %v2176
          %v2323 = vsub.f32 %v2031, %v2180
          %v2324 = vsub.f32 %v2031, %v2184
          %v2325 = vsub.f32 %v2035, %v2172
          %v2326 = vsub.f32 %v2035, %v2176
          %v2327 = vsub.f32 %v2035, %v2180
          %v2328 = vsub.f32 %v2035, %v2184
          %v2329 = vsub.f32 %v2039, %v2172
          %v2330 = vsub.f32 %v2039, %v2176
          %v2331 = vsub.f32 %v2039, %v2180
          %v2332 = vsub.f32 %v2039, %v2184
          %v2333 = vsub.f32 %v2043, %v2172
          %v2334 = vsub.f32 %v2043, %v2176
          %v2335 = vsub.f32 %v2043, %v2180
          %v2336 = vsub.f32 %v2043, %v2184
          %v2337 = vsub.f32 %v2047, %v2172
          %v2338 = vsub.f32 %v2047, %v2176
          %v2339 = vsub.f32 %v2047, %v2180
          %v2340 = vsub.f32 %v2047, %v2184
          %v2341 = vsub.f32 %v2051, %v2172
          %v2342 = vsub.f32 %v2051, %v2176
          %v2343 = vsub.f32 %v2051, %v2180
          %v2344 = vsub.f32 %v2051, %v2184
          %v2345 = vsub.f32 %v2055, %v2172
          %v2346 = vsub.f32 %v2055, %v2176
          %v2347 = vsub.f32 %v2055, %v2180
          %v2348 = vsub.f32 %v2055, %v2184
          %v2349 = vsub.f32 %v2059, %v2172
          %v2350 = vsub.f32 %v2059, %v2176
          %v2351 = vsub.f32 %v2059, %v2180
          %v2352 = vsub.f32 %v2059, %v2184
          %v2353 = vsub.f32 %v2063, %v2172
          %v2354 = vsub.f32 %v2063, %v2176
          %v2355 = vsub.f32 %v2063, %v2180
          %v2356 = vsub.f32 %v2063, %v2184
          %v2357 = vsub.f32 %v2067, %v2172
          %v2358 = vsub.f32 %v2067, %v2176
          %v2359 = vsub.f32 %v2067, %v2180
          %v2360 = vsub.f32 %v2067, %v2184
          %v2361 = vsub.f32 %v2071, %v2172
          %v2362 = vsub.f32 %v2071, %v2176
          %v2363 = vsub.f32 %v2071, %v2180
          %v2364 = vsub.f32 %v2071, %v2184
          %v2365 = vsub.f32 %v2075, %v2172
          %v2366 = vsub.f32 %v2075, %v2176
          %v2367 = vsub.f32 %v2075, %v2180
          %v2368 = vsub.f32 %v2075, %v2184
          %v2369 = vsub.f32 %v2079, %v2172
          %v2370 = vsub.f32 %v2079, %v2176
          %v2371 = vsub.f32 %v2079, %v2180
          %v2372 = vsub.f32 %v2079, %v2184
          %v2373 = vsub.f32 %v2083, %v2172
          %v2374 = vsub.f32 %v2083, %v2176
          %v2375 = vsub.f32 %v2083, %v2180
          %v2376 = vsub.f32 %v2083, %v2184
          %v2377 = vsub.f32 %v2087, %v2172
          %v2378 = vsub.f32 %v2087, %v2176
          %v2379 = vsub.f32 %v2087, %v2180
          %v2380 = vsub.f32 %v2087, %v2184
          %v2381 = vsub.f32 %v2091, %v2172
          %v2382 = vsub.f32 %v2091, %v2176
          %v2383 = vsub.f32 %v2091, %v2180
          %v2384 = vsub.f32 %v2091, %v2184
          %v2385 = vsub.f32 %v2095, %v2172
          %v2386 = vsub.f32 %v2095, %v2176
          %v2387 = vsub.f32 %v2095, %v2180
          %v2388 = vsub.f32 %v2095, %v2184
          %v2389 = vsub.f32 %v2099, %v2172
          %v2390 = vsub.f32 %v2099, %v2176
          %v2391 = vsub.f32 %v2099, %v2180
          %v2392 = vsub.f32 %v2099, %v2184
          %v2393 = vsub.f32 %v2103, %v2172
          %v2394 = vsub.f32 %v2103, %v2176
          %v2395 = vsub.f32 %v2103, %v2180
          %v2396 = vsub.f32 %v2103, %v2184
          %v2397 = vsub.f32 %v2107, %v2172
          %v2398 = vsub.f32 %v2107, %v2176
          %v2399 = vsub.f32 %v2107, %v2180
          %v2400 = vsub.f32 %v2107, %v2184
          %v2401 = vsub.f32 %v2111, %v2172
          %v2402 = vsub.f32 %v2111, %v2176
          %v2403 = vsub.f32 %v2111, %v2180
          %v2404 = vsub.f32 %v2111, %v2184
          %v2405 = vsub.f32 %v2115, %v2172
          %v2406 = vsub.f32 %v2115, %v2176
          %v2407 = vsub.f32 %v2115, %v2180
          %v2408 = vsub.f32 %v2115, %v2184
          %v2409 = vsub.f32 %v2119, %v2172
          %v2410 = vsub.f32 %v2119, %v2176
          %v2411 = vsub.f32 %v2119, %v2180
          %v2412 = vsub.f32 %v2119, %v2184
          %v2413 = vsub.f32 %v2123, %v2172
          %v2414 = vsub.f32 %v2123, %v2176
          %v2415 = vsub.f32 %v2123, %v2180
          %v2416 = vsub.f32 %v2123, %v2184
          %v2417 = vsub.f32 %v2127, %v2172
          %v2418 = vsub.f32 %v2127, %v2176
          %v2419 = vsub.f32 %v2127, %v2180
          %v2420 = vsub.f32 %v2127, %v2184
          %v2421 = vsub.f32 %v2131, %v2172
          %v2422 = vsub.f32 %v2131, %v2176
          %v2423 = vsub.f32 %v2131, %v2180
          %v2424 = vsub.f32 %v2131, %v2184
          %v2425 = vsub.f32 %v2135, %v2172
          %v2426 = vsub.f32 %v2135, %v2176
          %v2427 = vsub.f32 %v2135, %v2180
          %v2428 = vsub.f32 %v2135, %v2184
          %v2429 = vsub.f32 %v2139, %v2172
          %v2430 = vsub.f32 %v2139, %v2176
          %v2431 = vsub.f32 %v2139, %v2180
          %v2432 = vsub.f32 %v2139, %v2184
          %v2433 = vsub.f32 %v2143, %v2172
          %v2434 = vsub.f32 %v2143, %v2176
          %v2435 = vsub.f32 %v2143, %v2180
          %v2436 = vsub.f32 %v2143, %v2184
          %v2437 = vsub.f32 %v2147, %v2172
          %v2438 = vsub.f32 %v2147, %v2176
          %v2439 = vsub.f32 %v2147, %v2180
          %v2440 = vsub.f32 %v2147, %v2184
          %v2441 = vand.u32 2147483647, %v2185
          %v2442 = vand.u32 2147483647, %v2186
          %v2443 = vand.u32 2147483647, %v2187
          %v2444 = vand.u32 2147483647, %v2188
          %v2445 = vand.u32 2147483647, %v2189
          %v2446 = vand.u32 2147483647, %v2190
          %v2447 = vand.u32 2147483647, %v2191
          %v2448 = vand.u32 2147483647, %v2192
          %v2449 = vand.u32 2147483647, %v2193
          %v2450 = vand.u32 2147483647, %v2194
          %v2451 = vand.u32 2147483647, %v2195
          %v2452 = vand.u32 2147483647, %v2196
          %v2453 = vand.u32 2147483647, %v2197
          %v2454 = vand.u32 2147483647, %v2198
          %v2455 = vand.u32 2147483647, %v2199
          %v2456 = vand.u32 2147483647, %v2200
          %v2457 = vand.u32 2147483647, %v2201
          %v2458 = vand.u32 2147483647, %v2202
          %v2459 = vand.u32 2147483647, %v2203
          %v2460 = vand.u32 2147483647, %v2204
          %v2461 = vand.u32 2147483647, %v2205
          %v2462 = vand.u32 2147483647, %v2206
          %v2463 = vand.u32 2147483647, %v2207
          %v2464 = vand.u32 2147483647, %v2208
          %v2465 = vand.u32 2147483647, %v2209
          %v2466 = vand.u32 2147483647, %v2210
          %v2467 = vand.u32 2147483647, %v2211
          %v2468 = vand.u32 2147483647, %v2212
          %v2469 = vand.u32 2147483647, %v2213
          %v2470 = vand.u32 2147483647, %v2214
          %v2471 = vand.u32 2147483647, %v2215
          %v2472 = vand.u32 2147483647, %v2216
          %v2473 = vand.u32 2147483647, %v2217
          %v2474 = vand.u32 2147483647, %v2218
          %v2475 = vand.u32 2147483647, %v2219
          %v2476 = vand.u32 2147483647, %v2220
          %v2477 = vand.u32 2147483647, %v2221
          %v2478 = vand.u32 2147483647, %v2222
          %v2479 = vand.u32 2147483647, %v2223
          %v2480 = vand.u32 2147483647, %v2224
          %v2481 = vand.u32 2147483647, %v2225
          %v2482 = vand.u32 2147483647, %v2226
          %v2483 = vand.u32 2147483647, %v2227
          %v2484 = vand.u32 2147483647, %v2228
          %v2485 = vand.u32 2147483647, %v2229
          %v2486 = vand.u32 2147483647, %v2230
          %v2487 = vand.u32 2147483647, %v2231
          %v2488 = vand.u32 2147483647, %v2232
          %v2489 = vand.u32 2147483647, %v2233
          %v2490 = vand.u32 2147483647, %v2234
          %v2491 = vand.u32 2147483647, %v2235
          %v2492 = vand.u32 2147483647, %v2236
          %v2493 = vand.u32 2147483647, %v2237
          %v2494 = vand.u32 2147483647, %v2238
          %v2495 = vand.u32 2147483647, %v2239
          %v2496 = vand.u32 2147483647, %v2240
          %v2497 = vand.u32 2147483647, %v2241
          %v2498 = vand.u32 2147483647, %v2242
          %v2499 = vand.u32 2147483647, %v2243
          %v2500 = vand.u32 2147483647, %v2244
          %v2501 = vand.u32 2147483647, %v2245
          %v2502 = vand.u32 2147483647, %v2246
          %v2503 = vand.u32 2147483647, %v2247
          %v2504 = vand.u32 2147483647, %v2248
          %v2505 = vand.u32 2147483647, %v2249
          %v2506 = vand.u32 2147483647, %v2250
          %v2507 = vand.u32 2147483647, %v2251
          %v2508 = vand.u32 2147483647, %v2252
          %v2509 = vand.u32 2147483647, %v2253
          %v2510 = vand.u32 2147483647, %v2254
          %v2511 = vand.u32 2147483647, %v2255
          %v2512 = vand.u32 2147483647, %v2256
          %v2513 = vand.u32 2147483647, %v2257
          %v2514 = vand.u32 2147483647, %v2258
          %v2515 = vand.u32 2147483647, %v2259
          %v2516 = vand.u32 2147483647, %v2260
          %v2517 = vand.u32 2147483647, %v2261
          %v2518 = vand.u32 2147483647, %v2262
          %v2519 = vand.u32 2147483647, %v2263
          %v2520 = vand.u32 2147483647, %v2264
          %v2521 = vand.u32 2147483647, %v2265
          %v2522 = vand.u32 2147483647, %v2266
          %v2523 = vand.u32 2147483647, %v2267
          %v2524 = vand.u32 2147483647, %v2268
          %v2525 = vand.u32 2147483647, %v2269
          %v2526 = vand.u32 2147483647, %v2270
          %v2527 = vand.u32 2147483647, %v2271
          %v2528 = vand.u32 2147483647, %v2272
          %v2529 = vand.u32 2147483647, %v2273
          %v2530 = vand.u32 2147483647, %v2274
          %v2531 = vand.u32 2147483647, %v2275
          %v2532 = vand.u32 2147483647, %v2276
          %v2533 = vand.u32 2147483647, %v2277
          %v2534 = vand.u32 2147483647, %v2278
          %v2535 = vand.u32 2147483647, %v2279
          %v2536 = vand.u32 2147483647, %v2280
          %v2537 = vand.u32 2147483647, %v2281
          %v2538 = vand.u32 2147483647, %v2282
          %v2539 = vand.u32 2147483647, %v2283
          %v2540 = vand.u32 2147483647, %v2284
          %v2541 = vand.u32 2147483647, %v2285
          %v2542 = vand.u32 2147483647, %v2286
          %v2543 = vand.u32 2147483647, %v2287
          %v2544 = vand.u32 2147483647, %v2288
          %v2545 = vand.u32 2147483647, %v2289
          %v2546 = vand.u32 2147483647, %v2290
          %v2547 = vand.u32 2147483647, %v2291
          %v2548 = vand.u32 2147483647, %v2292
          %v2549 = vand.u32 2147483647, %v2293
          %v2550 = vand.u32 2147483647, %v2294
          %v2551 = vand.u32 2147483647, %v2295
          %v2552 = vand.u32 2147483647, %v2296
          %v2553 = vand.u32 2147483647, %v2297
          %v2554 = vand.u32 2147483647, %v2298
          %v2555 = vand.u32 2147483647, %v2299
          %v2556 = vand.u32 2147483647, %v2300
          %v2557 = vand.u32 2147483647, %v2301
          %v2558 = vand.u32 2147483647, %v2302
          %v2559 = vand.u32 2147483647, %v2303
          %v2560 = vand.u32 2147483647, %v2304
          %v2561 = vand.u32 2147483647, %v2305
          %v2562 = vand.u32 2147483647, %v2306
          %v2563 = vand.u32 2147483647, %v2307
          %v2564 = vand.u32 2147483647, %v2308
          %v2565 = vand.u32 2147483647, %v2309
          %v2566 = vand.u32 2147483647, %v2310
          %v2567 = vand.u32 2147483647, %v2311
          %v2568 = vand.u32 2147483647, %v2312
          %v2569 = vand.u32 2147483647, %v2313
          %v2570 = vand.u32 2147483647, %v2314
          %v2571 = vand.u32 2147483647, %v2315
          %v2572 = vand.u32 2147483647, %v2316
          %v2573 = vand.u32 2147483647, %v2317
          %v2574 = vand.u32 2147483647, %v2318
          %v2575 = vand.u32 2147483647, %v2319
          %v2576 = vand.u32 2147483647, %v2320
          %v2577 = vand.u32 2147483647, %v2321
          %v2578 = vand.u32 2147483647, %v2322
          %v2579 = vand.u32 2147483647, %v2323
          %v2580 = vand.u32 2147483647, %v2324
          %v2581 = vand.u32 2147483647, %v2325
          %v2582 = vand.u32 2147483647, %v2326
          %v2583 = vand.u32 2147483647, %v2327
          %v2584 = vand.u32 2147483647, %v2328
          %v2585 = vand.u32 2147483647, %v2329
          %v2586 = vand.u32 2147483647, %v2330
          %v2587 = vand.u32 2147483647, %v2331
          %v2588 = vand.u32 2147483647, %v2332
          %v2589 = vand.u32 2147483647, %v2333
          %v2590 = vand.u32 2147483647, %v2334
          %v2591 = vand.u32 2147483647, %v2335
          %v2592 = vand.u32 2147483647, %v2336
          %v2593 = vand.u32 2147483647, %v2337
          %v2594 = vand.u32 2147483647, %v2338
          %v2595 = vand.u32 2147483647, %v2339
          %v2596 = vand.u32 2147483647, %v2340
          %v2597 = vand.u32 2147483647, %v2341
          %v2598 = vand.u32 2147483647, %v2342
          %v2599 = vand.u32 2147483647, %v2343
          %v2600 = vand.u32 2147483647, %v2344
          %v2601 = vand.u32 2147483647, %v2345
          %v2602 = vand.u32 2147483647, %v2346
          %v2603 = vand.u32 2147483647, %v2347
          %v2604 = vand.u32 2147483647, %v2348
          %v2605 = vand.u32 2147483647, %v2349
          %v2606 = vand.u32 2147483647, %v2350
          %v2607 = vand.u32 2147483647, %v2351
          %v2608 = vand.u32 2147483647, %v2352
          %v2609 = vand.u32 2147483647, %v2353
          %v2610 = vand.u32 2147483647, %v2354
          %v2611 = vand.u32 2147483647, %v2355
          %v2612 = vand.u32 2147483647, %v2356
          %v2613 = vand.u32 2147483647, %v2357
          %v2614 = vand.u32 2147483647, %v2358
          %v2615 = vand.u32 2147483647, %v2359
          %v2616 = vand.u32 2147483647, %v2360
          %v2617 = vand.u32 2147483647, %v2361
          %v2618 = vand.u32 2147483647, %v2362
          %v2619 = vand.u32 2147483647, %v2363
          %v2620 = vand.u32 2147483647, %v2364
          %v2621 = vand.u32 2147483647, %v2365
          %v2622 = vand.u32 2147483647, %v2366
          %v2623 = vand.u32 2147483647, %v2367
          %v2624 = vand.u32 2147483647, %v2368
          %v2625 = vand.u32 2147483647, %v2369
          %v2626 = vand.u32 2147483647, %v2370
          %v2627 = vand.u32 2147483647, %v2371
          %v2628 = vand.u32 2147483647, %v2372
          %v2629 = vand.u32 2147483647, %v2373
          %v2630 = vand.u32 2147483647, %v2374
          %v2631 = vand.u32 2147483647, %v2375
          %v2632 = vand.u32 2147483647, %v2376
          %v2633 = vand.u32 2147483647, %v2377
          %v2634 = vand.u32 2147483647, %v2378
          %v2635 = vand.u32 2147483647, %v2379
          %v2636 = vand.u32 2147483647, %v2380
          %v2637 = vand.u32 2147483647, %v2381
          %v2638 = vand.u32 2147483647, %v2382
          %v2639 = vand.u32 2147483647, %v2383
          %v2640 = vand.u32 2147483647, %v2384
          %v2641 = vand.u32 2147483647, %v2385
          %v2642 = vand.u32 2147483647, %v2386
          %v2643 = vand.u32 2147483647, %v2387
          %v2644 = vand.u32 2147483647, %v2388
          %v2645 = vand.u32 2147483647, %v2389
          %v2646 = vand.u32 2147483647, %v2390
          %v2647 = vand.u32 2147483647, %v2391
          %v2648 = vand.u32 2147483647, %v2392
          %v2649 = vand.u32 2147483647, %v2393
          %v2650 = vand.u32 2147483647, %v2394
          %v2651 = vand.u32 2147483647, %v2395
          %v2652 = vand.u32 2147483647, %v2396
          %v2653 = vand.u32 2147483647, %v2397
          %v2654 = vand.u32 2147483647, %v2398
          %v2655 = vand.u32 2147483647, %v2399
          %v2656 = vand.u32 2147483647, %v2400
          %v2657 = vand.u32 2147483647, %v2401
          %v2658 = vand.u32 2147483647, %v2402
          %v2659 = vand.u32 2147483647, %v2403
          %v2660 = vand.u32 2147483647, %v2404
          %v2661 = vand.u32 2147483647, %v2405
          %v2662 = vand.u32 2147483647, %v2406
          %v2663 = vand.u32 2147483647, %v2407
          %v2664 = vand.u32 2147483647, %v2408
          %v2665 = vand.u32 2147483647, %v2409
          %v2666 = vand.u32 2147483647, %v2410
          %v2667 = vand.u32 2147483647, %v2411
          %v2668 = vand.u32 2147483647, %v2412
          %v2669 = vand.u32 2147483647, %v2413
          %v2670 = vand.u32 2147483647, %v2414
          %v2671 = vand.u32 2147483647, %v2415
          %v2672 = vand.u32 2147483647, %v2416
          %v2673 = vand.u32 2147483647, %v2417
          %v2674 = vand.u32 2147483647, %v2418
          %v2675 = vand.u32 2147483647, %v2419
          %v2676 = vand.u32 2147483647, %v2420
          %v2677 = vand.u32 2147483647, %v2421
          %v2678 = vand.u32 2147483647, %v2422
          %v2679 = vand.u32 2147483647, %v2423
          %v2680 = vand.u32 2147483647, %v2424
          %v2681 = vand.u32 2147483647, %v2425
          %v2682 = vand.u32 2147483647, %v2426
          %v2683 = vand.u32 2147483647, %v2427
          %v2684 = vand.u32 2147483647, %v2428
          %v2685 = vand.u32 2147483647, %v2429
          %v2686 = vand.u32 2147483647, %v2430
          %v2687 = vand.u32 2147483647, %v2431
          %v2688 = vand.u32 2147483647, %v2432
          %v2689 = vand.u32 2147483647, %v2433
          %v2690 = vand.u32 2147483647, %v2434
          %v2691 = vand.u32 2147483647, %v2435
          %v2692 = vand.u32 2147483647, %v2436
          %v2693 = vand.u32 2147483647, %v2437
          %v2694 = vand.u32 2147483647, %v2438
          %v2695 = vand.u32 2147483647, %v2439
          %v2696 = vand.u32 2147483647, %v2440
          %v2697 = vsub.f32 1.0, %v2441
          %v2698 = vsub.f32 1.0, %v2442
          %v2699 = vsub.f32 1.0, %v2443
          %v2700 = vsub.f32 1.0, %v2444
          %v2701 = vsub.f32 1.0, %v2445
          %v2702 = vsub.f32 1.0, %v2446
          %v2703 = vsub.f32 1.0, %v2447
          %v2704 = vsub.f32 1.0, %v2448
          %v2705 = vsub.f32 1.0, %v2449
          %v2706 = vsub.f32 1.0, %v2450
          %v2707 = vsub.f32 1.0, %v2451
          %v2708 = vsub.f32 1.0, %v2452
          %v2709 = vsub.f32 1.0, %v2453
          %v2710 = vsub.f32 1.0, %v2454
          %v2711 = vsub.f32 1.0, %v2455
          %v2712 = vsub.f32 1.0, %v2456
          %v2713 = vsub.f32 1.0, %v2457
          %v2714 = vsub.f32 1.0, %v2458
          %v2715 = vsub.f32 1.0, %v2459
          %v2716 = vsub.f32 1.0, %v2460
          %v2717 = vsub.f32 1.0, %v2461
          %v2718 = vsub.f32 1.0, %v2462
          %v2719 = vsub.f32 1.0, %v2463
          %v2720 = vsub.f32 1.0, %v2464
          %v2721 = vsub.f32 1.0, %v2465
          %v2722 = vsub.f32 1.0, %v2466
          %v2723 = vsub.f32 1.0, %v2467
          %v2724 = vsub.f32 1.0, %v2468
          %v2725 = vsub.f32 1.0, %v2469
          %v2726 = vsub.f32 1.0, %v2470
          %v2727 = vsub.f32 1.0, %v2471
          %v2728 = vsub.f32 1.0, %v2472
          %v2729 = vsub.f32 1.0, %v2473
          %v2730 = vsub.f32 1.0, %v2474
          %v2731 = vsub.f32 1.0, %v2475
          %v2732 = vsub.f32 1.0, %v2476
          %v2733 = vsub.f32 1.0, %v2477
          %v2734 = vsub.f32 1.0, %v2478
          %v2735 = vsub.f32 1.0, %v2479
          %v2736 = vsub.f32 1.0, %v2480
          %v2737 = vsub.f32 1.0, %v2481
          %v2738 = vsub.f32 1.0, %v2482
          %v2739 = vsub.f32 1.0, %v2483
          %v2740 = vsub.f32 1.0, %v2484
          %v2741 = vsub.f32 1.0, %v2485
          %v2742 = vsub.f32 1.0, %v2486
          %v2743 = vsub.f32 1.0, %v2487
          %v2744 = vsub.f32 1.0, %v2488
          %v2745 = vsub.f32 1.0, %v2489
          %v2746 = vsub.f32 1.0, %v2490
          %v2747 = vsub.f32 1.0, %v2491
          %v2748 = vsub.f32 1.0, %v2492
          %v2749 = vsub.f32 1.0, %v2493
          %v2750 = vsub.f32 1.0, %v2494
          %v2751 = vsub.f32 1.0, %v2495
          %v2752 = vsub.f32 1.0, %v2496
          %v2753 = vsub.f32 1.0, %v2497
          %v2754 = vsub.f32 1.0, %v2498
          %v2755 = vsub.f32 1.0, %v2499
          %v2756 = vsub.f32 1.0, %v2500
          %v2757 = vsub.f32 1.0, %v2501
          %v2758 = vsub.f32 1.0, %v2502
          %v2759 = vsub.f32 1.0, %v2503
          %v2760 = vsub.f32 1.0, %v2504
          %v2761 = vsub.f32 1.0, %v2505
          %v2762 = vsub.f32 1.0, %v2506
          %v2763 = vsub.f32 1.0, %v2507
          %v2764 = vsub.f32 1.0, %v2508
          %v2765 = vsub.f32 1.0, %v2509
          %v2766 = vsub.f32 1.0, %v2510
          %v2767 = vsub.f32 1.0, %v2511
          %v2768 = vsub.f32 1.0, %v2512
          %v2769 = vsub.f32 1.0, %v2513
          %v2770 = vsub.f32 1.0, %v2514
          %v2771 = vsub.f32 1.0, %v2515
          %v2772 = vsub.f32 1.0, %v2516
          %v2773 = vsub.f32 1.0, %v2517
          %v2774 = vsub.f32 1.0, %v2518
          %v2775 = vsub.f32 1.0, %v2519
          %v2776 = vsub.f32 1.0, %v2520
          %v2777 = vsub.f32 1.0, %v2521
          %v2778 = vsub.f32 1.0, %v2522
          %v2779 = vsub.f32 1.0, %v2523
          %v2780 = vsub.f32 1.0, %v2524
          %v2781 = vsub.f32 1.0, %v2525
          %v2782 = vsub.f32 1.0, %v2526
          %v2783 = vsub.f32 1.0, %v2527
          %v2784 = vsub.f32 1.0, %v2528
          %v2785 = vsub.f32 1.0, %v2529
          %v2786 = vsub.f32 1.0, %v2530
          %v2787 = vsub.f32 1.0, %v2531
          %v2788 = vsub.f32 1.0, %v2532
          %v2789 = vsub.f32 1.0, %v2533
          %v2790 = vsub.f32 1.0, %v2534
          %v2791 = vsub.f32 1.0, %v2535
          %v2792 = vsub.f32 1.0, %v2536
          %v2793 = vsub.f32 1.0, %v2537
          %v2794 = vsub.f32 1.0, %v2538
          %v2795 = vsub.f32 1.0, %v2539
          %v2796 = vsub.f32 1.0, %v2540
          %v2797 = vsub.f32 1.0, %v2541
          %v2798 = vsub.f32 1.0, %v2542
          %v2799 = vsub.f32 1.0, %v2543
          %v2800 = vsub.f32 1.0, %v2544
          %v2801 = vsub.f32 1.0, %v2545
          %v2802 = vsub.f32 1.0, %v2546
          %v2803 = vsub.f32 1.0, %v2547
          %v2804 = vsub.f32 1.0, %v2548
          %v2805 = vsub.f32 1.0, %v2549
          %v2806 = vsub.f32 1.0, %v2550
          %v2807 = vsub.f32 1.0, %v2551
          %v2808 = vsub.f32 1.0, %v2552
          %v2809 = vsub.f32 1.0, %v2553
          %v2810 = vsub.f32 1.0, %v2554
          %v2811 = vsub.f32 1.0, %v2555
          %v2812 = vsub.f32 1.0, %v2556
          %v2813 = vsub.f32 1.0, %v2557
          %v2814 = vsub.f32 1.0, %v2558
          %v2815 = vsub.f32 1.0, %v2559
          %v2816 = vsub.f32 1.0, %v2560
          %v2817 = vsub.f32 1.0, %v2561
          %v2818 = vsub.f32 1.0, %v2562
          %v2819 = vsub.f32 1.0, %v2563
          %v2820 = vsub.f32 1.0, %v2564
          %v2821 = vsub.f32 1.0, %v2565
          %v2822 = vsub.f32 1.0, %v2566
          %v2823 = vsub.f32 1.0, %v2567
          %v2824 = vsub.f32 1.0, %v2568
          %v2825 = vsub.f32 1.0, %v2569
          %v2826 = vsub.f32 1.0, %v2570
          %v2827 = vsub.f32 1.0, %v2571
          %v2828 = vsub.f32 1.0, %v2572
          %v2829 = vsub.f32 1.0, %v2573
          %v2830 = vsub.f32 1.0, %v2574
          %v2831 = vsub.f32 1.0, %v2575
          %v2832 = vsub.f32 1.0, %v2576
          %v2833 = vsub.f32 1.0, %v2577
          %v2834 = vsub.f32 1.0, %v2578
          %v2835 = vsub.f32 1.0, %v2579
          %v2836 = vsub.f32 1.0, %v2580
          %v2837 = vsub.f32 1.0, %v2581
          %v2838 = vsub.f32 1.0, %v2582
          %v2839 = vsub.f32 1.0, %v2583
          %v2840 = vsub.f32 1.0, %v2584
          %v2841 = vsub.f32 1.0, %v2585
          %v2842 = vsub.f32 1.0, %v2586
          %v2843 = vsub.f32 1.0, %v2587
          %v2844 = vsub.f32 1.0, %v2588
          %v2845 = vsub.f32 1.0, %v2589
          %v2846 = vsub.f32 1.0, %v2590
          %v2847 = vsub.f32 1.0, %v2591
          %v2848 = vsub.f32 1.0, %v2592
          %v2849 = vsub.f32 1.0, %v2593
          %v2850 = vsub.f32 1.0, %v2594
          %v2851 = vsub.f32 1.0, %v2595
          %v2852 = vsub.f32 1.0, %v2596
          %v2853 = vsub.f32 1.0, %v2597
          %v2854 = vsub.f32 1.0, %v2598
          %v2855 = vsub.f32 1.0, %v2599
          %v2856 = vsub.f32 1.0, %v2600
          %v2857 = vsub.f32 1.0, %v2601
          %v2858 = vsub.f32 1.0, %v2602
          %v2859 = vsub.f32 1.0, %v2603
          %v2860 = vsub.f32 1.0, %v2604
          %v2861 = vsub.f32 1.0, %v2605
          %v2862 = vsub.f32 1.0, %v2606
          %v2863 = vsub.f32 1.0, %v2607
          %v2864 = vsub.f32 1.0, %v2608
          %v2865 = vsub.f32 1.0, %v2609
          %v2866 = vsub.f32 1.0, %v2610
          %v2867 = vsub.f32 1.0, %v2611
          %v2868 = vsub.f32 1.0, %v2612
          %v2869 = vsub.f32 1.0, %v2613
          %v2870 = vsub.f32 1.0, %v2614
          %v2871 = vsub.f32 1.0, %v2615
          %v2872 = vsub.f32 1.0, %v2616
          %v2873 = vsub.f32 1.0, %v2617
          %v2874 = vsub.f32 1.0, %v2618
          %v2875 = vsub.f32 1.0, %v2619
          %v2876 = vsub.f32 1.0, %v2620
          %v2877 = vsub.f32 1.0, %v2621
          %v2878 = vsub.f32 1.0, %v2622
          %v2879 = vsub.f32 1.0, %v2623
          %v2880 = vsub.f32 1.0, %v2624
          %v2881 = vsub.f32 1.0, %v2625
          %v2882 = vsub.f32 1.0, %v2626
          %v2883 = vsub.f32 1.0, %v2627
          %v2884 = vsub.f32 1.0, %v2628
          %v2885 = vsub.f32 1.0, %v2629
          %v2886 = vsub.f32 1.0, %v2630
          %v2887 = vsub.f32 1.0, %v2631
          %v2888 = vsub.f32 1.0, %v2632
          %v2889 = vsub.f32 1.0, %v2633
          %v2890 = vsub.f32 1.0, %v2634
          %v2891 = vsub.f32 1.0, %v2635
          %v2892 = vsub.f32 1.0, %v2636
          %v2893 = vsub.f32 1.0, %v2637
          %v2894 = vsub.f32 1.0, %v2638
          %v2895 = vsub.f32 1.0, %v2639
          %v2896 = vsub.f32 1.0, %v2640
          %v2897 = vsub.f32 1.0, %v2641
          %v2898 = vsub.f32 1.0, %v2642
          %v2899 = vsub.f32 1.0, %v2643
          %v2900 = vsub.f32 1.0, %v2644
          %v2901 = vsub.f32 1.0, %v2645
          %v2902 = vsub.f32 1.0, %v2646
          %v2903 = vsub.f32 1.0, %v2647
          %v2904 = vsub.f32 1.0, %v2648
          %v2905 = vsub.f32 1.0, %v2649
          %v2906 = vsub.f32 1.0, %v2650
          %v2907 = vsub.f32 1.0, %v2651
          %v2908 = vsub.f32 1.0, %v2652
          %v2909 = vsub.f32 1.0, %v2653
          %v2910 = vsub.f32 1.0, %v2654
          %v2911 = vsub.f32 1.0, %v2655
          %v2912 = vsub.f32 1.0, %v2656
          %v2913 = vsub.f32 1.0, %v2657
          %v2914 = vsub.f32 1.0, %v2658
          %v2915 = vsub.f32 1.0, %v2659
          %v2916 = vsub.f32 1.0, %v2660
          %v2917 = vsub.f32 1.0, %v2661
          %v2918 = vsub.f32 1.0, %v2662
          %v2919 = vsub.f32 1.0, %v2663
          %v2920 = vsub.f32 1.0, %v2664
          %v2921 = vsub.f32 1.0, %v2665
          %v2922 = vsub.f32 1.0, %v2666
          %v2923 = vsub.f32 1.0, %v2667
          %v2924 = vsub.f32 1.0, %v2668
          %v2925 = vsub.f32 1.0, %v2669
          %v2926 = vsub.f32 1.0, %v2670
          %v2927 = vsub.f32 1.0, %v2671
          %v2928 = vsub.f32 1.0, %v2672
          %v2929 = vsub.f32 1.0, %v2673
          %v2930 = vsub.f32 1.0, %v2674
          %v2931 = vsub.f32 1.0, %v2675
          %v2932 = vsub.f32 1.0, %v2676
          %v2933 = vsub.f32 1.0, %v2677
          %v2934 = vsub.f32 1.0, %v2678
          %v2935 = vsub.f32 1.0, %v2679
          %v2936 = vsub.f32 1.0, %v2680
          %v2937 = vsub.f32 1.0, %v2681
          %v2938 = vsub.f32 1.0, %v2682
          %v2939 = vsub.f32 1.0, %v2683
          %v2940 = vsub.f32 1.0, %v2684
          %v2941 = vsub.f32 1.0, %v2685
          %v2942 = vsub.f32 1.0, %v2686
          %v2943 = vsub.f32 1.0, %v2687
          %v2944 = vsub.f32 1.0, %v2688
          %v2945 = vsub.f32 1.0, %v2689
          %v2946 = vsub.f32 1.0, %v2690
          %v2947 = vsub.f32 1.0, %v2691
          %v2948 = vsub.f32 1.0, %v2692
          %v2949 = vsub.f32 1.0, %v2693
          %v2950 = vsub.f32 1.0, %v2694
          %v2951 = vsub.f32 1.0, %v2695
          %v2952 = vsub.f32 1.0, %v2696
          %v2953 = vmax.f32 %v2697, 0.0
          %v2954 = vmax.f32 %v2698, 0.0
          %v2955 = vmax.f32 %v2699, 0.0
          %v2956 = vmax.f32 %v2700, 0.0
          %v2957 = vmax.f32 %v2701, 0.0
          %v2958 = vmax.f32 %v2702, 0.0
          %v2959 = vmax.f32 %v2703, 0.0
          %v2960 = vmax.f32 %v2704, 0.0
          %v2961 = vmax.f32 %v2705, 0.0
          %v2962 = vmax.f32 %v2706, 0.0
          %v2963 = vmax.f32 %v2707, 0.0
          %v2964 = vmax.f32 %v2708, 0.0
          %v2965 = vmax.f32 %v2709, 0.0
          %v2966 = vmax.f32 %v2710, 0.0
          %v2967 = vmax.f32 %v2711, 0.0
          %v2968 = vmax.f32 %v2712, 0.0
          %v2969 = vmax.f32 %v2713, 0.0
          %v2970 = vmax.f32 %v2714, 0.0
          %v2971 = vmax.f32 %v2715, 0.0
          %v2972 = vmax.f32 %v2716, 0.0
          %v2973 = vmax.f32 %v2717, 0.0
          %v2974 = vmax.f32 %v2718, 0.0
          %v2975 = vmax.f32 %v2719, 0.0
          %v2976 = vmax.f32 %v2720, 0.0
          %v2977 = vmax.f32 %v2721, 0.0
          %v2978 = vmax.f32 %v2722, 0.0
          %v2979 = vmax.f32 %v2723, 0.0
          %v2980 = vmax.f32 %v2724, 0.0
          %v2981 = vmax.f32 %v2725, 0.0
          %v2982 = vmax.f32 %v2726, 0.0
          %v2983 = vmax.f32 %v2727, 0.0
          %v2984 = vmax.f32 %v2728, 0.0
          %v2985 = vmax.f32 %v2729, 0.0
          %v2986 = vmax.f32 %v2730, 0.0
          %v2987 = vmax.f32 %v2731, 0.0
          %v2988 = vmax.f32 %v2732, 0.0
          %v2989 = vmax.f32 %v2733, 0.0
          %v2990 = vmax.f32 %v2734, 0.0
          %v2991 = vmax.f32 %v2735, 0.0
          %v2992 = vmax.f32 %v2736, 0.0
          %v2993 = vmax.f32 %v2737, 0.0
          %v2994 = vmax.f32 %v2738, 0.0
          %v2995 = vmax.f32 %v2739, 0.0
          %v2996 = vmax.f32 %v2740, 0.0
          %v2997 = vmax.f32 %v2741, 0.0
          %v2998 = vmax.f32 %v2742, 0.0
          %v2999 = vmax.f32 %v2743, 0.0
          %v3000 = vmax.f32 %v2744, 0.0
          %v3001 = vmax.f32 %v2745, 0.0
          %v3002 = vmax.f32 %v2746, 0.0
          %v3003 = vmax.f32 %v2747, 0.0
          %v3004 = vmax.f32 %v2748, 0.0
          %v3005 = vmax.f32 %v2749, 0.0
          %v3006 = vmax.f32 %v2750, 0.0
          %v3007 = vmax.f32 %v2751, 0.0
          %v3008 = vmax.f32 %v2752, 0.0
          %v3009 = vmax.f32 %v2753, 0.0
          %v3010 = vmax.f32 %v2754, 0.0
          %v3011 = vmax.f32 %v2755, 0.0
          %v3012 = vmax.f32 %v2756, 0.0
          %v3013 = vmax.f32 %v2757, 0.0
          %v3014 = vmax.f32 %v2758, 0.0
          %v3015 = vmax.f32 %v2759, 0.0
          %v3016 = vmax.f32 %v2760, 0.0
          %v3017 = vmax.f32 %v2761, 0.0
          %v3018 = vmax.f32 %v2762, 0.0
          %v3019 = vmax.f32 %v2763, 0.0
          %v3020 = vmax.f32 %v2764, 0.0
          %v3021 = vmax.f32 %v2765, 0.0
          %v3022 = vmax.f32 %v2766, 0.0
          %v3023 = vmax.f32 %v2767, 0.0
          %v3024 = vmax.f32 %v2768, 0.0
          %v3025 = vmax.f32 %v2769, 0.0
          %v3026 = vmax.f32 %v2770, 0.0
          %v3027 = vmax.f32 %v2771, 0.0
          %v3028 = vmax.f32 %v2772, 0.0
          %v3029 = vmax.f32 %v2773, 0.0
          %v3030 = vmax.f32 %v2774, 0.0
          %v3031 = vmax.f32 %v2775, 0.0
          %v3032 = vmax.f32 %v2776, 0.0
          %v3033 = vmax.f32 %v2777, 0.0
          %v3034 = vmax.f32 %v2778, 0.0
          %v3035 = vmax.f32 %v2779, 0.0
          %v3036 = vmax.f32 %v2780, 0.0
          %v3037 = vmax.f32 %v2781, 0.0
          %v3038 = vmax.f32 %v2782, 0.0
          %v3039 = vmax.f32 %v2783, 0.0
          %v3040 = vmax.f32 %v2784, 0.0
          %v3041 = vmax.f32 %v2785, 0.0
          %v3042 = vmax.f32 %v2786, 0.0
          %v3043 = vmax.f32 %v2787, 0.0
          %v3044 = vmax.f32 %v2788, 0.0
          %v3045 = vmax.f32 %v2789, 0.0
          %v3046 = vmax.f32 %v2790, 0.0
          %v3047 = vmax.f32 %v2791, 0.0
          %v3048 = vmax.f32 %v2792, 0.0
          %v3049 = vmax.f32 %v2793, 0.0
          %v3050 = vmax.f32 %v2794, 0.0
          %v3051 = vmax.f32 %v2795, 0.0
          %v3052 = vmax.f32 %v2796, 0.0
          %v3053 = vmax.f32 %v2797, 0.0
          %v3054 = vmax.f32 %v2798, 0.0
          %v3055 = vmax.f32 %v2799, 0.0
          %v3056 = vmax.f32 %v2800, 0.0
          %v3057 = vmax.f32 %v2801, 0.0
          %v3058 = vmax.f32 %v2802, 0.0
          %v3059 = vmax.f32 %v2803, 0.0
          %v3060 = vmax.f32 %v2804, 0.0
          %v3061 = vmax.f32 %v2805, 0.0
          %v3062 = vmax.f32 %v2806, 0.0
          %v3063 = vmax.f32 %v2807, 0.0
          %v3064 = vmax.f32 %v2808, 0.0
          %v3065 = vmax.f32 %v2809, 0.0
          %v3066 = vmax.f32 %v2810, 0.0
          %v3067 = vmax.f32 %v2811, 0.0
          %v3068 = vmax.f32 %v2812, 0.0
          %v3069 = vmax.f32 %v2813, 0.0
          %v3070 = vmax.f32 %v2814, 0.0
          %v3071 = vmax.f32 %v2815, 0.0
          %v3072 = vmax.f32 %v2816, 0.0
          %v3073 = vmax.f32 %v2817, 0.0
          %v3074 = vmax.f32 %v2818, 0.0
          %v3075 = vmax.f32 %v2819, 0.0
          %v3076 = vmax.f32 %v2820, 0.0
          %v3077 = vmax.f32 %v2821, 0.0
          %v3078 = vmax.f32 %v2822, 0.0
          %v3079 = vmax.f32 %v2823, 0.0
          %v3080 = vmax.f32 %v2824, 0.0
          %v3081 = vmax.f32 %v2825, 0.0
          %v3082 = vmax.f32 %v2826, 0.0
          %v3083 = vmax.f32 %v2827, 0.0
          %v3084 = vmax.f32 %v2828, 0.0
          %v3085 = vmax.f32 %v2829, 0.0
          %v3086 = vmax.f32 %v2830, 0.0
          %v3087 = vmax.f32 %v2831, 0.0
          %v3088 = vmax.f32 %v2832, 0.0
          %v3089 = vmax.f32 %v2833, 0.0
          %v3090 = vmax.f32 %v2834, 0.0
          %v3091 = vmax.f32 %v2835, 0.0
          %v3092 = vmax.f32 %v2836, 0.0
          %v3093 = vmax.f32 %v2837, 0.0
          %v3094 = vmax.f32 %v2838, 0.0
          %v3095 = vmax.f32 %v2839, 0.0
          %v3096 = vmax.f32 %v2840, 0.0
          %v3097 = vmax.f32 %v2841, 0.0
          %v3098 = vmax.f32 %v2842, 0.0
          %v3099 = vmax.f32 %v2843, 0.0
          %v3100 = vmax.f32 %v2844, 0.0
          %v3101 = vmax.f32 %v2845, 0.0
          %v3102 = vmax.f32 %v2846, 0.0
          %v3103 = vmax.f32 %v2847, 0.0
          %v3104 = vmax.f32 %v2848, 0.0
          %v3105 = vmax.f32 %v2849, 0.0
          %v3106 = vmax.f32 %v2850, 0.0
          %v3107 = vmax.f32 %v2851, 0.0
          %v3108 = vmax.f32 %v2852, 0.0
          %v3109 = vmax.f32 %v2853, 0.0
          %v3110 = vmax.f32 %v2854, 0.0
          %v3111 = vmax.f32 %v2855, 0.0
          %v3112 = vmax.f32 %v2856, 0.0
          %v3113 = vmax.f32 %v2857, 0.0
          %v3114 = vmax.f32 %v2858, 0.0
          %v3115 = vmax.f32 %v2859, 0.0
          %v3116 = vmax.f32 %v2860, 0.0
          %v3117 = vmax.f32 %v2861, 0.0
          %v3118 = vmax.f32 %v2862, 0.0
          %v3119 = vmax.f32 %v2863, 0.0
          %v3120 = vmax.f32 %v2864, 0.0
          %v3121 = vmax.f32 %v2865, 0.0
          %v3122 = vmax.f32 %v2866, 0.0
          %v3123 = vmax.f32 %v2867, 0.0
          %v3124 = vmax.f32 %v2868, 0.0
          %v3125 = vmax.f32 %v2869, 0.0
          %v3126 = vmax.f32 %v2870, 0.0
          %v3127 = vmax.f32 %v2871, 0.0
          %v3128 = vmax.f32 %v2872, 0.0
          %v3129 = vmax.f32 %v2873, 0.0
          %v3130 = vmax.f32 %v2874, 0.0
          %v3131 = vmax.f32 %v2875, 0.0
          %v3132 = vmax.f32 %v2876, 0.0
          %v3133 = vmax.f32 %v2877, 0.0
          %v3134 = vmax.f32 %v2878, 0.0
          %v3135 = vmax.f32 %v2879, 0.0
          %v3136 = vmax.f32 %v2880, 0.0
          %v3137 = vmax.f32 %v2881, 0.0
          %v3138 = vmax.f32 %v2882, 0.0
          %v3139 = vmax.f32 %v2883, 0.0
          %v3140 = vmax.f32 %v2884, 0.0
          %v3141 = vmax.f32 %v2885, 0.0
          %v3142 = vmax.f32 %v2886, 0.0
          %v3143 = vmax.f32 %v2887, 0.0
          %v3144 = vmax.f32 %v2888, 0.0
          %v3145 = vmax.f32 %v2889, 0.0
          %v3146 = vmax.f32 %v2890, 0.0
          %v3147 = vmax.f32 %v2891, 0.0
          %v3148 = vmax.f32 %v2892, 0.0
          %v3149 = vmax.f32 %v2893, 0.0
          %v3150 = vmax.f32 %v2894, 0.0
          %v3151 = vmax.f32 %v2895, 0.0
          %v3152 = vmax.f32 %v2896, 0.0
          %v3153 = vmax.f32 %v2897, 0.0
          %v3154 = vmax.f32 %v2898, 0.0
          %v3155 = vmax.f32 %v2899, 0.0
          %v3156 = vmax.f32 %v2900, 0.0
          %v3157 = vmax.f32 %v2901, 0.0
          %v3158 = vmax.f32 %v2902, 0.0
          %v3159 = vmax.f32 %v2903, 0.0
          %v3160 = vmax.f32 %v2904, 0.0
          %v3161 = vmax.f32 %v2905, 0.0
          %v3162 = vmax.f32 %v2906, 0.0
          %v3163 = vmax.f32 %v2907, 0.0
          %v3164 = vmax.f32 %v2908, 0.0
          %v3165 = vmax.f32 %v2909, 0.0
          %v3166 = vmax.f32 %v2910, 0.0
          %v3167 = vmax.f32 %v2911, 0.0
          %v3168 = vmax.f32 %v2912, 0.0
          %v3169 = vmax.f32 %v2913, 0.0
          %v3170 = vmax.f32 %v2914, 0.0
          %v3171 = vmax.f32 %v2915, 0.0
          %v3172 = vmax.f32 %v2916, 0.0
          %v3173 = vmax.f32 %v2917, 0.0
          %v3174 = vmax.f32 %v2918, 0.0
          %v3175 = vmax.f32 %v2919, 0.0
          %v3176 = vmax.f32 %v2920, 0.0
          %v3177 = vmax.f32 %v2921, 0.0
          %v3178 = vmax.f32 %v2922, 0.0
          %v3179 = vmax.f32 %v2923, 0.0
          %v3180 = vmax.f32 %v2924, 0.0
          %v3181 = vmax.f32 %v2925, 0.0
          %v3182 = vmax.f32 %v2926, 0.0
          %v3183 = vmax.f32 %v2927, 0.0
          %v3184 = vmax.f32 %v2928, 0.0
          %v3185 = vmax.f32 %v2929, 0.0
          %v3186 = vmax.f32 %v2930, 0.0
          %v3187 = vmax.f32 %v2931, 0.0
          %v3188 = vmax.f32 %v2932, 0.0
          %v3189 = vmax.f32 %v2933, 0.0
          %v3190 = vmax.f32 %v2934, 0.0
          %v3191 = vmax.f32 %v2935, 0.0
          %v3192 = vmax.f32 %v2936, 0.0
          %v3193 = vmax.f32 %v2937, 0.0
          %v3194 = vmax.f32 %v2938, 0.0
          %v3195 = vmax.f32 %v2939, 0.0
          %v3196 = vmax.f32 %v2940, 0.0
          %v3197 = vmax.f32 %v2941, 0.0
          %v3198 = vmax.f32 %v2942, 0.0
          %v3199 = vmax.f32 %v2943, 0.0
          %v3200 = vmax.f32 %v2944, 0.0
          %v3201 = vmax.f32 %v2945, 0.0
          %v3202 = vmax.f32 %v2946, 0.0
          %v3203 = vmax.f32 %v2947, 0.0
          %v3204 = vmax.f32 %v2948, 0.0
          %v3205 = vmax.f32 %v2949, 0.0
          %v3206 = vmax.f32 %v2950, 0.0
          %v3207 = vmax.f32 %v2951, 0.0
          %v3208 = vmax.f32 %v2952, 0.0
          %v3209 = vmul.f32 %v1637, %v2953
          %v3210 = vmul.f32 %v1638, %v2954
          %v3211 = vmul.f32 %v1639, %v2955
          %v3212 = vmul.f32 %v1640, %v2956
          %v3213 = vmul.f32 %v1641, %v2957
          %v3214 = vmul.f32 %v1642, %v2958
          %v3215 = vmul.f32 %v1643, %v2959
          %v3216 = vmul.f32 %v1644, %v2960
          %v3217 = vmul.f32 %v1645, %v2961
          %v3218 = vmul.f32 %v1646, %v2962
          %v3219 = vmul.f32 %v1647, %v2963
          %v3220 = vmul.f32 %v1648, %v2964
          %v3221 = vmul.f32 %v1649, %v2965
          %v3222 = vmul.f32 %v1650, %v2966
          %v3223 = vmul.f32 %v1651, %v2967
          %v3224 = vmul.f32 %v1652, %v2968
          %v3225 = vmul.f32 %v1653, %v2969
          %v3226 = vmul.f32 %v1654, %v2970
          %v3227 = vmul.f32 %v1655, %v2971
          %v3228 = vmul.f32 %v1656, %v2972
          %v3229 = vmul.f32 %v1657, %v2973
          %v3230 = vmul.f32 %v1658, %v2974
          %v3231 = vmul.f32 %v1659, %v2975
          %v3232 = vmul.f32 %v1660, %v2976
          %v3233 = vmul.f32 %v1661, %v2977
          %v3234 = vmul.f32 %v1662, %v2978
          %v3235 = vmul.f32 %v1663, %v2979
          %v3236 = vmul.f32 %v1664, %v2980
          %v3237 = vmul.f32 %v1665, %v2981
          %v3238 = vmul.f32 %v1666, %v2982
          %v3239 = vmul.f32 %v1667, %v2983
          %v3240 = vmul.f32 %v1668, %v2984
          %v3241 = vmul.f32 %v1669, %v2985
          %v3242 = vmul.f32 %v1670, %v2986
          %v3243 = vmul.f32 %v1671, %v2987
          %v3244 = vmul.f32 %v1672, %v2988
          %v3245 = vmul.f32 %v1673, %v2989
          %v3246 = vmul.f32 %v1674, %v2990
          %v3247 = vmul.f32 %v1675, %v2991
          %v3248 = vmul.f32 %v1676, %v2992
          %v3249 = vmul.f32 %v1677, %v2993
          %v3250 = vmul.f32 %v1678, %v2994
          %v3251 = vmul.f32 %v1679, %v2995
          %v3252 = vmul.f32 %v1680, %v2996
          %v3253 = vmul.f32 %v1681, %v2997
          %v3254 = vmul.f32 %v1682, %v2998
          %v3255 = vmul.f32 %v1683, %v2999
          %v3256 = vmul.f32 %v1684, %v3000
          %v3257 = vmul.f32 %v1685, %v3001
          %v3258 = vmul.f32 %v1686, %v3002
          %v3259 = vmul.f32 %v1687, %v3003
          %v3260 = vmul.f32 %v1688, %v3004
          %v3261 = vmul.f32 %v1689, %v3005
          %v3262 = vmul.f32 %v1690, %v3006
          %v3263 = vmul.f32 %v1691, %v3007
          %v3264 = vmul.f32 %v1692, %v3008
          %v3265 = vmul.f32 %v1693, %v3009
          %v3266 = vmul.f32 %v1694, %v3010
          %v3267 = vmul.f32 %v1695, %v3011
          %v3268 = vmul.f32 %v1696, %v3012
          %v3269 = vmul.f32 %v1697, %v3013
          %v3270 = vmul.f32 %v1698, %v3014
          %v3271 = vmul.f32 %v1699, %v3015
          %v3272 = vmul.f32 %v1700, %v3016
          %v3273 = vmul.f32 %v1701, %v3017
          %v3274 = vmul.f32 %v1702, %v3018
          %v3275 = vmul.f32 %v1703, %v3019
          %v3276 = vmul.f32 %v1704, %v3020
          %v3277 = vmul.f32 %v1705, %v3021
          %v3278 = vmul.f32 %v1706, %v3022
          %v3279 = vmul.f32 %v1707, %v3023
          %v3280 = vmul.f32 %v1708, %v3024
          %v3281 = vmul.f32 %v1709, %v3025
          %v3282 = vmul.f32 %v1710, %v3026
          %v3283 = vmul.f32 %v1711, %v3027
          %v3284 = vmul.f32 %v1712, %v3028
          %v3285 = vmul.f32 %v1713, %v3029
          %v3286 = vmul.f32 %v1714, %v3030
          %v3287 = vmul.f32 %v1715, %v3031
          %v3288 = vmul.f32 %v1716, %v3032
          %v3289 = vmul.f32 %v1717, %v3033
          %v3290 = vmul.f32 %v1718, %v3034
          %v3291 = vmul.f32 %v1719, %v3035
          %v3292 = vmul.f32 %v1720, %v3036
          %v3293 = vmul.f32 %v1721, %v3037
          %v3294 = vmul.f32 %v1722, %v3038
          %v3295 = vmul.f32 %v1723, %v3039
          %v3296 = vmul.f32 %v1724, %v3040
          %v3297 = vmul.f32 %v1725, %v3041
          %v3298 = vmul.f32 %v1726, %v3042
          %v3299 = vmul.f32 %v1727, %v3043
          %v3300 = vmul.f32 %v1728, %v3044
          %v3301 = vmul.f32 %v1729, %v3045
          %v3302 = vmul.f32 %v1730, %v3046
          %v3303 = vmul.f32 %v1731, %v3047
          %v3304 = vmul.f32 %v1732, %v3048
          %v3305 = vmul.f32 %v1733, %v3049
          %v3306 = vmul.f32 %v1734, %v3050
          %v3307 = vmul.f32 %v1735, %v3051
          %v3308 = vmul.f32 %v1736, %v3052
          %v3309 = vmul.f32 %v1737, %v3053
          %v3310 = vmul.f32 %v1738, %v3054
          %v3311 = vmul.f32 %v1739, %v3055
          %v3312 = vmul.f32 %v1740, %v3056
          %v3313 = vmul.f32 %v1741, %v3057
          %v3314 = vmul.f32 %v1742, %v3058
          %v3315 = vmul.f32 %v1743, %v3059
          %v3316 = vmul.f32 %v1744, %v3060
          %v3317 = vmul.f32 %v1745, %v3061
          %v3318 = vmul.f32 %v1746, %v3062
          %v3319 = vmul.f32 %v1747, %v3063
          %v3320 = vmul.f32 %v1748, %v3064
          %v3321 = vmul.f32 %v1749, %v3065
          %v3322 = vmul.f32 %v1750, %v3066
          %v3323 = vmul.f32 %v1751, %v3067
          %v3324 = vmul.f32 %v1752, %v3068
          %v3325 = vmul.f32 %v1753, %v3069
          %v3326 = vmul.f32 %v1754, %v3070
          %v3327 = vmul.f32 %v1755, %v3071
          %v3328 = vmul.f32 %v1756, %v3072
          %v3329 = vmul.f32 %v1757, %v3073
          %v3330 = vmul.f32 %v1758, %v3074
          %v3331 = vmul.f32 %v1759, %v3075
          %v3332 = vmul.f32 %v1760, %v3076
          %v3333 = vmul.f32 %v1761, %v3077
          %v3334 = vmul.f32 %v1762, %v3078
          %v3335 = vmul.f32 %v1763, %v3079
          %v3336 = vmul.f32 %v1764, %v3080
          %v3337 = vmul.f32 %v1765, %v3081
          %v3338 = vmul.f32 %v1766, %v3082
          %v3339 = vmul.f32 %v1767, %v3083
          %v3340 = vmul.f32 %v1768, %v3084
          %v3341 = vmul.f32 %v1769, %v3085
          %v3342 = vmul.f32 %v1770, %v3086
          %v3343 = vmul.f32 %v1771, %v3087
          %v3344 = vmul.f32 %v1772, %v3088
          %v3345 = vmul.f32 %v1773, %v3089
          %v3346 = vmul.f32 %v1774, %v3090
          %v3347 = vmul.f32 %v1775, %v3091
          %v3348 = vmul.f32 %v1776, %v3092
          %v3349 = vmul.f32 %v1777, %v3093
          %v3350 = vmul.f32 %v1778, %v3094
          %v3351 = vmul.f32 %v1779, %v3095
          %v3352 = vmul.f32 %v1780, %v3096
          %v3353 = vmul.f32 %v1781, %v3097
          %v3354 = vmul.f32 %v1782, %v3098
          %v3355 = vmul.f32 %v1783, %v3099
          %v3356 = vmul.f32 %v1784, %v3100
          %v3357 = vmul.f32 %v1785, %v3101
          %v3358 = vmul.f32 %v1786, %v3102
          %v3359 = vmul.f32 %v1787, %v3103
          %v3360 = vmul.f32 %v1788, %v3104
          %v3361 = vmul.f32 %v1789, %v3105
          %v3362 = vmul.f32 %v1790, %v3106
          %v3363 = vmul.f32 %v1791, %v3107
          %v3364 = vmul.f32 %v1792, %v3108
          %v3365 = vmul.f32 %v1793, %v3109
          %v3366 = vmul.f32 %v1794, %v3110
          %v3367 = vmul.f32 %v1795, %v3111
          %v3368 = vmul.f32 %v1796, %v3112
          %v3369 = vmul.f32 %v1797, %v3113
          %v3370 = vmul.f32 %v1798, %v3114
          %v3371 = vmul.f32 %v1799, %v3115
          %v3372 = vmul.f32 %v1800, %v3116
          %v3373 = vmul.f32 %v1801, %v3117
          %v3374 = vmul.f32 %v1802, %v3118
          %v3375 = vmul.f32 %v1803, %v3119
          %v3376 = vmul.f32 %v1804, %v3120
          %v3377 = vmul.f32 %v1805, %v3121
          %v3378 = vmul.f32 %v1806, %v3122
          %v3379 = vmul.f32 %v1807, %v3123
          %v3380 = vmul.f32 %v1808, %v3124
          %v3381 = vmul.f32 %v1809, %v3125
          %v3382 = vmul.f32 %v1810, %v3126
          %v3383 = vmul.f32 %v1811, %v3127
          %v3384 = vmul.f32 %v1812, %v3128
          %v3385 = vmul.f32 %v1813, %v3129
          %v3386 = vmul.f32 %v1814, %v3130
          %v3387 = vmul.f32 %v1815, %v3131
          %v3388 = vmul.f32 %v1816, %v3132
          %v3389 = vmul.f32 %v1817, %v3133
          %v3390 = vmul.f32 %v1818, %v3134
          %v3391 = vmul.f32 %v1819, %v3135
          %v3392 = vmul.f32 %v1820, %v3136
          %v3393 = vmul.f32 %v1821, %v3137
          %v3394 = vmul.f32 %v1822, %v3138
          %v3395 = vmul.f32 %v1823, %v3139
          %v3396 = vmul.f32 %v1824, %v3140
          %v3397 = vmul.f32 %v1825, %v3141
          %v3398 = vmul.f32 %v1826, %v3142
          %v3399 = vmul.f32 %v1827, %v3143
          %v3400 = vmul.f32 %v1828, %v3144
          %v3401 = vmul.f32 %v1829, %v3145
          %v3402 = vmul.f32 %v1830, %v3146
          %v3403 = vmul.f32 %v1831, %v3147
          %v3404 = vmul.f32 %v1832, %v3148
          %v3405 = vmul.f32 %v1833, %v3149
          %v3406 = vmul.f32 %v1834, %v3150
          %v3407 = vmul.f32 %v1835, %v3151
          %v3408 = vmul.f32 %v1836, %v3152
          %v3409 = vmul.f32 %v1837, %v3153
          %v3410 = vmul.f32 %v1838, %v3154
          %v3411 = vmul.f32 %v1839, %v3155
          %v3412 = vmul.f32 %v1840, %v3156
          %v3413 = vmul.f32 %v1841, %v3157
          %v3414 = vmul.f32 %v1842, %v3158
          %v3415 = vmul.f32 %v1843, %v3159
          %v3416 = vmul.f32 %v1844, %v3160
          %v3417 = vmul.f32 %v1845, %v3161
          %v3418 = vmul.f32 %v1846, %v3162
          %v3419 = vmul.f32 %v1847, %v3163
          %v3420 = vmul.f32 %v1848, %v3164
          %v3421 = vmul.f32 %v1849, %v3165
          %v3422 = vmul.f32 %v1850, %v3166
          %v3423 = vmul.f32 %v1851, %v3167
          %v3424 = vmul.f32 %v1852, %v3168
          %v3425 = vmul.f32 %v1853, %v3169
          %v3426 = vmul.f32 %v1854, %v3170
          %v3427 = vmul.f32 %v1855, %v3171
          %v3428 = vmul.f32 %v1856, %v3172
          %v3429 = vmul.f32 %v1857, %v3173
          %v3430 = vmul.f32 %v1858, %v3174
          %v3431 = vmul.f32 %v1859, %v3175
          %v3432 = vmul.f32 %v1860, %v3176
          %v3433 = vmul.f32 %v1861, %v3177
          %v3434 = vmul.f32 %v1862, %v3178
          %v3435 = vmul.f32 %v1863, %v3179
          %v3436 = vmul.f32 %v1864, %v3180
          %v3437 = vmul.f32 %v1865, %v3181
          %v3438 = vmul.f32 %v1866, %v3182
          %v3439 = vmul.f32 %v1867, %v3183
          %v3440 = vmul.f32 %v1868, %v3184
          %v3441 = vmul.f32 %v1869, %v3185
          %v3442 = vmul.f32 %v1870, %v3186
          %v3443 = vmul.f32 %v1871, %v3187
          %v3444 = vmul.f32 %v1872, %v3188
          %v3445 = vmul.f32 %v1873, %v3189
          %v3446 = vmul.f32 %v1874, %v3190
          %v3447 = vmul.f32 %v1875, %v3191
          %v3448 = vmul.f32 %v1876, %v3192
          %v3449 = vmul.f32 %v1877, %v3193
          %v3450 = vmul.f32 %v1878, %v3194
          %v3451 = vmul.f32 %v1879, %v3195
          %v3452 = vmul.f32 %v1880, %v3196
          %v3453 = vmul.f32 %v1881, %v3197
          %v3454 = vmul.f32 %v1882, %v3198
          %v3455 = vmul.f32 %v1883, %v3199
          %v3456 = vmul.f32 %v1884, %v3200
          %v3457 = vmul.f32 %v1885, %v3201
          %v3458 = vmul.f32 %v1886, %v3202
          %v3459 = vmul.f32 %v1887, %v3203
          %v3460 = vmul.f32 %v1888, %v3204
          %v3461 = vmul.f32 %v1889, %v3205
          %v3462 = vmul.f32 %v1890, %v3206
          %v3463 = vmul.f32 %v1891, %v3207
          %v3464 = vmul.f32 %v1892, %v3208
          %3465 = vset.pattern.permute.xlu0 2
          %3466 = vperm.xlu0 %3465, %v436
          %v3467 = vpop.permute.xlu0 %3466
          %3469 = vset.pattern.permute.xlu0 2
          %3470 = vperm.xlu0 %3469, %v437
          %v3471 = vpop.permute.xlu0 %3470
          %3473 = vset.pattern.permute.xlu0 2
          %3474 = vperm.xlu0 %3473, %v438
          %v3475 = vpop.permute.xlu0 %3474
          %3477 = vset.pattern.permute.xlu0 2
          %3478 = vperm.xlu0 %3477, %v439
          %v3479 = vpop.permute.xlu0 %3478
          %3481 = vset.pattern.permute.xlu0 2
          %3482 = vperm.xlu0 %3481, %v440
          %v3483 = vpop.permute.xlu0 %3482
          %3485 = vset.pattern.permute.xlu0 2
          %3486 = vperm.xlu0 %3485, %v441
          %v3487 = vpop.permute.xlu0 %3486
          %3489 = vset.pattern.permute.xlu0 2
          %3490 = vperm.xlu0 %3489, %v442
          %v3491 = vpop.permute.xlu0 %3490
          %3493 = vset.pattern.permute.xlu0 2
          %3494 = vperm.xlu0 %3493, %v443
          %v3495 = vpop.permute.xlu0 %3494
          %3497 = vset.pattern.permute.xlu0 2
          %3498 = vperm.xlu0 %3497, %v444
          %v3499 = vpop.permute.xlu0 %3498
          %3501 = vset.pattern.permute.xlu0 2
          %3502 = vperm.xlu0 %3501, %v445
          %v3503 = vpop.permute.xlu0 %3502
          %3505 = vset.pattern.permute.xlu0 2
          %3506 = vperm.xlu0 %3505, %v446
          %v3507 = vpop.permute.xlu0 %3506
          %3509 = vset.pattern.permute.xlu0 2
          %3510 = vperm.xlu0 %3509, %v447
          %v3511 = vpop.permute.xlu0 %3510
          %3513 = vset.pattern.permute.xlu0 2
          %3514 = vperm.xlu0 %3513, %v448
          %v3515 = vpop.permute.xlu0 %3514
          %3517 = vset.pattern.permute.xlu0 2
          %3518 = vperm.xlu0 %3517, %v449
          %v3519 = vpop.permute.xlu0 %3518
          %3521 = vset.pattern.permute.xlu0 2
          %3522 = vperm.xlu0 %3521, %v450
          %v3523 = vpop.permute.xlu0 %3522
          %3525 = vset.pattern.permute.xlu0 2
          %3526 = vperm.xlu0 %3525, %v451
          %v3527 = vpop.permute.xlu0 %3526
          %3529 = vset.pattern.permute.xlu0 2
          %3530 = vperm.xlu0 %3529, %v452
          %v3531 = vpop.permute.xlu0 %3530
          %3533 = vset.pattern.permute.xlu0 2
          %3534 = vperm.xlu0 %3533, %v453
          %v3535 = vpop.permute.xlu0 %3534
          %3537 = vset.pattern.permute.xlu0 2
          %3538 = vperm.xlu0 %3537, %v454
          %v3539 = vpop.permute.xlu0 %3538
          %3541 = vset.pattern.permute.xlu0 2
          %3542 = vperm.xlu0 %3541, %v455
          %v3543 = vpop.permute.xlu0 %3542
          %3545 = vset.pattern.permute.xlu0 2
          %3546 = vperm.xlu0 %3545, %v456
          %v3547 = vpop.permute.xlu0 %3546
          %3549 = vset.pattern.permute.xlu0 2
          %3550 = vperm.xlu0 %3549, %v457
          %v3551 = vpop.permute.xlu0 %3550
          %3553 = vset.pattern.permute.xlu0 2
          %3554 = vperm.xlu0 %3553, %v458
          %v3555 = vpop.permute.xlu0 %3554
          %3557 = vset.pattern.permute.xlu0 2
          %3558 = vperm.xlu0 %3557, %v459
          %v3559 = vpop.permute.xlu0 %3558
          %3561 = vset.pattern.permute.xlu0 2
          %3562 = vperm.xlu0 %3561, %v460
          %v3563 = vpop.permute.xlu0 %3562
          %3565 = vset.pattern.permute.xlu0 2
          %3566 = vperm.xlu0 %3565, %v461
          %v3567 = vpop.permute.xlu0 %3566
          %3569 = vset.pattern.permute.xlu0 2
          %3570 = vperm.xlu0 %3569, %v462
          %v3571 = vpop.permute.xlu0 %3570
          %3573 = vset.pattern.permute.xlu0 2
          %3574 = vperm.xlu0 %3573, %v463
          %v3575 = vpop.permute.xlu0 %3574
          %3577 = vset.pattern.permute.xlu0 2
          %3578 = vperm.xlu0 %3577, %v464
          %v3579 = vpop.permute.xlu0 %3578
          %3581 = vset.pattern.permute.xlu0 2
          %3582 = vperm.xlu0 %3581, %v465
          %v3583 = vpop.permute.xlu0 %3582
          %3585 = vset.pattern.permute.xlu0 2
          %3586 = vperm.xlu0 %3585, %v466
          %v3587 = vpop.permute.xlu0 %3586
          %3589 = vset.pattern.permute.xlu0 2
          %3590 = vperm.xlu0 %3589, %v467
          %v3591 = vpop.permute.xlu0 %3590
          %3593 = vset.pattern.permute.xlu0 2
          %3594 = vperm.xlu0 %3593, %v468
          %v3595 = vpop.permute.xlu0 %3594
          %3597 = vset.pattern.permute.xlu0 2
          %3598 = vperm.xlu0 %3597, %v469
          %v3599 = vpop.permute.xlu0 %3598
          %3601 = vset.pattern.permute.xlu0 2
          %3602 = vperm.xlu0 %3601, %v470
          %v3603 = vpop.permute.xlu0 %3602
          %3605 = vset.pattern.permute.xlu0 2
          %3606 = vperm.xlu0 %3605, %v471
          %v3607 = vpop.permute.xlu0 %3606
          %3609 = vset.pattern.permute.xlu0 2
          %3610 = vperm.xlu0 %3609, %v472
          %v3611 = vpop.permute.xlu0 %3610
          %3613 = vset.pattern.permute.xlu0 2
          %3614 = vperm.xlu0 %3613, %v473
          %v3615 = vpop.permute.xlu0 %3614
          %3617 = vset.pattern.permute.xlu0 2
          %3618 = vperm.xlu0 %3617, %v474
          %v3619 = vpop.permute.xlu0 %3618
          %3621 = vset.pattern.permute.xlu0 2
          %3622 = vperm.xlu0 %3621, %v475
          %v3623 = vpop.permute.xlu0 %3622
          %3625 = vset.pattern.permute.xlu0 2
          %3626 = vperm.xlu0 %3625, %v476
          %v3627 = vpop.permute.xlu0 %3626
          %3629 = vset.pattern.permute.xlu0 2
          %3630 = vperm.xlu0 %3629, %v477
          %v3631 = vpop.permute.xlu0 %3630
          %3633 = vset.pattern.permute.xlu0 2
          %3634 = vperm.xlu0 %3633, %v478
          %v3635 = vpop.permute.xlu0 %3634
          %3637 = vset.pattern.permute.xlu0 2
          %3638 = vperm.xlu0 %3637, %v479
          %v3639 = vpop.permute.xlu0 %3638
          %3641 = vset.pattern.permute.xlu0 2
          %3642 = vperm.xlu0 %3641, %v480
          %v3643 = vpop.permute.xlu0 %3642
          %3645 = vset.pattern.permute.xlu0 2
          %3646 = vperm.xlu0 %3645, %v481
          %v3647 = vpop.permute.xlu0 %3646
          %3649 = vset.pattern.permute.xlu0 2
          %3650 = vperm.xlu0 %3649, %v482
          %v3651 = vpop.permute.xlu0 %3650
          %3653 = vset.pattern.permute.xlu0 2
          %3654 = vperm.xlu0 %3653, %v483
          %v3655 = vpop.permute.xlu0 %3654
          %3657 = vset.pattern.permute.xlu0 2
          %3658 = vperm.xlu0 %3657, %v484
          %v3659 = vpop.permute.xlu0 %3658
          %3661 = vset.pattern.permute.xlu0 2
          %3662 = vperm.xlu0 %3661, %v485
          %v3663 = vpop.permute.xlu0 %3662
          %3665 = vset.pattern.permute.xlu0 2
          %3666 = vperm.xlu0 %3665, %v486
          %v3667 = vpop.permute.xlu0 %3666
          %3669 = vset.pattern.permute.xlu0 2
          %3670 = vperm.xlu0 %3669, %v487
          %v3671 = vpop.permute.xlu0 %3670
          %3673 = vset.pattern.permute.xlu0 2
          %3674 = vperm.xlu0 %3673, %v488
          %v3675 = vpop.permute.xlu0 %3674
          %3677 = vset.pattern.permute.xlu0 2
          %3678 = vperm.xlu0 %3677, %v489
          %v3679 = vpop.permute.xlu0 %3678
          %3681 = vset.pattern.permute.xlu0 2
          %3682 = vperm.xlu0 %3681, %v490
          %v3683 = vpop.permute.xlu0 %3682
          %3685 = vset.pattern.permute.xlu0 2
          %3686 = vperm.xlu0 %3685, %v491
          %v3687 = vpop.permute.xlu0 %3686
          %3689 = vset.pattern.permute.xlu0 2
          %3690 = vperm.xlu0 %3689, %v492
          %v3691 = vpop.permute.xlu0 %3690
          %3693 = vset.pattern.permute.xlu0 2
          %3694 = vperm.xlu0 %3693, %v493
          %v3695 = vpop.permute.xlu0 %3694
          %3697 = vset.pattern.permute.xlu0 2
          %3698 = vperm.xlu0 %3697, %v494
          %v3699 = vpop.permute.xlu0 %3698
          %3701 = vset.pattern.permute.xlu0 2
          %3702 = vperm.xlu0 %3701, %v495
          %v3703 = vpop.permute.xlu0 %3702
          %3705 = vset.pattern.permute.xlu0 2
          %3706 = vperm.xlu0 %3705, %v496
          %v3707 = vpop.permute.xlu0 %3706
          %3709 = vset.pattern.permute.xlu0 2
          %3710 = vperm.xlu0 %3709, %v497
          %v3711 = vpop.permute.xlu0 %3710
          %3713 = vset.pattern.permute.xlu0 2
          %3714 = vperm.xlu0 %3713, %v498
          %v3715 = vpop.permute.xlu0 %3714
          %3717 = vset.pattern.permute.xlu0 2
          %3718 = vperm.xlu0 %3717, %v499
          %v3719 = vpop.permute.xlu0 %3718
          %v3721 = vlaneseq
          %v3722 = vshrl.u32 %v3721, 7
          %v3723 = vsub.s32 2, %v3722
          %v3724 = vrot.slane %v509, %v3723
          %v3725 = vlaneseq
          %v3726 = vshrl.u32 %v3725, 7
          %v3727 = vsub.s32 6, %v3726
          %v3728 = vrot.slane %v509, %v3727
          %v3729 = vlaneseq
          %v3730 = vshrl.u32 %v3729, 7
          %v3731 = vsub.s32 2, %v3730
          %v3732 = vrot.slane %v510, %v3731
          %v3733 = vlaneseq
          %v3734 = vshrl.u32 %v3733, 7
          %v3735 = vsub.s32 6, %v3734
          %v3736 = vrot.slane %v510, %v3735
          %v3741 = vlaneseq
          %v3742 = vshrl.u32 %v3741, 7
          %v3743 = vsub.s32 2, %v3742
          %v3744 = vrot.slane %v3724, %v3743
          %v3745 = vlaneseq
          %v3746 = vshrl.u32 %v3745, 7
          %v3747 = vsub.s32 2, %v3746
          %v3748 = vrot.slane %v3728, %v3747
          %v3749 = vlaneseq
          %v3750 = vshrl.u32 %v3749, 7
          %v3751 = vsub.s32 2, %v3750
          %v3752 = vrot.slane %v3732, %v3751
          %v3753 = vlaneseq
          %v3754 = vshrl.u32 %v3753, 7
          %v3755 = vsub.s32 2, %v3754
          %v3756 = vrot.slane %v3736, %v3755
          %v3757 = vsub.f32 %v3467, %v3744
          %v3758 = vsub.f32 %v3467, %v3748
          %v3759 = vsub.f32 %v3467, %v3752
          %v3760 = vsub.f32 %v3467, %v3756
          %v3761 = vsub.f32 %v3471, %v3744
          %v3762 = vsub.f32 %v3471, %v3748
          %v3763 = vsub.f32 %v3471, %v3752
          %v3764 = vsub.f32 %v3471, %v3756
          %v3765 = vsub.f32 %v3475, %v3744
          %v3766 = vsub.f32 %v3475, %v3748
          %v3767 = vsub.f32 %v3475, %v3752
          %v3768 = vsub.f32 %v3475, %v3756
          %v3769 = vsub.f32 %v3479, %v3744
          %v3770 = vsub.f32 %v3479, %v3748
          %v3771 = vsub.f32 %v3479, %v3752
          %v3772 = vsub.f32 %v3479, %v3756
          %v3773 = vsub.f32 %v3483, %v3744
          %v3774 = vsub.f32 %v3483, %v3748
          %v3775 = vsub.f32 %v3483, %v3752
          %v3776 = vsub.f32 %v3483, %v3756
          %v3777 = vsub.f32 %v3487, %v3744
          %v3778 = vsub.f32 %v3487, %v3748
          %v3779 = vsub.f32 %v3487, %v3752
          %v3780 = vsub.f32 %v3487, %v3756
          %v3781 = vsub.f32 %v3491, %v3744
          %v3782 = vsub.f32 %v3491, %v3748
          %v3783 = vsub.f32 %v3491, %v3752
          %v3784 = vsub.f32 %v3491, %v3756
          %v3785 = vsub.f32 %v3495, %v3744
          %v3786 = vsub.f32 %v3495, %v3748
          %v3787 = vsub.f32 %v3495, %v3752
          %v3788 = vsub.f32 %v3495, %v3756
          %v3789 = vsub.f32 %v3499, %v3744
          %v3790 = vsub.f32 %v3499, %v3748
          %v3791 = vsub.f32 %v3499, %v3752
          %v3792 = vsub.f32 %v3499, %v3756
          %v3793 = vsub.f32 %v3503, %v3744
          %v3794 = vsub.f32 %v3503, %v3748
          %v3795 = vsub.f32 %v3503, %v3752
          %v3796 = vsub.f32 %v3503, %v3756
          %v3797 = vsub.f32 %v3507, %v3744
          %v3798 = vsub.f32 %v3507, %v3748
          %v3799 = vsub.f32 %v3507, %v3752
          %v3800 = vsub.f32 %v3507, %v3756
          %v3801 = vsub.f32 %v3511, %v3744
          %v3802 = vsub.f32 %v3511, %v3748
          %v3803 = vsub.f32 %v3511, %v3752
          %v3804 = vsub.f32 %v3511, %v3756
          %v3805 = vsub.f32 %v3515, %v3744
          %v3806 = vsub.f32 %v3515, %v3748
          %v3807 = vsub.f32 %v3515, %v3752
          %v3808 = vsub.f32 %v3515, %v3756
          %v3809 = vsub.f32 %v3519, %v3744
          %v3810 = vsub.f32 %v3519, %v3748
          %v3811 = vsub.f32 %v3519, %v3752
          %v3812 = vsub.f32 %v3519, %v3756
          %v3813 = vsub.f32 %v3523, %v3744
          %v3814 = vsub.f32 %v3523, %v3748
          %v3815 = vsub.f32 %v3523, %v3752
          %v3816 = vsub.f32 %v3523, %v3756
          %v3817 = vsub.f32 %v3527, %v3744
          %v3818 = vsub.f32 %v3527, %v3748
          %v3819 = vsub.f32 %v3527, %v3752
          %v3820 = vsub.f32 %v3527, %v3756
          %v3821 = vsub.f32 %v3531, %v3744
          %v3822 = vsub.f32 %v3531, %v3748
          %v3823 = vsub.f32 %v3531, %v3752
          %v3824 = vsub.f32 %v3531, %v3756
          %v3825 = vsub.f32 %v3535, %v3744
          %v3826 = vsub.f32 %v3535, %v3748
          %v3827 = vsub.f32 %v3535, %v3752
          %v3828 = vsub.f32 %v3535, %v3756
          %v3829 = vsub.f32 %v3539, %v3744
          %v3830 = vsub.f32 %v3539, %v3748
          %v3831 = vsub.f32 %v3539, %v3752
          %v3832 = vsub.f32 %v3539, %v3756
          %v3833 = vsub.f32 %v3543, %v3744
          %v3834 = vsub.f32 %v3543, %v3748
          %v3835 = vsub.f32 %v3543, %v3752
          %v3836 = vsub.f32 %v3543, %v3756
          %v3837 = vsub.f32 %v3547, %v3744
          %v3838 = vsub.f32 %v3547, %v3748
          %v3839 = vsub.f32 %v3547, %v3752
          %v3840 = vsub.f32 %v3547, %v3756
          %v3841 = vsub.f32 %v3551, %v3744
          %v3842 = vsub.f32 %v3551, %v3748
          %v3843 = vsub.f32 %v3551, %v3752
          %v3844 = vsub.f32 %v3551, %v3756
          %v3845 = vsub.f32 %v3555, %v3744
          %v3846 = vsub.f32 %v3555, %v3748
          %v3847 = vsub.f32 %v3555, %v3752
          %v3848 = vsub.f32 %v3555, %v3756
          %v3849 = vsub.f32 %v3559, %v3744
          %v3850 = vsub.f32 %v3559, %v3748
          %v3851 = vsub.f32 %v3559, %v3752
          %v3852 = vsub.f32 %v3559, %v3756
          %v3853 = vsub.f32 %v3563, %v3744
          %v3854 = vsub.f32 %v3563, %v3748
          %v3855 = vsub.f32 %v3563, %v3752
          %v3856 = vsub.f32 %v3563, %v3756
          %v3857 = vsub.f32 %v3567, %v3744
          %v3858 = vsub.f32 %v3567, %v3748
          %v3859 = vsub.f32 %v3567, %v3752
          %v3860 = vsub.f32 %v3567, %v3756
          %v3861 = vsub.f32 %v3571, %v3744
          %v3862 = vsub.f32 %v3571, %v3748
          %v3863 = vsub.f32 %v3571, %v3752
          %v3864 = vsub.f32 %v3571, %v3756
          %v3865 = vsub.f32 %v3575, %v3744
          %v3866 = vsub.f32 %v3575, %v3748
          %v3867 = vsub.f32 %v3575, %v3752
          %v3868 = vsub.f32 %v3575, %v3756
          %v3869 = vsub.f32 %v3579, %v3744
          %v3870 = vsub.f32 %v3579, %v3748
          %v3871 = vsub.f32 %v3579, %v3752
          %v3872 = vsub.f32 %v3579, %v3756
          %v3873 = vsub.f32 %v3583, %v3744
          %v3874 = vsub.f32 %v3583, %v3748
          %v3875 = vsub.f32 %v3583, %v3752
          %v3876 = vsub.f32 %v3583, %v3756
          %v3877 = vsub.f32 %v3587, %v3744
          %v3878 = vsub.f32 %v3587, %v3748
          %v3879 = vsub.f32 %v3587, %v3752
          %v3880 = vsub.f32 %v3587, %v3756
          %v3881 = vsub.f32 %v3591, %v3744
          %v3882 = vsub.f32 %v3591, %v3748
          %v3883 = vsub.f32 %v3591, %v3752
          %v3884 = vsub.f32 %v3591, %v3756
          %v3885 = vsub.f32 %v3595, %v3744
          %v3886 = vsub.f32 %v3595, %v3748
          %v3887 = vsub.f32 %v3595, %v3752
          %v3888 = vsub.f32 %v3595, %v3756
          %v3889 = vsub.f32 %v3599, %v3744
          %v3890 = vsub.f32 %v3599, %v3748
          %v3891 = vsub.f32 %v3599, %v3752
          %v3892 = vsub.f32 %v3599, %v3756
          %v3893 = vsub.f32 %v3603, %v3744
          %v3894 = vsub.f32 %v3603, %v3748
          %v3895 = vsub.f32 %v3603, %v3752
          %v3896 = vsub.f32 %v3603, %v3756
          %v3897 = vsub.f32 %v3607, %v3744
          %v3898 = vsub.f32 %v3607, %v3748
          %v3899 = vsub.f32 %v3607, %v3752
          %v3900 = vsub.f32 %v3607, %v3756
          %v3901 = vsub.f32 %v3611, %v3744
          %v3902 = vsub.f32 %v3611, %v3748
          %v3903 = vsub.f32 %v3611, %v3752
          %v3904 = vsub.f32 %v3611, %v3756
          %v3905 = vsub.f32 %v3615, %v3744
          %v3906 = vsub.f32 %v3615, %v3748
          %v3907 = vsub.f32 %v3615, %v3752
          %v3908 = vsub.f32 %v3615, %v3756
          %v3909 = vsub.f32 %v3619, %v3744
          %v3910 = vsub.f32 %v3619, %v3748
          %v3911 = vsub.f32 %v3619, %v3752
          %v3912 = vsub.f32 %v3619, %v3756
          %v3913 = vsub.f32 %v3623, %v3744
          %v3914 = vsub.f32 %v3623, %v3748
          %v3915 = vsub.f32 %v3623, %v3752
          %v3916 = vsub.f32 %v3623, %v3756
          %v3917 = vsub.f32 %v3627, %v3744
          %v3918 = vsub.f32 %v3627, %v3748
          %v3919 = vsub.f32 %v3627, %v3752
          %v3920 = vsub.f32 %v3627, %v3756
          %v3921 = vsub.f32 %v3631, %v3744
          %v3922 = vsub.f32 %v3631, %v3748
          %v3923 = vsub.f32 %v3631, %v3752
          %v3924 = vsub.f32 %v3631, %v3756
          %v3925 = vsub.f32 %v3635, %v3744
          %v3926 = vsub.f32 %v3635, %v3748
          %v3927 = vsub.f32 %v3635, %v3752
          %v3928 = vsub.f32 %v3635, %v3756
          %v3929 = vsub.f32 %v3639, %v3744
          %v3930 = vsub.f32 %v3639, %v3748
          %v3931 = vsub.f32 %v3639, %v3752
          %v3932 = vsub.f32 %v3639, %v3756
          %v3933 = vsub.f32 %v3643, %v3744
          %v3934 = vsub.f32 %v3643, %v3748
          %v3935 = vsub.f32 %v3643, %v3752
          %v3936 = vsub.f32 %v3643, %v3756
          %v3937 = vsub.f32 %v3647, %v3744
          %v3938 = vsub.f32 %v3647, %v3748
          %v3939 = vsub.f32 %v3647, %v3752
          %v3940 = vsub.f32 %v3647, %v3756
          %v3941 = vsub.f32 %v3651, %v3744
          %v3942 = vsub.f32 %v3651, %v3748
          %v3943 = vsub.f32 %v3651, %v3752
          %v3944 = vsub.f32 %v3651, %v3756
          %v3945 = vsub.f32 %v3655, %v3744
          %v3946 = vsub.f32 %v3655, %v3748
          %v3947 = vsub.f32 %v3655, %v3752
          %v3948 = vsub.f32 %v3655, %v3756
          %v3949 = vsub.f32 %v3659, %v3744
          %v3950 = vsub.f32 %v3659, %v3748
          %v3951 = vsub.f32 %v3659, %v3752
          %v3952 = vsub.f32 %v3659, %v3756
          %v3953 = vsub.f32 %v3663, %v3744
          %v3954 = vsub.f32 %v3663, %v3748
          %v3955 = vsub.f32 %v3663, %v3752
          %v3956 = vsub.f32 %v3663, %v3756
          %v3957 = vsub.f32 %v3667, %v3744
          %v3958 = vsub.f32 %v3667, %v3748
          %v3959 = vsub.f32 %v3667, %v3752
          %v3960 = vsub.f32 %v3667, %v3756
          %v3961 = vsub.f32 %v3671, %v3744
          %v3962 = vsub.f32 %v3671, %v3748
          %v3963 = vsub.f32 %v3671, %v3752
          %v3964 = vsub.f32 %v3671, %v3756
          %v3965 = vsub.f32 %v3675, %v3744
          %v3966 = vsub.f32 %v3675, %v3748
          %v3967 = vsub.f32 %v3675, %v3752
          %v3968 = vsub.f32 %v3675, %v3756
          %v3969 = vsub.f32 %v3679, %v3744
          %v3970 = vsub.f32 %v3679, %v3748
          %v3971 = vsub.f32 %v3679, %v3752
          %v3972 = vsub.f32 %v3679, %v3756
          %v3973 = vsub.f32 %v3683, %v3744
          %v3974 = vsub.f32 %v3683, %v3748
          %v3975 = vsub.f32 %v3683, %v3752
          %v3976 = vsub.f32 %v3683, %v3756
          %v3977 = vsub.f32 %v3687, %v3744
          %v3978 = vsub.f32 %v3687, %v3748
          %v3979 = vsub.f32 %v3687, %v3752
          %v3980 = vsub.f32 %v3687, %v3756
          %v3981 = vsub.f32 %v3691, %v3744
          %v3982 = vsub.f32 %v3691, %v3748
          %v3983 = vsub.f32 %v3691, %v3752
          %v3984 = vsub.f32 %v3691, %v3756
          %v3985 = vsub.f32 %v3695, %v3744
          %v3986 = vsub.f32 %v3695, %v3748
          %v3987 = vsub.f32 %v3695, %v3752
          %v3988 = vsub.f32 %v3695, %v3756
          %v3989 = vsub.f32 %v3699, %v3744
          %v3990 = vsub.f32 %v3699, %v3748
          %v3991 = vsub.f32 %v3699, %v3752
          %v3992 = vsub.f32 %v3699, %v3756
          %v3993 = vsub.f32 %v3703, %v3744
          %v3994 = vsub.f32 %v3703, %v3748
          %v3995 = vsub.f32 %v3703, %v3752
          %v3996 = vsub.f32 %v3703, %v3756
          %v3997 = vsub.f32 %v3707, %v3744
          %v3998 = vsub.f32 %v3707, %v3748
          %v3999 = vsub.f32 %v3707, %v3752
          %v4000 = vsub.f32 %v3707, %v3756
          %v4001 = vsub.f32 %v3711, %v3744
          %v4002 = vsub.f32 %v3711, %v3748
          %v4003 = vsub.f32 %v3711, %v3752
          %v4004 = vsub.f32 %v3711, %v3756
          %v4005 = vsub.f32 %v3715, %v3744
          %v4006 = vsub.f32 %v3715, %v3748
          %v4007 = vsub.f32 %v3715, %v3752
          %v4008 = vsub.f32 %v3715, %v3756
          %v4009 = vsub.f32 %v3719, %v3744
          %v4010 = vsub.f32 %v3719, %v3748
          %v4011 = vsub.f32 %v3719, %v3752
          %v4012 = vsub.f32 %v3719, %v3756
          %v4013 = vand.u32 2147483647, %v3757
          %v4014 = vand.u32 2147483647, %v3758
          %v4015 = vand.u32 2147483647, %v3759
          %v4016 = vand.u32 2147483647, %v3760
          %v4017 = vand.u32 2147483647, %v3761
          %v4018 = vand.u32 2147483647, %v3762
          %v4019 = vand.u32 2147483647, %v3763
          %v4020 = vand.u32 2147483647, %v3764
          %v4021 = vand.u32 2147483647, %v3765
          %v4022 = vand.u32 2147483647, %v3766
          %v4023 = vand.u32 2147483647, %v3767
          %v4024 = vand.u32 2147483647, %v3768
          %v4025 = vand.u32 2147483647, %v3769
          %v4026 = vand.u32 2147483647, %v3770
          %v4027 = vand.u32 2147483647, %v3771
          %v4028 = vand.u32 2147483647, %v3772
          %v4029 = vand.u32 2147483647, %v3773
          %v4030 = vand.u32 2147483647, %v3774
          %v4031 = vand.u32 2147483647, %v3775
          %v4032 = vand.u32 2147483647, %v3776
          %v4033 = vand.u32 2147483647, %v3777
          %v4034 = vand.u32 2147483647, %v3778
          %v4035 = vand.u32 2147483647, %v3779
          %v4036 = vand.u32 2147483647, %v3780
          %v4037 = vand.u32 2147483647, %v3781
          %v4038 = vand.u32 2147483647, %v3782
          %v4039 = vand.u32 2147483647, %v3783
          %v4040 = vand.u32 2147483647, %v3784
          %v4041 = vand.u32 2147483647, %v3785
          %v4042 = vand.u32 2147483647, %v3786
          %v4043 = vand.u32 2147483647, %v3787
          %v4044 = vand.u32 2147483647, %v3788
          %v4045 = vand.u32 2147483647, %v3789
          %v4046 = vand.u32 2147483647, %v3790
          %v4047 = vand.u32 2147483647, %v3791
          %v4048 = vand.u32 2147483647, %v3792
          %v4049 = vand.u32 2147483647, %v3793
          %v4050 = vand.u32 2147483647, %v3794
          %v4051 = vand.u32 2147483647, %v3795
          %v4052 = vand.u32 2147483647, %v3796
          %v4053 = vand.u32 2147483647, %v3797
          %v4054 = vand.u32 2147483647, %v3798
          %v4055 = vand.u32 2147483647, %v3799
          %v4056 = vand.u32 2147483647, %v3800
          %v4057 = vand.u32 2147483647, %v3801
          %v4058 = vand.u32 2147483647, %v3802
          %v4059 = vand.u32 2147483647, %v3803
          %v4060 = vand.u32 2147483647, %v3804
          %v4061 = vand.u32 2147483647, %v3805
          %v4062 = vand.u32 2147483647, %v3806
          %v4063 = vand.u32 2147483647, %v3807
          %v4064 = vand.u32 2147483647, %v3808
          %v4065 = vand.u32 2147483647, %v3809
          %v4066 = vand.u32 2147483647, %v3810
          %v4067 = vand.u32 2147483647, %v3811
          %v4068 = vand.u32 2147483647, %v3812
          %v4069 = vand.u32 2147483647, %v3813
          %v4070 = vand.u32 2147483647, %v3814
          %v4071 = vand.u32 2147483647, %v3815
          %v4072 = vand.u32 2147483647, %v3816
          %v4073 = vand.u32 2147483647, %v3817
          %v4074 = vand.u32 2147483647, %v3818
          %v4075 = vand.u32 2147483647, %v3819
          %v4076 = vand.u32 2147483647, %v3820
          %v4077 = vand.u32 2147483647, %v3821
          %v4078 = vand.u32 2147483647, %v3822
          %v4079 = vand.u32 2147483647, %v3823
          %v4080 = vand.u32 2147483647, %v3824
          %v4081 = vand.u32 2147483647, %v3825
          %v4082 = vand.u32 2147483647, %v3826
          %v4083 = vand.u32 2147483647, %v3827
          %v4084 = vand.u32 2147483647, %v3828
          %v4085 = vand.u32 2147483647, %v3829
          %v4086 = vand.u32 2147483647, %v3830
          %v4087 = vand.u32 2147483647, %v3831
          %v4088 = vand.u32 2147483647, %v3832
          %v4089 = vand.u32 2147483647, %v3833
          %v4090 = vand.u32 2147483647, %v3834
          %v4091 = vand.u32 2147483647, %v3835
          %v4092 = vand.u32 2147483647, %v3836
          %v4093 = vand.u32 2147483647, %v3837
          %v4094 = vand.u32 2147483647, %v3838
          %v4095 = vand.u32 2147483647, %v3839
          %v4096 = vand.u32 2147483647, %v3840
          %v4097 = vand.u32 2147483647, %v3841
          %v4098 = vand.u32 2147483647, %v3842
          %v4099 = vand.u32 2147483647, %v3843
          %v4100 = vand.u32 2147483647, %v3844
          %v4101 = vand.u32 2147483647, %v3845
          %v4102 = vand.u32 2147483647, %v3846
          %v4103 = vand.u32 2147483647, %v3847
          %v4104 = vand.u32 2147483647, %v3848
          %v4105 = vand.u32 2147483647, %v3849
          %v4106 = vand.u32 2147483647, %v3850
          %v4107 = vand.u32 2147483647, %v3851
          %v4108 = vand.u32 2147483647, %v3852
          %v4109 = vand.u32 2147483647, %v3853
          %v4110 = vand.u32 2147483647, %v3854
          %v4111 = vand.u32 2147483647, %v3855
          %v4112 = vand.u32 2147483647, %v3856
          %v4113 = vand.u32 2147483647, %v3857
          %v4114 = vand.u32 2147483647, %v3858
          %v4115 = vand.u32 2147483647, %v3859
          %v4116 = vand.u32 2147483647, %v3860
          %v4117 = vand.u32 2147483647, %v3861
          %v4118 = vand.u32 2147483647, %v3862
          %v4119 = vand.u32 2147483647, %v3863
          %v4120 = vand.u32 2147483647, %v3864
          %v4121 = vand.u32 2147483647, %v3865
          %v4122 = vand.u32 2147483647, %v3866
          %v4123 = vand.u32 2147483647, %v3867
          %v4124 = vand.u32 2147483647, %v3868
          %v4125 = vand.u32 2147483647, %v3869
          %v4126 = vand.u32 2147483647, %v3870
          %v4127 = vand.u32 2147483647, %v3871
          %v4128 = vand.u32 2147483647, %v3872
          %v4129 = vand.u32 2147483647, %v3873
          %v4130 = vand.u32 2147483647, %v3874
          %v4131 = vand.u32 2147483647, %v3875
          %v4132 = vand.u32 2147483647, %v3876
          %v4133 = vand.u32 2147483647, %v3877
          %v4134 = vand.u32 2147483647, %v3878
          %v4135 = vand.u32 2147483647, %v3879
          %v4136 = vand.u32 2147483647, %v3880
          %v4137 = vand.u32 2147483647, %v3881
          %v4138 = vand.u32 2147483647, %v3882
          %v4139 = vand.u32 2147483647, %v3883
          %v4140 = vand.u32 2147483647, %v3884
          %v4141 = vand.u32 2147483647, %v3885
          %v4142 = vand.u32 2147483647, %v3886
          %v4143 = vand.u32 2147483647, %v3887
          %v4144 = vand.u32 2147483647, %v3888
          %v4145 = vand.u32 2147483647, %v3889
          %v4146 = vand.u32 2147483647, %v3890
          %v4147 = vand.u32 2147483647, %v3891
          %v4148 = vand.u32 2147483647, %v3892
          %v4149 = vand.u32 2147483647, %v3893
          %v4150 = vand.u32 2147483647, %v3894
          %v4151 = vand.u32 2147483647, %v3895
          %v4152 = vand.u32 2147483647, %v3896
          %v4153 = vand.u32 2147483647, %v3897
          %v4154 = vand.u32 2147483647, %v3898
          %v4155 = vand.u32 2147483647, %v3899
          %v4156 = vand.u32 2147483647, %v3900
          %v4157 = vand.u32 2147483647, %v3901
          %v4158 = vand.u32 2147483647, %v3902
          %v4159 = vand.u32 2147483647, %v3903
          %v4160 = vand.u32 2147483647, %v3904
          %v4161 = vand.u32 2147483647, %v3905
          %v4162 = vand.u32 2147483647, %v3906
          %v4163 = vand.u32 2147483647, %v3907
          %v4164 = vand.u32 2147483647, %v3908
          %v4165 = vand.u32 2147483647, %v3909
          %v4166 = vand.u32 2147483647, %v3910
          %v4167 = vand.u32 2147483647, %v3911
          %v4168 = vand.u32 2147483647, %v3912
          %v4169 = vand.u32 2147483647, %v3913
          %v4170 = vand.u32 2147483647, %v3914
          %v4171 = vand.u32 2147483647, %v3915
          %v4172 = vand.u32 2147483647, %v3916
          %v4173 = vand.u32 2147483647, %v3917
          %v4174 = vand.u32 2147483647, %v3918
          %v4175 = vand.u32 2147483647, %v3919
          %v4176 = vand.u32 2147483647, %v3920
          %v4177 = vand.u32 2147483647, %v3921
          %v4178 = vand.u32 2147483647, %v3922
          %v4179 = vand.u32 2147483647, %v3923
          %v4180 = vand.u32 2147483647, %v3924
          %v4181 = vand.u32 2147483647, %v3925
          %v4182 = vand.u32 2147483647, %v3926
          %v4183 = vand.u32 2147483647, %v3927
          %v4184 = vand.u32 2147483647, %v3928
          %v4185 = vand.u32 2147483647, %v3929
          %v4186 = vand.u32 2147483647, %v3930
          %v4187 = vand.u32 2147483647, %v3931
          %v4188 = vand.u32 2147483647, %v3932
          %v4189 = vand.u32 2147483647, %v3933
          %v4190 = vand.u32 2147483647, %v3934
          %v4191 = vand.u32 2147483647, %v3935
          %v4192 = vand.u32 2147483647, %v3936
          %v4193 = vand.u32 2147483647, %v3937
          %v4194 = vand.u32 2147483647, %v3938
          %v4195 = vand.u32 2147483647, %v3939
          %v4196 = vand.u32 2147483647, %v3940
          %v4197 = vand.u32 2147483647, %v3941
          %v4198 = vand.u32 2147483647, %v3942
          %v4199 = vand.u32 2147483647, %v3943
          %v4200 = vand.u32 2147483647, %v3944
          %v4201 = vand.u32 2147483647, %v3945
          %v4202 = vand.u32 2147483647, %v3946
          %v4203 = vand.u32 2147483647, %v3947
          %v4204 = vand.u32 2147483647, %v3948
          %v4205 = vand.u32 2147483647, %v3949
          %v4206 = vand.u32 2147483647, %v3950
          %v4207 = vand.u32 2147483647, %v3951
          %v4208 = vand.u32 2147483647, %v3952
          %v4209 = vand.u32 2147483647, %v3953
          %v4210 = vand.u32 2147483647, %v3954
          %v4211 = vand.u32 2147483647, %v3955
          %v4212 = vand.u32 2147483647, %v3956
          %v4213 = vand.u32 2147483647, %v3957
          %v4214 = vand.u32 2147483647, %v3958
          %v4215 = vand.u32 2147483647, %v3959
          %v4216 = vand.u32 2147483647, %v3960
          %v4217 = vand.u32 2147483647, %v3961
          %v4218 = vand.u32 2147483647, %v3962
          %v4219 = vand.u32 2147483647, %v3963
          %v4220 = vand.u32 2147483647, %v3964
          %v4221 = vand.u32 2147483647, %v3965
          %v4222 = vand.u32 2147483647, %v3966
          %v4223 = vand.u32 2147483647, %v3967
          %v4224 = vand.u32 2147483647, %v3968
          %v4225 = vand.u32 2147483647, %v3969
          %v4226 = vand.u32 2147483647, %v3970
          %v4227 = vand.u32 2147483647, %v3971
          %v4228 = vand.u32 2147483647, %v3972
          %v4229 = vand.u32 2147483647, %v3973
          %v4230 = vand.u32 2147483647, %v3974
          %v4231 = vand.u32 2147483647, %v3975
          %v4232 = vand.u32 2147483647, %v3976
          %v4233 = vand.u32 2147483647, %v3977
          %v4234 = vand.u32 2147483647, %v3978
          %v4235 = vand.u32 2147483647, %v3979
          %v4236 = vand.u32 2147483647, %v3980
          %v4237 = vand.u32 2147483647, %v3981
          %v4238 = vand.u32 2147483647, %v3982
          %v4239 = vand.u32 2147483647, %v3983
          %v4240 = vand.u32 2147483647, %v3984
          %v4241 = vand.u32 2147483647, %v3985
          %v4242 = vand.u32 2147483647, %v3986
          %v4243 = vand.u32 2147483647, %v3987
          %v4244 = vand.u32 2147483647, %v3988
          %v4245 = vand.u32 2147483647, %v3989
          %v4246 = vand.u32 2147483647, %v3990
          %v4247 = vand.u32 2147483647, %v3991
          %v4248 = vand.u32 2147483647, %v3992
          %v4249 = vand.u32 2147483647, %v3993
          %v4250 = vand.u32 2147483647, %v3994
          %v4251 = vand.u32 2147483647, %v3995
          %v4252 = vand.u32 2147483647, %v3996
          %v4253 = vand.u32 2147483647, %v3997
          %v4254 = vand.u32 2147483647, %v3998
          %v4255 = vand.u32 2147483647, %v3999
          %v4256 = vand.u32 2147483647, %v4000
          %v4257 = vand.u32 2147483647, %v4001
          %v4258 = vand.u32 2147483647, %v4002
          %v4259 = vand.u32 2147483647, %v4003
          %v4260 = vand.u32 2147483647, %v4004
          %v4261 = vand.u32 2147483647, %v4005
          %v4262 = vand.u32 2147483647, %v4006
          %v4263 = vand.u32 2147483647, %v4007
          %v4264 = vand.u32 2147483647, %v4008
          %v4265 = vand.u32 2147483647, %v4009
          %v4266 = vand.u32 2147483647, %v4010
          %v4267 = vand.u32 2147483647, %v4011
          %v4268 = vand.u32 2147483647, %v4012
          %v4269 = vsub.f32 1.0, %v4013
          %v4270 = vsub.f32 1.0, %v4014
          %v4271 = vsub.f32 1.0, %v4015
          %v4272 = vsub.f32 1.0, %v4016
          %v4273 = vsub.f32 1.0, %v4017
          %v4274 = vsub.f32 1.0, %v4018
          %v4275 = vsub.f32 1.0, %v4019
          %v4276 = vsub.f32 1.0, %v4020
          %v4277 = vsub.f32 1.0, %v4021
          %v4278 = vsub.f32 1.0, %v4022
          %v4279 = vsub.f32 1.0, %v4023
          %v4280 = vsub.f32 1.0, %v4024
          %v4281 = vsub.f32 1.0, %v4025
          %v4282 = vsub.f32 1.0, %v4026
          %v4283 = vsub.f32 1.0, %v4027
          %v4284 = vsub.f32 1.0, %v4028
          %v4285 = vsub.f32 1.0, %v4029
          %v4286 = vsub.f32 1.0, %v4030
          %v4287 = vsub.f32 1.0, %v4031
          %v4288 = vsub.f32 1.0, %v4032
          %v4289 = vsub.f32 1.0, %v4033
          %v4290 = vsub.f32 1.0, %v4034
          %v4291 = vsub.f32 1.0, %v4035
          %v4292 = vsub.f32 1.0, %v4036
          %v4293 = vsub.f32 1.0, %v4037
          %v4294 = vsub.f32 1.0, %v4038
          %v4295 = vsub.f32 1.0, %v4039
          %v4296 = vsub.f32 1.0, %v4040
          %v4297 = vsub.f32 1.0, %v4041
          %v4298 = vsub.f32 1.0, %v4042
          %v4299 = vsub.f32 1.0, %v4043
          %v4300 = vsub.f32 1.0, %v4044
          %v4301 = vsub.f32 1.0, %v4045
          %v4302 = vsub.f32 1.0, %v4046
          %v4303 = vsub.f32 1.0, %v4047
          %v4304 = vsub.f32 1.0, %v4048
          %v4305 = vsub.f32 1.0, %v4049
          %v4306 = vsub.f32 1.0, %v4050
          %v4307 = vsub.f32 1.0, %v4051
          %v4308 = vsub.f32 1.0, %v4052
          %v4309 = vsub.f32 1.0, %v4053
          %v4310 = vsub.f32 1.0, %v4054
          %v4311 = vsub.f32 1.0, %v4055
          %v4312 = vsub.f32 1.0, %v4056
          %v4313 = vsub.f32 1.0, %v4057
          %v4314 = vsub.f32 1.0, %v4058
          %v4315 = vsub.f32 1.0, %v4059
          %v4316 = vsub.f32 1.0, %v4060
          %v4317 = vsub.f32 1.0, %v4061
          %v4318 = vsub.f32 1.0, %v4062
          %v4319 = vsub.f32 1.0, %v4063
          %v4320 = vsub.f32 1.0, %v4064
          %v4321 = vsub.f32 1.0, %v4065
          %v4322 = vsub.f32 1.0, %v4066
          %v4323 = vsub.f32 1.0, %v4067
          %v4324 = vsub.f32 1.0, %v4068
          %v4325 = vsub.f32 1.0, %v4069
          %v4326 = vsub.f32 1.0, %v4070
          %v4327 = vsub.f32 1.0, %v4071
          %v4328 = vsub.f32 1.0, %v4072
          %v4329 = vsub.f32 1.0, %v4073
          %v4330 = vsub.f32 1.0, %v4074
          %v4331 = vsub.f32 1.0, %v4075
          %v4332 = vsub.f32 1.0, %v4076
          %v4333 = vsub.f32 1.0, %v4077
          %v4334 = vsub.f32 1.0, %v4078
          %v4335 = vsub.f32 1.0, %v4079
          %v4336 = vsub.f32 1.0, %v4080
          %v4337 = vsub.f32 1.0, %v4081
          %v4338 = vsub.f32 1.0, %v4082
          %v4339 = vsub.f32 1.0, %v4083
          %v4340 = vsub.f32 1.0, %v4084
          %v4341 = vsub.f32 1.0, %v4085
          %v4342 = vsub.f32 1.0, %v4086
          %v4343 = vsub.f32 1.0, %v4087
          %v4344 = vsub.f32 1.0, %v4088
          %v4345 = vsub.f32 1.0, %v4089
          %v4346 = vsub.f32 1.0, %v4090
          %v4347 = vsub.f32 1.0, %v4091
          %v4348 = vsub.f32 1.0, %v4092
          %v4349 = vsub.f32 1.0, %v4093
          %v4350 = vsub.f32 1.0, %v4094
          %v4351 = vsub.f32 1.0, %v4095
          %v4352 = vsub.f32 1.0, %v4096
          %v4353 = vsub.f32 1.0, %v4097
          %v4354 = vsub.f32 1.0, %v4098
          %v4355 = vsub.f32 1.0, %v4099
          %v4356 = vsub.f32 1.0, %v4100
          %v4357 = vsub.f32 1.0, %v4101
          %v4358 = vsub.f32 1.0, %v4102
          %v4359 = vsub.f32 1.0, %v4103
          %v4360 = vsub.f32 1.0, %v4104
          %v4361 = vsub.f32 1.0, %v4105
          %v4362 = vsub.f32 1.0, %v4106
          %v4363 = vsub.f32 1.0, %v4107
          %v4364 = vsub.f32 1.0, %v4108
          %v4365 = vsub.f32 1.0, %v4109
          %v4366 = vsub.f32 1.0, %v4110
          %v4367 = vsub.f32 1.0, %v4111
          %v4368 = vsub.f32 1.0, %v4112
          %v4369 = vsub.f32 1.0, %v4113
          %v4370 = vsub.f32 1.0, %v4114
          %v4371 = vsub.f32 1.0, %v4115
          %v4372 = vsub.f32 1.0, %v4116
          %v4373 = vsub.f32 1.0, %v4117
          %v4374 = vsub.f32 1.0, %v4118
          %v4375 = vsub.f32 1.0, %v4119
          %v4376 = vsub.f32 1.0, %v4120
          %v4377 = vsub.f32 1.0, %v4121
          %v4378 = vsub.f32 1.0, %v4122
          %v4379 = vsub.f32 1.0, %v4123
          %v4380 = vsub.f32 1.0, %v4124
          %v4381 = vsub.f32 1.0, %v4125
          %v4382 = vsub.f32 1.0, %v4126
          %v4383 = vsub.f32 1.0, %v4127
          %v4384 = vsub.f32 1.0, %v4128
          %v4385 = vsub.f32 1.0, %v4129
          %v4386 = vsub.f32 1.0, %v4130
          %v4387 = vsub.f32 1.0, %v4131
          %v4388 = vsub.f32 1.0, %v4132
          %v4389 = vsub.f32 1.0, %v4133
          %v4390 = vsub.f32 1.0, %v4134
          %v4391 = vsub.f32 1.0, %v4135
          %v4392 = vsub.f32 1.0, %v4136
          %v4393 = vsub.f32 1.0, %v4137
          %v4394 = vsub.f32 1.0, %v4138
          %v4395 = vsub.f32 1.0, %v4139
          %v4396 = vsub.f32 1.0, %v4140
          %v4397 = vsub.f32 1.0, %v4141
          %v4398 = vsub.f32 1.0, %v4142
          %v4399 = vsub.f32 1.0, %v4143
          %v4400 = vsub.f32 1.0, %v4144
          %v4401 = vsub.f32 1.0, %v4145
          %v4402 = vsub.f32 1.0, %v4146
          %v4403 = vsub.f32 1.0, %v4147
          %v4404 = vsub.f32 1.0, %v4148
          %v4405 = vsub.f32 1.0, %v4149
          %v4406 = vsub.f32 1.0, %v4150
          %v4407 = vsub.f32 1.0, %v4151
          %v4408 = vsub.f32 1.0, %v4152
          %v4409 = vsub.f32 1.0, %v4153
          %v4410 = vsub.f32 1.0, %v4154
          %v4411 = vsub.f32 1.0, %v4155
          %v4412 = vsub.f32 1.0, %v4156
          %v4413 = vsub.f32 1.0, %v4157
          %v4414 = vsub.f32 1.0, %v4158
          %v4415 = vsub.f32 1.0, %v4159
          %v4416 = vsub.f32 1.0, %v4160
          %v4417 = vsub.f32 1.0, %v4161
          %v4418 = vsub.f32 1.0, %v4162
          %v4419 = vsub.f32 1.0, %v4163
          %v4420 = vsub.f32 1.0, %v4164
          %v4421 = vsub.f32 1.0, %v4165
          %v4422 = vsub.f32 1.0, %v4166
          %v4423 = vsub.f32 1.0, %v4167
          %v4424 = vsub.f32 1.0, %v4168
          %v4425 = vsub.f32 1.0, %v4169
          %v4426 = vsub.f32 1.0, %v4170
          %v4427 = vsub.f32 1.0, %v4171
          %v4428 = vsub.f32 1.0, %v4172
          %v4429 = vsub.f32 1.0, %v4173
          %v4430 = vsub.f32 1.0, %v4174
          %v4431 = vsub.f32 1.0, %v4175
          %v4432 = vsub.f32 1.0, %v4176
          %v4433 = vsub.f32 1.0, %v4177
          %v4434 = vsub.f32 1.0, %v4178
          %v4435 = vsub.f32 1.0, %v4179
          %v4436 = vsub.f32 1.0, %v4180
          %v4437 = vsub.f32 1.0, %v4181
          %v4438 = vsub.f32 1.0, %v4182
          %v4439 = vsub.f32 1.0, %v4183
          %v4440 = vsub.f32 1.0, %v4184
          %v4441 = vsub.f32 1.0, %v4185
          %v4442 = vsub.f32 1.0, %v4186
          %v4443 = vsub.f32 1.0, %v4187
          %v4444 = vsub.f32 1.0, %v4188
          %v4445 = vsub.f32 1.0, %v4189
          %v4446 = vsub.f32 1.0, %v4190
          %v4447 = vsub.f32 1.0, %v4191
          %v4448 = vsub.f32 1.0, %v4192
          %v4449 = vsub.f32 1.0, %v4193
          %v4450 = vsub.f32 1.0, %v4194
          %v4451 = vsub.f32 1.0, %v4195
          %v4452 = vsub.f32 1.0, %v4196
          %v4453 = vsub.f32 1.0, %v4197
          %v4454 = vsub.f32 1.0, %v4198
          %v4455 = vsub.f32 1.0, %v4199
          %v4456 = vsub.f32 1.0, %v4200
          %v4457 = vsub.f32 1.0, %v4201
          %v4458 = vsub.f32 1.0, %v4202
          %v4459 = vsub.f32 1.0, %v4203
          %v4460 = vsub.f32 1.0, %v4204
          %v4461 = vsub.f32 1.0, %v4205
          %v4462 = vsub.f32 1.0, %v4206
          %v4463 = vsub.f32 1.0, %v4207
          %v4464 = vsub.f32 1.0, %v4208
          %v4465 = vsub.f32 1.0, %v4209
          %v4466 = vsub.f32 1.0, %v4210
          %v4467 = vsub.f32 1.0, %v4211
          %v4468 = vsub.f32 1.0, %v4212
          %v4469 = vsub.f32 1.0, %v4213
          %v4470 = vsub.f32 1.0, %v4214
          %v4471 = vsub.f32 1.0, %v4215
          %v4472 = vsub.f32 1.0, %v4216
          %v4473 = vsub.f32 1.0, %v4217
          %v4474 = vsub.f32 1.0, %v4218
          %v4475 = vsub.f32 1.0, %v4219
          %v4476 = vsub.f32 1.0, %v4220
          %v4477 = vsub.f32 1.0, %v4221
          %v4478 = vsub.f32 1.0, %v4222
          %v4479 = vsub.f32 1.0, %v4223
          %v4480 = vsub.f32 1.0, %v4224
          %v4481 = vsub.f32 1.0, %v4225
          %v4482 = vsub.f32 1.0, %v4226
          %v4483 = vsub.f32 1.0, %v4227
          %v4484 = vsub.f32 1.0, %v4228
          %v4485 = vsub.f32 1.0, %v4229
          %v4486 = vsub.f32 1.0, %v4230
          %v4487 = vsub.f32 1.0, %v4231
          %v4488 = vsub.f32 1.0, %v4232
          %v4489 = vsub.f32 1.0, %v4233
          %v4490 = vsub.f32 1.0, %v4234
          %v4491 = vsub.f32 1.0, %v4235
          %v4492 = vsub.f32 1.0, %v4236
          %v4493 = vsub.f32 1.0, %v4237
          %v4494 = vsub.f32 1.0, %v4238
          %v4495 = vsub.f32 1.0, %v4239
          %v4496 = vsub.f32 1.0, %v4240
          %v4497 = vsub.f32 1.0, %v4241
          %v4498 = vsub.f32 1.0, %v4242
          %v4499 = vsub.f32 1.0, %v4243
          %v4500 = vsub.f32 1.0, %v4244
          %v4501 = vsub.f32 1.0, %v4245
          %v4502 = vsub.f32 1.0, %v4246
          %v4503 = vsub.f32 1.0, %v4247
          %v4504 = vsub.f32 1.0, %v4248
          %v4505 = vsub.f32 1.0, %v4249
          %v4506 = vsub.f32 1.0, %v4250
          %v4507 = vsub.f32 1.0, %v4251
          %v4508 = vsub.f32 1.0, %v4252
          %v4509 = vsub.f32 1.0, %v4253
          %v4510 = vsub.f32 1.0, %v4254
          %v4511 = vsub.f32 1.0, %v4255
          %v4512 = vsub.f32 1.0, %v4256
          %v4513 = vsub.f32 1.0, %v4257
          %v4514 = vsub.f32 1.0, %v4258
          %v4515 = vsub.f32 1.0, %v4259
          %v4516 = vsub.f32 1.0, %v4260
          %v4517 = vsub.f32 1.0, %v4261
          %v4518 = vsub.f32 1.0, %v4262
          %v4519 = vsub.f32 1.0, %v4263
          %v4520 = vsub.f32 1.0, %v4264
          %v4521 = vsub.f32 1.0, %v4265
          %v4522 = vsub.f32 1.0, %v4266
          %v4523 = vsub.f32 1.0, %v4267
          %v4524 = vsub.f32 1.0, %v4268
          %v4525 = vmax.f32 %v4269, 0.0
          %v4526 = vmax.f32 %v4270, 0.0
          %v4527 = vmax.f32 %v4271, 0.0
          %v4528 = vmax.f32 %v4272, 0.0
          %v4529 = vmax.f32 %v4273, 0.0
          %v4530 = vmax.f32 %v4274, 0.0
          %v4531 = vmax.f32 %v4275, 0.0
          %v4532 = vmax.f32 %v4276, 0.0
          %v4533 = vmax.f32 %v4277, 0.0
          %v4534 = vmax.f32 %v4278, 0.0
          %v4535 = vmax.f32 %v4279, 0.0
          %v4536 = vmax.f32 %v4280, 0.0
          %v4537 = vmax.f32 %v4281, 0.0
          %v4538 = vmax.f32 %v4282, 0.0
          %v4539 = vmax.f32 %v4283, 0.0
          %v4540 = vmax.f32 %v4284, 0.0
          %v4541 = vmax.f32 %v4285, 0.0
          %v4542 = vmax.f32 %v4286, 0.0
          %v4543 = vmax.f32 %v4287, 0.0
          %v4544 = vmax.f32 %v4288, 0.0
          %v4545 = vmax.f32 %v4289, 0.0
          %v4546 = vmax.f32 %v4290, 0.0
          %v4547 = vmax.f32 %v4291, 0.0
          %v4548 = vmax.f32 %v4292, 0.0
          %v4549 = vmax.f32 %v4293, 0.0
          %v4550 = vmax.f32 %v4294, 0.0
          %v4551 = vmax.f32 %v4295, 0.0
          %v4552 = vmax.f32 %v4296, 0.0
          %v4553 = vmax.f32 %v4297, 0.0
          %v4554 = vmax.f32 %v4298, 0.0
          %v4555 = vmax.f32 %v4299, 0.0
          %v4556 = vmax.f32 %v4300, 0.0
          %v4557 = vmax.f32 %v4301, 0.0
          %v4558 = vmax.f32 %v4302, 0.0
          %v4559 = vmax.f32 %v4303, 0.0
          %v4560 = vmax.f32 %v4304, 0.0
          %v4561 = vmax.f32 %v4305, 0.0
          %v4562 = vmax.f32 %v4306, 0.0
          %v4563 = vmax.f32 %v4307, 0.0
          %v4564 = vmax.f32 %v4308, 0.0
          %v4565 = vmax.f32 %v4309, 0.0
          %v4566 = vmax.f32 %v4310, 0.0
          %v4567 = vmax.f32 %v4311, 0.0
          %v4568 = vmax.f32 %v4312, 0.0
          %v4569 = vmax.f32 %v4313, 0.0
          %v4570 = vmax.f32 %v4314, 0.0
          %v4571 = vmax.f32 %v4315, 0.0
          %v4572 = vmax.f32 %v4316, 0.0
          %v4573 = vmax.f32 %v4317, 0.0
          %v4574 = vmax.f32 %v4318, 0.0
          %v4575 = vmax.f32 %v4319, 0.0
          %v4576 = vmax.f32 %v4320, 0.0
          %v4577 = vmax.f32 %v4321, 0.0
          %v4578 = vmax.f32 %v4322, 0.0
          %v4579 = vmax.f32 %v4323, 0.0
          %v4580 = vmax.f32 %v4324, 0.0
          %v4581 = vmax.f32 %v4325, 0.0
          %v4582 = vmax.f32 %v4326, 0.0
          %v4583 = vmax.f32 %v4327, 0.0
          %v4584 = vmax.f32 %v4328, 0.0
          %v4585 = vmax.f32 %v4329, 0.0
          %v4586 = vmax.f32 %v4330, 0.0
          %v4587 = vmax.f32 %v4331, 0.0
          %v4588 = vmax.f32 %v4332, 0.0
          %v4589 = vmax.f32 %v4333, 0.0
          %v4590 = vmax.f32 %v4334, 0.0
          %v4591 = vmax.f32 %v4335, 0.0
          %v4592 = vmax.f32 %v4336, 0.0
          %v4593 = vmax.f32 %v4337, 0.0
          %v4594 = vmax.f32 %v4338, 0.0
          %v4595 = vmax.f32 %v4339, 0.0
          %v4596 = vmax.f32 %v4340, 0.0
          %v4597 = vmax.f32 %v4341, 0.0
          %v4598 = vmax.f32 %v4342, 0.0
          %v4599 = vmax.f32 %v4343, 0.0
          %v4600 = vmax.f32 %v4344, 0.0
          %v4601 = vmax.f32 %v4345, 0.0
          %v4602 = vmax.f32 %v4346, 0.0
          %v4603 = vmax.f32 %v4347, 0.0
          %v4604 = vmax.f32 %v4348, 0.0
          %v4605 = vmax.f32 %v4349, 0.0
          %v4606 = vmax.f32 %v4350, 0.0
          %v4607 = vmax.f32 %v4351, 0.0
          %v4608 = vmax.f32 %v4352, 0.0
          %v4609 = vmax.f32 %v4353, 0.0
          %v4610 = vmax.f32 %v4354, 0.0
          %v4611 = vmax.f32 %v4355, 0.0
          %v4612 = vmax.f32 %v4356, 0.0
          %v4613 = vmax.f32 %v4357, 0.0
          %v4614 = vmax.f32 %v4358, 0.0
          %v4615 = vmax.f32 %v4359, 0.0
          %v4616 = vmax.f32 %v4360, 0.0
          %v4617 = vmax.f32 %v4361, 0.0
          %v4618 = vmax.f32 %v4362, 0.0
          %v4619 = vmax.f32 %v4363, 0.0
          %v4620 = vmax.f32 %v4364, 0.0
          %v4621 = vmax.f32 %v4365, 0.0
          %v4622 = vmax.f32 %v4366, 0.0
          %v4623 = vmax.f32 %v4367, 0.0
          %v4624 = vmax.f32 %v4368, 0.0
          %v4625 = vmax.f32 %v4369, 0.0
          %v4626 = vmax.f32 %v4370, 0.0
          %v4627 = vmax.f32 %v4371, 0.0
          %v4628 = vmax.f32 %v4372, 0.0
          %v4629 = vmax.f32 %v4373, 0.0
          %v4630 = vmax.f32 %v4374, 0.0
          %v4631 = vmax.f32 %v4375, 0.0
          %v4632 = vmax.f32 %v4376, 0.0
          %v4633 = vmax.f32 %v4377, 0.0
          %v4634 = vmax.f32 %v4378, 0.0
          %v4635 = vmax.f32 %v4379, 0.0
          %v4636 = vmax.f32 %v4380, 0.0
          %v4637 = vmax.f32 %v4381, 0.0
          %v4638 = vmax.f32 %v4382, 0.0
          %v4639 = vmax.f32 %v4383, 0.0
          %v4640 = vmax.f32 %v4384, 0.0
          %v4641 = vmax.f32 %v4385, 0.0
          %v4642 = vmax.f32 %v4386, 0.0
          %v4643 = vmax.f32 %v4387, 0.0
          %v4644 = vmax.f32 %v4388, 0.0
          %v4645 = vmax.f32 %v4389, 0.0
          %v4646 = vmax.f32 %v4390, 0.0
          %v4647 = vmax.f32 %v4391, 0.0
          %v4648 = vmax.f32 %v4392, 0.0
          %v4649 = vmax.f32 %v4393, 0.0
          %v4650 = vmax.f32 %v4394, 0.0
          %v4651 = vmax.f32 %v4395, 0.0
          %v4652 = vmax.f32 %v4396, 0.0
          %v4653 = vmax.f32 %v4397, 0.0
          %v4654 = vmax.f32 %v4398, 0.0
          %v4655 = vmax.f32 %v4399, 0.0
          %v4656 = vmax.f32 %v4400, 0.0
          %v4657 = vmax.f32 %v4401, 0.0
          %v4658 = vmax.f32 %v4402, 0.0
          %v4659 = vmax.f32 %v4403, 0.0
          %v4660 = vmax.f32 %v4404, 0.0
          %v4661 = vmax.f32 %v4405, 0.0
          %v4662 = vmax.f32 %v4406, 0.0
          %v4663 = vmax.f32 %v4407, 0.0
          %v4664 = vmax.f32 %v4408, 0.0
          %v4665 = vmax.f32 %v4409, 0.0
          %v4666 = vmax.f32 %v4410, 0.0
          %v4667 = vmax.f32 %v4411, 0.0
          %v4668 = vmax.f32 %v4412, 0.0
          %v4669 = vmax.f32 %v4413, 0.0
          %v4670 = vmax.f32 %v4414, 0.0
          %v4671 = vmax.f32 %v4415, 0.0
          %v4672 = vmax.f32 %v4416, 0.0
          %v4673 = vmax.f32 %v4417, 0.0
          %v4674 = vmax.f32 %v4418, 0.0
          %v4675 = vmax.f32 %v4419, 0.0
          %v4676 = vmax.f32 %v4420, 0.0
          %v4677 = vmax.f32 %v4421, 0.0
          %v4678 = vmax.f32 %v4422, 0.0
          %v4679 = vmax.f32 %v4423, 0.0
          %v4680 = vmax.f32 %v4424, 0.0
          %v4681 = vmax.f32 %v4425, 0.0
          %v4682 = vmax.f32 %v4426, 0.0
          %v4683 = vmax.f32 %v4427, 0.0
          %v4684 = vmax.f32 %v4428, 0.0
          %v4685 = vmax.f32 %v4429, 0.0
          %v4686 = vmax.f32 %v4430, 0.0
          %v4687 = vmax.f32 %v4431, 0.0
          %v4688 = vmax.f32 %v4432, 0.0
          %v4689 = vmax.f32 %v4433, 0.0
          %v4690 = vmax.f32 %v4434, 0.0
          %v4691 = vmax.f32 %v4435, 0.0
          %v4692 = vmax.f32 %v4436, 0.0
          %v4693 = vmax.f32 %v4437, 0.0
          %v4694 = vmax.f32 %v4438, 0.0
          %v4695 = vmax.f32 %v4439, 0.0
          %v4696 = vmax.f32 %v4440, 0.0
          %v4697 = vmax.f32 %v4441, 0.0
          %v4698 = vmax.f32 %v4442, 0.0
          %v4699 = vmax.f32 %v4443, 0.0
          %v4700 = vmax.f32 %v4444, 0.0
          %v4701 = vmax.f32 %v4445, 0.0
          %v4702 = vmax.f32 %v4446, 0.0
          %v4703 = vmax.f32 %v4447, 0.0
          %v4704 = vmax.f32 %v4448, 0.0
          %v4705 = vmax.f32 %v4449, 0.0
          %v4706 = vmax.f32 %v4450, 0.0
          %v4707 = vmax.f32 %v4451, 0.0
          %v4708 = vmax.f32 %v4452, 0.0
          %v4709 = vmax.f32 %v4453, 0.0
          %v4710 = vmax.f32 %v4454, 0.0
          %v4711 = vmax.f32 %v4455, 0.0
          %v4712 = vmax.f32 %v4456, 0.0
          %v4713 = vmax.f32 %v4457, 0.0
          %v4714 = vmax.f32 %v4458, 0.0
          %v4715 = vmax.f32 %v4459, 0.0
          %v4716 = vmax.f32 %v4460, 0.0
          %v4717 = vmax.f32 %v4461, 0.0
          %v4718 = vmax.f32 %v4462, 0.0
          %v4719 = vmax.f32 %v4463, 0.0
          %v4720 = vmax.f32 %v4464, 0.0
          %v4721 = vmax.f32 %v4465, 0.0
          %v4722 = vmax.f32 %v4466, 0.0
          %v4723 = vmax.f32 %v4467, 0.0
          %v4724 = vmax.f32 %v4468, 0.0
          %v4725 = vmax.f32 %v4469, 0.0
          %v4726 = vmax.f32 %v4470, 0.0
          %v4727 = vmax.f32 %v4471, 0.0
          %v4728 = vmax.f32 %v4472, 0.0
          %v4729 = vmax.f32 %v4473, 0.0
          %v4730 = vmax.f32 %v4474, 0.0
          %v4731 = vmax.f32 %v4475, 0.0
          %v4732 = vmax.f32 %v4476, 0.0
          %v4733 = vmax.f32 %v4477, 0.0
          %v4734 = vmax.f32 %v4478, 0.0
          %v4735 = vmax.f32 %v4479, 0.0
          %v4736 = vmax.f32 %v4480, 0.0
          %v4737 = vmax.f32 %v4481, 0.0
          %v4738 = vmax.f32 %v4482, 0.0
          %v4739 = vmax.f32 %v4483, 0.0
          %v4740 = vmax.f32 %v4484, 0.0
          %v4741 = vmax.f32 %v4485, 0.0
          %v4742 = vmax.f32 %v4486, 0.0
          %v4743 = vmax.f32 %v4487, 0.0
          %v4744 = vmax.f32 %v4488, 0.0
          %v4745 = vmax.f32 %v4489, 0.0
          %v4746 = vmax.f32 %v4490, 0.0
          %v4747 = vmax.f32 %v4491, 0.0
          %v4748 = vmax.f32 %v4492, 0.0
          %v4749 = vmax.f32 %v4493, 0.0
          %v4750 = vmax.f32 %v4494, 0.0
          %v4751 = vmax.f32 %v4495, 0.0
          %v4752 = vmax.f32 %v4496, 0.0
          %v4753 = vmax.f32 %v4497, 0.0
          %v4754 = vmax.f32 %v4498, 0.0
          %v4755 = vmax.f32 %v4499, 0.0
          %v4756 = vmax.f32 %v4500, 0.0
          %v4757 = vmax.f32 %v4501, 0.0
          %v4758 = vmax.f32 %v4502, 0.0
          %v4759 = vmax.f32 %v4503, 0.0
          %v4760 = vmax.f32 %v4504, 0.0
          %v4761 = vmax.f32 %v4505, 0.0
          %v4762 = vmax.f32 %v4506, 0.0
          %v4763 = vmax.f32 %v4507, 0.0
          %v4764 = vmax.f32 %v4508, 0.0
          %v4765 = vmax.f32 %v4509, 0.0
          %v4766 = vmax.f32 %v4510, 0.0
          %v4767 = vmax.f32 %v4511, 0.0
          %v4768 = vmax.f32 %v4512, 0.0
          %v4769 = vmax.f32 %v4513, 0.0
          %v4770 = vmax.f32 %v4514, 0.0
          %v4771 = vmax.f32 %v4515, 0.0
          %v4772 = vmax.f32 %v4516, 0.0
          %v4773 = vmax.f32 %v4517, 0.0
          %v4774 = vmax.f32 %v4518, 0.0
          %v4775 = vmax.f32 %v4519, 0.0
          %v4776 = vmax.f32 %v4520, 0.0
          %v4777 = vmax.f32 %v4521, 0.0
          %v4778 = vmax.f32 %v4522, 0.0
          %v4779 = vmax.f32 %v4523, 0.0
          %v4780 = vmax.f32 %v4524, 0.0
          %v4781 = vmul.f32 %v3209, %v4525
          %v4782 = vmul.f32 %v3210, %v4526
          %v4783 = vmul.f32 %v3211, %v4527
          %v4784 = vmul.f32 %v3212, %v4528
          %v4785 = vmul.f32 %v3213, %v4529
          %v4786 = vmul.f32 %v3214, %v4530
          %v4787 = vmul.f32 %v3215, %v4531
          %v4788 = vmul.f32 %v3216, %v4532
          %v4789 = vmul.f32 %v3217, %v4533
          %v4790 = vmul.f32 %v3218, %v4534
          %v4791 = vmul.f32 %v3219, %v4535
          %v4792 = vmul.f32 %v3220, %v4536
          %v4793 = vmul.f32 %v3221, %v4537
          %v4794 = vmul.f32 %v3222, %v4538
          %v4795 = vmul.f32 %v3223, %v4539
          %v4796 = vmul.f32 %v3224, %v4540
          %v4797 = vmul.f32 %v3225, %v4541
          %v4798 = vmul.f32 %v3226, %v4542
          %v4799 = vmul.f32 %v3227, %v4543
          %v4800 = vmul.f32 %v3228, %v4544
          %v4801 = vmul.f32 %v3229, %v4545
          %v4802 = vmul.f32 %v3230, %v4546
          %v4803 = vmul.f32 %v3231, %v4547
          %v4804 = vmul.f32 %v3232, %v4548
          %v4805 = vmul.f32 %v3233, %v4549
          %v4806 = vmul.f32 %v3234, %v4550
          %v4807 = vmul.f32 %v3235, %v4551
          %v4808 = vmul.f32 %v3236, %v4552
          %v4809 = vmul.f32 %v3237, %v4553
          %v4810 = vmul.f32 %v3238, %v4554
          %v4811 = vmul.f32 %v3239, %v4555
          %v4812 = vmul.f32 %v3240, %v4556
          %v4813 = vmul.f32 %v3241, %v4557
          %v4814 = vmul.f32 %v3242, %v4558
          %v4815 = vmul.f32 %v3243, %v4559
          %v4816 = vmul.f32 %v3244, %v4560
          %v4817 = vmul.f32 %v3245, %v4561
          %v4818 = vmul.f32 %v3246, %v4562
          %v4819 = vmul.f32 %v3247, %v4563
          %v4820 = vmul.f32 %v3248, %v4564
          %v4821 = vmul.f32 %v3249, %v4565
          %v4822 = vmul.f32 %v3250, %v4566
          %v4823 = vmul.f32 %v3251, %v4567
          %v4824 = vmul.f32 %v3252, %v4568
          %v4825 = vmul.f32 %v3253, %v4569
          %v4826 = vmul.f32 %v3254, %v4570
          %v4827 = vmul.f32 %v3255, %v4571
          %v4828 = vmul.f32 %v3256, %v4572
          %v4829 = vmul.f32 %v3257, %v4573
          %v4830 = vmul.f32 %v3258, %v4574
          %v4831 = vmul.f32 %v3259, %v4575
          %v4832 = vmul.f32 %v3260, %v4576
          %v4833 = vmul.f32 %v3261, %v4577
          %v4834 = vmul.f32 %v3262, %v4578
          %v4835 = vmul.f32 %v3263, %v4579
          %v4836 = vmul.f32 %v3264, %v4580
          %v4837 = vmul.f32 %v3265, %v4581
          %v4838 = vmul.f32 %v3266, %v4582
          %v4839 = vmul.f32 %v3267, %v4583
          %v4840 = vmul.f32 %v3268, %v4584
          %v4841 = vmul.f32 %v3269, %v4585
          %v4842 = vmul.f32 %v3270, %v4586
          %v4843 = vmul.f32 %v3271, %v4587
          %v4844 = vmul.f32 %v3272, %v4588
          %v4845 = vmul.f32 %v3273, %v4589
          %v4846 = vmul.f32 %v3274, %v4590
          %v4847 = vmul.f32 %v3275, %v4591
          %v4848 = vmul.f32 %v3276, %v4592
          %v4849 = vmul.f32 %v3277, %v4593
          %v4850 = vmul.f32 %v3278, %v4594
          %v4851 = vmul.f32 %v3279, %v4595
          %v4852 = vmul.f32 %v3280, %v4596
          %v4853 = vmul.f32 %v3281, %v4597
          %v4854 = vmul.f32 %v3282, %v4598
          %v4855 = vmul.f32 %v3283, %v4599
          %v4856 = vmul.f32 %v3284, %v4600
          %v4857 = vmul.f32 %v3285, %v4601
          %v4858 = vmul.f32 %v3286, %v4602
          %v4859 = vmul.f32 %v3287, %v4603
          %v4860 = vmul.f32 %v3288, %v4604
          %v4861 = vmul.f32 %v3289, %v4605
          %v4862 = vmul.f32 %v3290, %v4606
          %v4863 = vmul.f32 %v3291, %v4607
          %v4864 = vmul.f32 %v3292, %v4608
          %v4865 = vmul.f32 %v3293, %v4609
          %v4866 = vmul.f32 %v3294, %v4610
          %v4867 = vmul.f32 %v3295, %v4611
          %v4868 = vmul.f32 %v3296, %v4612
          %v4869 = vmul.f32 %v3297, %v4613
          %v4870 = vmul.f32 %v3298, %v4614
          %v4871 = vmul.f32 %v3299, %v4615
          %v4872 = vmul.f32 %v3300, %v4616
          %v4873 = vmul.f32 %v3301, %v4617
          %v4874 = vmul.f32 %v3302, %v4618
          %v4875 = vmul.f32 %v3303, %v4619
          %v4876 = vmul.f32 %v3304, %v4620
          %v4877 = vmul.f32 %v3305, %v4621
          %v4878 = vmul.f32 %v3306, %v4622
          %v4879 = vmul.f32 %v3307, %v4623
          %v4880 = vmul.f32 %v3308, %v4624
          %v4881 = vmul.f32 %v3309, %v4625
          %v4882 = vmul.f32 %v3310, %v4626
          %v4883 = vmul.f32 %v3311, %v4627
          %v4884 = vmul.f32 %v3312, %v4628
          %v4885 = vmul.f32 %v3313, %v4629
          %v4886 = vmul.f32 %v3314, %v4630
          %v4887 = vmul.f32 %v3315, %v4631
          %v4888 = vmul.f32 %v3316, %v4632
          %v4889 = vmul.f32 %v3317, %v4633
          %v4890 = vmul.f32 %v3318, %v4634
          %v4891 = vmul.f32 %v3319, %v4635
          %v4892 = vmul.f32 %v3320, %v4636
          %v4893 = vmul.f32 %v3321, %v4637
          %v4894 = vmul.f32 %v3322, %v4638
          %v4895 = vmul.f32 %v3323, %v4639
          %v4896 = vmul.f32 %v3324, %v4640
          %v4897 = vmul.f32 %v3325, %v4641
          %v4898 = vmul.f32 %v3326, %v4642
          %v4899 = vmul.f32 %v3327, %v4643
          %v4900 = vmul.f32 %v3328, %v4644
          %v4901 = vmul.f32 %v3329, %v4645
          %v4902 = vmul.f32 %v3330, %v4646
          %v4903 = vmul.f32 %v3331, %v4647
          %v4904 = vmul.f32 %v3332, %v4648
          %v4905 = vmul.f32 %v3333, %v4649
          %v4906 = vmul.f32 %v3334, %v4650
          %v4907 = vmul.f32 %v3335, %v4651
          %v4908 = vmul.f32 %v3336, %v4652
          %v4909 = vmul.f32 %v3337, %v4653
          %v4910 = vmul.f32 %v3338, %v4654
          %v4911 = vmul.f32 %v3339, %v4655
          %v4912 = vmul.f32 %v3340, %v4656
          %v4913 = vmul.f32 %v3341, %v4657
          %v4914 = vmul.f32 %v3342, %v4658
          %v4915 = vmul.f32 %v3343, %v4659
          %v4916 = vmul.f32 %v3344, %v4660
          %v4917 = vmul.f32 %v3345, %v4661
          %v4918 = vmul.f32 %v3346, %v4662
          %v4919 = vmul.f32 %v3347, %v4663
          %v4920 = vmul.f32 %v3348, %v4664
          %v4921 = vmul.f32 %v3349, %v4665
          %v4922 = vmul.f32 %v3350, %v4666
          %v4923 = vmul.f32 %v3351, %v4667
          %v4924 = vmul.f32 %v3352, %v4668
          %v4925 = vmul.f32 %v3353, %v4669
          %v4926 = vmul.f32 %v3354, %v4670
          %v4927 = vmul.f32 %v3355, %v4671
          %v4928 = vmul.f32 %v3356, %v4672
          %v4929 = vmul.f32 %v3357, %v4673
          %v4930 = vmul.f32 %v3358, %v4674
          %v4931 = vmul.f32 %v3359, %v4675
          %v4932 = vmul.f32 %v3360, %v4676
          %v4933 = vmul.f32 %v3361, %v4677
          %v4934 = vmul.f32 %v3362, %v4678
          %v4935 = vmul.f32 %v3363, %v4679
          %v4936 = vmul.f32 %v3364, %v4680
          %v4937 = vmul.f32 %v3365, %v4681
          %v4938 = vmul.f32 %v3366, %v4682
          %v4939 = vmul.f32 %v3367, %v4683
          %v4940 = vmul.f32 %v3368, %v4684
          %v4941 = vmul.f32 %v3369, %v4685
          %v4942 = vmul.f32 %v3370, %v4686
          %v4943 = vmul.f32 %v3371, %v4687
          %v4944 = vmul.f32 %v3372, %v4688
          %v4945 = vmul.f32 %v3373, %v4689
          %v4946 = vmul.f32 %v3374, %v4690
          %v4947 = vmul.f32 %v3375, %v4691
          %v4948 = vmul.f32 %v3376, %v4692
          %v4949 = vmul.f32 %v3377, %v4693
          %v4950 = vmul.f32 %v3378, %v4694
          %v4951 = vmul.f32 %v3379, %v4695
          %v4952 = vmul.f32 %v3380, %v4696
          %v4953 = vmul.f32 %v3381, %v4697
          %v4954 = vmul.f32 %v3382, %v4698
          %v4955 = vmul.f32 %v3383, %v4699
          %v4956 = vmul.f32 %v3384, %v4700
          %v4957 = vmul.f32 %v3385, %v4701
          %v4958 = vmul.f32 %v3386, %v4702
          %v4959 = vmul.f32 %v3387, %v4703
          %v4960 = vmul.f32 %v3388, %v4704
          %v4961 = vmul.f32 %v3389, %v4705
          %v4962 = vmul.f32 %v3390, %v4706
          %v4963 = vmul.f32 %v3391, %v4707
          %v4964 = vmul.f32 %v3392, %v4708
          %v4965 = vmul.f32 %v3393, %v4709
          %v4966 = vmul.f32 %v3394, %v4710
          %v4967 = vmul.f32 %v3395, %v4711
          %v4968 = vmul.f32 %v3396, %v4712
          %v4969 = vmul.f32 %v3397, %v4713
          %v4970 = vmul.f32 %v3398, %v4714
          %v4971 = vmul.f32 %v3399, %v4715
          %v4972 = vmul.f32 %v3400, %v4716
          %v4973 = vmul.f32 %v3401, %v4717
          %v4974 = vmul.f32 %v3402, %v4718
          %v4975 = vmul.f32 %v3403, %v4719
          %v4976 = vmul.f32 %v3404, %v4720
          %v4977 = vmul.f32 %v3405, %v4721
          %v4978 = vmul.f32 %v3406, %v4722
          %v4979 = vmul.f32 %v3407, %v4723
          %v4980 = vmul.f32 %v3408, %v4724
          %v4981 = vmul.f32 %v3409, %v4725
          %v4982 = vmul.f32 %v3410, %v4726
          %v4983 = vmul.f32 %v3411, %v4727
          %v4984 = vmul.f32 %v3412, %v4728
          %v4985 = vmul.f32 %v3413, %v4729
          %v4986 = vmul.f32 %v3414, %v4730
          %v4987 = vmul.f32 %v3415, %v4731
          %v4988 = vmul.f32 %v3416, %v4732
          %v4989 = vmul.f32 %v3417, %v4733
          %v4990 = vmul.f32 %v3418, %v4734
          %v4991 = vmul.f32 %v3419, %v4735
          %v4992 = vmul.f32 %v3420, %v4736
          %v4993 = vmul.f32 %v3421, %v4737
          %v4994 = vmul.f32 %v3422, %v4738
          %v4995 = vmul.f32 %v3423, %v4739
          %v4996 = vmul.f32 %v3424, %v4740
          %v4997 = vmul.f32 %v3425, %v4741
          %v4998 = vmul.f32 %v3426, %v4742
          %v4999 = vmul.f32 %v3427, %v4743
          %v5000 = vmul.f32 %v3428, %v4744
          %v5001 = vmul.f32 %v3429, %v4745
          %v5002 = vmul.f32 %v3430, %v4746
          %v5003 = vmul.f32 %v3431, %v4747
          %v5004 = vmul.f32 %v3432, %v4748
          %v5005 = vmul.f32 %v3433, %v4749
          %v5006 = vmul.f32 %v3434, %v4750
          %v5007 = vmul.f32 %v3435, %v4751
          %v5008 = vmul.f32 %v3436, %v4752
          %v5009 = vmul.f32 %v3437, %v4753
          %v5010 = vmul.f32 %v3438, %v4754
          %v5011 = vmul.f32 %v3439, %v4755
          %v5012 = vmul.f32 %v3440, %v4756
          %v5013 = vmul.f32 %v3441, %v4757
          %v5014 = vmul.f32 %v3442, %v4758
          %v5015 = vmul.f32 %v3443, %v4759
          %v5016 = vmul.f32 %v3444, %v4760
          %v5017 = vmul.f32 %v3445, %v4761
          %v5018 = vmul.f32 %v3446, %v4762
          %v5019 = vmul.f32 %v3447, %v4763
          %v5020 = vmul.f32 %v3448, %v4764
          %v5021 = vmul.f32 %v3449, %v4765
          %v5022 = vmul.f32 %v3450, %v4766
          %v5023 = vmul.f32 %v3451, %v4767
          %v5024 = vmul.f32 %v3452, %v4768
          %v5025 = vmul.f32 %v3453, %v4769
          %v5026 = vmul.f32 %v3454, %v4770
          %v5027 = vmul.f32 %v3455, %v4771
          %v5028 = vmul.f32 %v3456, %v4772
          %v5029 = vmul.f32 %v3457, %v4773
          %v5030 = vmul.f32 %v3458, %v4774
          %v5031 = vmul.f32 %v3459, %v4775
          %v5032 = vmul.f32 %v3460, %v4776
          %v5033 = vmul.f32 %v3461, %v4777
          %v5034 = vmul.f32 %v3462, %v4778
          %v5035 = vmul.f32 %v3463, %v4779
          %v5036 = vmul.f32 %v3464, %v4780
          %v5037 = vld [vmem:[#allocation2] sm:$0xff]
          %v5038 = vld [vmem:[#allocation2 + $0x8] sm:$0xff]
          %v5039 = vld [vmem:[#allocation2 + $0x10] sm:$0xff]
          %v5040 = vld [vmem:[#allocation2 + $0x18] sm:$0xff]
          %v5041 = vld [vmem:[#allocation2 + $0x20] sm:$0xff]
          %v5042 = vld [vmem:[#allocation2 + $0x28] sm:$0xff]
          %v5043 = vld [vmem:[#allocation2 + $0x30] sm:$0xff]
          %v5044 = vld [vmem:[#allocation2 + $0x38] sm:$0xff]
          %v5045 = vld [vmem:[#allocation2 + $0x40] sm:$0xff]
          %v5046 = vld [vmem:[#allocation2 + $0x48] sm:$0xff]
          %v5047 = vld [vmem:[#allocation2 + $0x50] sm:$0xff]
          %v5048 = vld [vmem:[#allocation2 + $0x58] sm:$0xff]
          %v5049 = vld [vmem:[#allocation2 + $0x60] sm:$0xff]
          %v5050 = vld [vmem:[#allocation2 + $0x68] sm:$0xff]
          %v5051 = vld [vmem:[#allocation2 + $0x70] sm:$0xff]
          %v5052 = vld [vmem:[#allocation2 + $0x78] sm:$0xff]
          %v5053 = vld [vmem:[#allocation2 + $0x80] sm:$0xff]
          %v5054 = vld [vmem:[#allocation2 + $0x88] sm:$0xff]
          %v5055 = vld [vmem:[#allocation2 + $0x90] sm:$0xff]
          %v5056 = vld [vmem:[#allocation2 + $0x98] sm:$0xff]
          %v5057 = vld [vmem:[#allocation2 + $0xa0] sm:$0xff]
          %v5058 = vld [vmem:[#allocation2 + $0xa8] sm:$0xff]
          %v5059 = vld [vmem:[#allocation2 + $0xb0] sm:$0xff]
          %v5060 = vld [vmem:[#allocation2 + $0xb8] sm:$0xff]
          %v5061 = vld [vmem:[#allocation2 + $0xc0] sm:$0xff]
          %v5062 = vld [vmem:[#allocation2 + $0xc8] sm:$0xff]
          %v5063 = vld [vmem:[#allocation2 + $0xd0] sm:$0xff]
          %v5064 = vld [vmem:[#allocation2 + $0xd8] sm:$0xff]
          %v5065 = vld [vmem:[#allocation2 + $0xe0] sm:$0xff]
          %v5066 = vld [vmem:[#allocation2 + $0xe8] sm:$0xff]
          %v5067 = vld [vmem:[#allocation2 + $0xf0] sm:$0xff]
          %v5068 = vld [vmem:[#allocation2 + $0xf8] sm:$0xff]
          %s5069 = smul.u32 %s501, 32
          %s5070 = smul.addr %s5069, 8
          %s5071 = scalar_lea.vmem [#allocation5], %s5070
          %v5072 = vld [vmem:[%s5071] sm:$0xff]
          %v5073 = vld [vmem:[%s5071 + $0x8] sm:$0xff]
          %v5074 = vld [vmem:[%s5071 + $0x10] sm:$0xff]
          %v5075 = vld [vmem:[%s5071 + $0x18] sm:$0xff]
          %v5076 = vld [vmem:[%s5071 + $0x20] sm:$0xff]
          %v5077 = vld [vmem:[%s5071 + $0x28] sm:$0xff]
          %v5078 = vld [vmem:[%s5071 + $0x30] sm:$0xff]
          %v5079 = vld [vmem:[%s5071 + $0x38] sm:$0xff]
          %v5080 = vld [vmem:[%s5071 + $0x40] sm:$0xff]
          %v5081 = vld [vmem:[%s5071 + $0x48] sm:$0xff]
          %v5082 = vld [vmem:[%s5071 + $0x50] sm:$0xff]
          %v5083 = vld [vmem:[%s5071 + $0x58] sm:$0xff]
          %v5084 = vld [vmem:[%s5071 + $0x60] sm:$0xff]
          %v5085 = vld [vmem:[%s5071 + $0x68] sm:$0xff]
          %v5086 = vld [vmem:[%s5071 + $0x70] sm:$0xff]
          %v5087 = vld [vmem:[%s5071 + $0x78] sm:$0xff]
          %v5088 = vld [vmem:[%s5071 + $0x80] sm:$0xff]
          %v5089 = vld [vmem:[%s5071 + $0x88] sm:$0xff]
          %v5090 = vld [vmem:[%s5071 + $0x90] sm:$0xff]
          %v5091 = vld [vmem:[%s5071 + $0x98] sm:$0xff]
          %v5092 = vld [vmem:[%s5071 + $0xa0] sm:$0xff]
          %v5093 = vld [vmem:[%s5071 + $0xa8] sm:$0xff]
          %v5094 = vld [vmem:[%s5071 + $0xb0] sm:$0xff]
          %v5095 = vld [vmem:[%s5071 + $0xb8] sm:$0xff]
          %v5096 = vld [vmem:[%s5071 + $0xc0] sm:$0xff]
          %v5097 = vld [vmem:[%s5071 + $0xc8] sm:$0xff]
          %v5098 = vld [vmem:[%s5071 + $0xd0] sm:$0xff]
          %v5099 = vld [vmem:[%s5071 + $0xd8] sm:$0xff]
          %v5100 = vld [vmem:[%s5071 + $0xe0] sm:$0xff]
          %v5101 = vld [vmem:[%s5071 + $0xe8] sm:$0xff]
          %v5102 = vld [vmem:[%s5071 + $0xf0] sm:$0xff]
          %v5103 = vld [vmem:[%s5071 + $0xf8] sm:$0xff]
          %5104 = vmatprep.subr.mxu0 %v4782
          %5105 = vmatpush1.msra.mxu0 %v4781
          %5106 = vmatprep.subr.mxu0 %v4786
          %5107 = vmatpush1.msra.mxu0 %v4785
          %5108 = vmatprep.subr.mxu0 %v4790
          %5109 = vmatpush1.msra.mxu0 %v4789
          %5110 = vmatprep.subr.mxu0 %v4794
          %5111 = vmatpush1.msra.mxu0 %v4793
          %5112 = vmatprep.subr.mxu0 %v4798
          %5113 = vmatpush1.msra.mxu0 %v4797
          %5114 = vmatprep.subr.mxu0 %v4802
          %5115 = vmatpush1.msra.mxu0 %v4801
          %5116 = vmatprep.subr.mxu0 %v4806
          %5117 = vmatpush1.msra.mxu0 %v4805
          %5118 = vmatprep.subr.mxu0 %v4810
          %5119 = vmatpush1.msra.mxu0 %v4809
          %5120 = vmatprep.subr.mxu0 %v4814
          %5121 = vmatpush1.msra.mxu0 %v4813
          %5122 = vmatprep.subr.mxu0 %v4818
          %5123 = vmatpush1.msra.mxu0 %v4817
          %5124 = vmatprep.subr.mxu0 %v4822
          %5125 = vmatpush1.msra.mxu0 %v4821
          %5126 = vmatprep.subr.mxu0 %v4826
          %5127 = vmatpush1.msra.mxu0 %v4825
          %5128 = vmatprep.subr.mxu0 %v4830
          %5129 = vmatpush1.msra.mxu0 %v4829
          %5130 = vmatprep.subr.mxu0 %v4834
          %5131 = vmatpush1.msra.mxu0 %v4833
          %5132 = vmatprep.subr.mxu0 %v4838
          %5133 = vmatpush1.msra.mxu0 %v4837
          %5134 = vmatprep.subr.mxu0 %v4842
          %5135 = vmatpush1.msra.mxu0 %v4841
          %5136 = vmatprep.subr.mxu0 %v4846
          %5137 = vmatpush1.msra.mxu0 %v4845
          %5138 = vmatprep.subr.mxu0 %v4850
          %5139 = vmatpush1.msra.mxu0 %v4849
          %5140 = vmatprep.subr.mxu0 %v4854
          %5141 = vmatpush1.msra.mxu0 %v4853
          %5142 = vmatprep.subr.mxu0 %v4858
          %5143 = vmatpush1.msra.mxu0 %v4857
          %5144 = vmatprep.subr.mxu0 %v4862
          %5145 = vmatpush1.msra.mxu0 %v4861
          %5146 = vmatprep.subr.mxu0 %v4866
          %5147 = vmatpush1.msra.mxu0 %v4865
          %5148 = vmatprep.subr.mxu0 %v4870
          %5149 = vmatpush1.msra.mxu0 %v4869
          %5150 = vmatprep.subr.mxu0 %v4874
          %5151 = vmatpush1.msra.mxu0 %v4873
          %5152 = vmatprep.subr.mxu0 %v4878
          %5153 = vmatpush1.msra.mxu0 %v4877
          %5154 = vmatprep.subr.mxu0 %v4882
          %5155 = vmatpush1.msra.mxu0 %v4881
          %5156 = vmatprep.subr.mxu0 %v4886
          %5157 = vmatpush1.msra.mxu0 %v4885
          %5158 = vmatprep.subr.mxu0 %v4890
          %5159 = vmatpush1.msra.mxu0 %v4889
          %5160 = vmatprep.subr.mxu0 %v4894
          %5161 = vmatpush1.msra.mxu0 %v4893
          %5162 = vmatprep.subr.mxu0 %v4898
          %5163 = vmatpush1.msra.mxu0 %v4897
          %5164 = vmatprep.subr.mxu0 %v4902
          %5165 = vmatpush1.msra.mxu0 %v4901
          %5166 = vmatprep.subr.mxu0 %v4906
          %5167 = vmatpush1.msra.mxu0 %v4905
          %5168 = vmatprep.mubr.f32.mxu0 %v5073
          %5169 = vmatmul.mubr.f32.gmra.mrb[0].mxu0 %v5072
          %v5170 = vpop.f32.mrb[0].mxu0
          %v5171 = vadd.f32 0.0, %v5170
          %v5172 = vpop.f32.mrb[0].mxu0
          %v5173 = vadd.f32 0.0, %v5172
          %5174 = vmatprep.mubr.f32.mxu0 %v5077
          %5175 = vmatmul.mubr.f32.gmra.mrb[0].mxu0 %v5076
          %v5176 = vpop.f32.mrb[0].mxu0
          %v5177 = vadd.f32 0.0, %v5176
          %v5178 = vpop.f32.mrb[0].mxu0
          %v5179 = vadd.f32 0.0, %v5178
          %5180 = vmatprep.mubr.f32.mxu0 %v5081
          %5181 = vmatmul.mubr.f32.gmra.mrb[0].mxu0 %v5080
          %v5182 = vpop.f32.mrb[0].mxu0
          %v5183 = vadd.f32 0.0, %v5182
          %v5184 = vpop.f32.mrb[0].mxu0
          %v5185 = vadd.f32 0.0, %v5184
          %5186 = vmatprep.mubr.f32.mxu0 %v5085
          %5187 = vmatmul.mubr.f32.gmra.mrb[0].mxu0 %v5084
          %v5188 = vpop.f32.mrb[0].mxu0
          %v5189 = vadd.f32 0.0, %v5188
          %v5190 = vpop.f32.mrb[0].mxu0
          %v5191 = vadd.f32 0.0, %v5190
          %5192 = vmatprep.mubr.f32.mxu0 %v5089
          %5193 = vmatmul.mubr.f32.gmra.mrb[0].mxu0 %v5088
          %v5194 = vpop.f32.mrb[0].mxu0
          %v5195 = vadd.f32 0.0, %v5194
          %v5196 = vpop.f32.mrb[0].mxu0
          %v5197 = vadd.f32 0.0, %v5196
          %5198 = vmatprep.mubr.f32.mxu0 %v5093
          %5199 = vmatmul.mubr.f32.gmra.mrb[0].mxu0 %v5092
          %v5200 = vpop.f32.mrb[0].mxu0
          %v5201 = vadd.f32 0.0, %v5200
          %v5202 = vpop.f32.mrb[0].mxu0
          %v5203 = vadd.f32 0.0, %v5202
          %5204 = vmatprep.mubr.f32.mxu0 %v5097
          %5205 = vmatmul.mubr.f32.gmra.mrb[0].mxu0 %v5096
          %v5206 = vpop.f32.mrb[0].mxu0
          %v5207 = vadd.f32 0.0, %v5206
          %v5208 = vpop.f32.mrb[0].mxu0
          %v5209 = vadd.f32 0.0, %v5208
          %5210 = vmatprep.mubr.f32.mxu0 %v5101
          %5211 = vmatmul.mubr.f32.gmra.mrb[0].mxu0 %v5100
          %v5212 = vpop.f32.mrb[0].mxu0
          %v5213 = vadd.f32 0.0, %v5212
          %v5214 = vpop.f32.mrb[0].mxu0
          %v5215 = vadd.f32 0.0, %v5214
          %5216 = vdwg.mxu0
          %5217 = vmatprep.subr.mxu0 %v4910
          %5218 = vmatpush1.msra.mxu0 %v4909
          %5219 = vmatprep.subr.mxu0 %v4914
          %5220 = vmatpush1.msra.mxu0 %v4913
          %5221 = vmatprep.subr.mxu0 %v4918
          %5222 = vmatpush1.msra.mxu0 %v4917
          %5223 = vmatprep.subr.mxu0 %v4922
          %5224 = vmatpush1.msra.mxu0 %v4921
          %5225 = vmatprep.subr.mxu0 %v4926
          %5226 = vmatpush1.msra.mxu0 %v4925
          %5227 = vmatprep.subr.mxu0 %v4930
          %5228 = vmatpush1.msra.mxu0 %v4929
          %5229 = vmatprep.subr.mxu0 %v4934
          %5230 = vmatpush1.msra.mxu0 %v4933
          %5231 = vmatprep.subr.mxu0 %v4938
          %5232 = vmatpush1.msra.mxu0 %v4937
          %5233 = vmatprep.subr.mxu0 %v4942
          %5234 = vmatpush1.msra.mxu0 %v4941
          %5235 = vmatprep.subr.mxu0 %v4946
          %5236 = vmatpush1.msra.mxu0 %v4945
          %5237 = vmatprep.subr.mxu0 %v4950
          %5238 = vmatpush1.msra.mxu0 %v4949
          %5239 = vmatprep.subr.mxu0 %v4954
          %5240 = vmatpush1.msra.mxu0 %v4953
          %5241 = vmatprep.subr.mxu0 %v4958
          %5242 = vmatpush1.msra.mxu0 %v4957
          %5243 = vmatprep.subr.mxu0 %v4962
          %5244 = vmatpush1.msra.mxu0 %v4961
          %5245 = vmatprep.subr.mxu0 %v4966
          %5246 = vmatpush1.msra.mxu0 %v4965
          %5247 = vmatprep.subr.mxu0 %v4970
          %5248 = vmatpush1.msra.mxu0 %v4969
          %5249 = vmatprep.subr.mxu0 %v4974
          %5250 = vmatpush1.msra.mxu0 %v4973
          %5251 = vmatprep.subr.mxu0 %v4978
          %5252 = vmatpush1.msra.mxu0 %v4977
          %5253 = vmatprep.subr.mxu0 %v4982
          %5254 = vmatpush1.msra.mxu0 %v4981
          %5255 = vmatprep.subr.mxu0 %v4986
          %5256 = vmatpush1.msra.mxu0 %v4985
          %5257 = vmatprep.subr.mxu0 %v4990
          %5258 = vmatpush1.msra.mxu0 %v4989
          %5259 = vmatprep.subr.mxu0 %v4994
          %5260 = vmatpush1.msra.mxu0 %v4993
          %5261 = vmatprep.subr.mxu0 %v4998
          %5262 = vmatpush1.msra.mxu0 %v4997
          %5263 = vmatprep.subr.mxu0 %v5002
          %5264 = vmatpush1.msra.mxu0 %v5001
          %5265 = vmatprep.subr.mxu0 %v5006
          %5266 = vmatpush1.msra.mxu0 %v5005
          %5267 = vmatprep.subr.mxu0 %v5010
          %5268 = vmatpush1.msra.mxu0 %v5009
          %5269 = vmatprep.subr.mxu0 %v5014
          %5270 = vmatpush1.msra.mxu0 %v5013
          %5271 = vmatprep.subr.mxu0 %v5018
          %5272 = vmatpush1.msra.mxu0 %v5017
          %5273 = vmatprep.subr.mxu0 %v5022
          %5274 = vmatpush1.msra.mxu0 %v5021
          %5275 = vmatprep.subr.mxu0 %v5026
          %5276 = vmatpush1.msra.mxu0 %v5025
          %5277 = vmatprep.subr.mxu0 %v5030
          %5278 = vmatpush1.msra.mxu0 %v5029
          %5279 = vmatprep.subr.mxu0 %v5034
          %5280 = vmatpush1.msra.mxu0 %v5033
          %5281 = vmatprep.mubr.f32.mxu0 %v5075
          %5282 = vmatmul.mubr.f32.gmra.mrb[0].mxu0 %v5074
          %v5283 = vpop.f32.mrb[0].mxu0
          %v5284 = vadd.f32 %v5171, %v5283
          %v5285 = vpop.f32.mrb[0].mxu0
          %v5286 = vadd.f32 %v5173, %v5285
          %5287 = vmatprep.mubr.f32.mxu0 %v5079
          %5288 = vmatmul.mubr.f32.gmra.mrb[0].mxu0 %v5078
          %v5289 = vpop.f32.mrb[0].mxu0
          %v5290 = vadd.f32 %v5177, %v5289
          %v5291 = vpop.f32.mrb[0].mxu0
          %v5292 = vadd.f32 %v5179, %v5291
          %5293 = vmatprep.mubr.f32.mxu0 %v5083
          %5294 = vmatmul.mubr.f32.gmra.mrb[0].mxu0 %v5082
          %v5295 = vpop.f32.mrb[0].mxu0
          %v5296 = vadd.f32 %v5183, %v5295
          %v5297 = vpop.f32.mrb[0].mxu0
          %v5298 = vadd.f32 %v5185, %v5297
          %5299 = vmatprep.mubr.f32.mxu0 %v5087
          %5300 = vmatmul.mubr.f32.gmra.mrb[0].mxu0 %v5086
          %v5301 = vpop.f32.mrb[0].mxu0
          %v5302 = vadd.f32 %v5189, %v5301
          %v5303 = vpop.f32.mrb[0].mxu0
          %v5304 = vadd.f32 %v5191, %v5303
          %5305 = vmatprep.mubr.f32.mxu0 %v5091
          %5306 = vmatmul.mubr.f32.gmra.mrb[0].mxu0 %v5090
          %v5307 = vpop.f32.mrb[0].mxu0
          %v5308 = vadd.f32 %v5195, %v5307
          %v5309 = vpop.f32.mrb[0].mxu0
          %v5310 = vadd.f32 %v5197, %v5309
          %5311 = vmatprep.mubr.f32.mxu0 %v5095
          %5312 = vmatmul.mubr.f32.gmra.mrb[0].mxu0 %v5094
          %v5313 = vpop.f32.mrb[0].mxu0
          %v5314 = vadd.f32 %v5201, %v5313
          %v5315 = vpop.f32.mrb[0].mxu0
          %v5316 = vadd.f32 %v5203, %v5315
          %5317 = vmatprep.mubr.f32.mxu0 %v5099
          %5318 = vmatmul.mubr.f32.gmra.mrb[0].mxu0 %v5098
          %v5319 = vpop.f32.mrb[0].mxu0
          %v5320 = vadd.f32 %v5207, %v5319
          %v5321 = vpop.f32.mrb[0].mxu0
          %v5322 = vadd.f32 %v5209, %v5321
          %5323 = vmatprep.mubr.f32.mxu0 %v5103
          %5324 = vmatmul.mubr.f32.gmra.mrb[0].mxu0 %v5102
          %v5325 = vpop.f32.mrb[0].mxu0
          %v5326 = vadd.f32 %v5213, %v5325
          %v5327 = vpop.f32.mrb[0].mxu0
          %v5328 = vadd.f32 %v5215, %v5327
          %5329 = vdwg.mxu0
          %5330 = vmatprep.subr.mxu0 %v4784
          %5331 = vmatpush1.msra.mxu0 %v4783
          %5332 = vmatprep.subr.mxu0 %v4788
          %5333 = vmatpush1.msra.mxu0 %v4787
          %5334 = vmatprep.subr.mxu0 %v4792
          %5335 = vmatpush1.msra.mxu0 %v4791
          %5336 = vmatprep.subr.mxu0 %v4796
          %5337 = vmatpush1.msra.mxu0 %v4795
          %5338 = vmatprep.subr.mxu0 %v4800
          %5339 = vmatpush1.msra.mxu0 %v4799
          %5340 = vmatprep.subr.mxu0 %v4804
          %5341 = vmatpush1.msra.mxu0 %v4803
          %5342 = vmatprep.subr.mxu0 %v4808
          %5343 = vmatpush1.msra.mxu0 %v4807
          %5344 = vmatprep.subr.mxu0 %v4812
          %5345 = vmatpush1.msra.mxu0 %v4811
          %5346 = vmatprep.subr.mxu0 %v4816
          %5347 = vmatpush1.msra.mxu0 %v4815
          %5348 = vmatprep.subr.mxu0 %v4820
          %5349 = vmatpush1.msra.mxu0 %v4819
          %5350 = vmatprep.subr.mxu0 %v4824
          %5351 = vmatpush1.msra.mxu0 %v4823
          %5352 = vmatprep.subr.mxu0 %v4828
          %5353 = vmatpush1.msra.mxu0 %v4827
          %5354 = vmatprep.subr.mxu0 %v4832
          %5355 = vmatpush1.msra.mxu0 %v4831
          %5356 = vmatprep.subr.mxu0 %v4836
          %5357 = vmatpush1.msra.mxu0 %v4835
          %5358 = vmatprep.subr.mxu0 %v4840
          %5359 = vmatpush1.msra.mxu0 %v4839
          %5360 = vmatprep.subr.mxu0 %v4844
          %5361 = vmatpush1.msra.mxu0 %v4843
          %5362 = vmatprep.subr.mxu0 %v4848
          %5363 = vmatpush1.msra.mxu0 %v4847
          %5364 = vmatprep.subr.mxu0 %v4852
          %5365 = vmatpush1.msra.mxu0 %v4851
          %5366 = vmatprep.subr.mxu0 %v4856
          %5367 = vmatpush1.msra.mxu0 %v4855
          %5368 = vmatprep.subr.mxu0 %v4860
          %5369 = vmatpush1.msra.mxu0 %v4859
          %5370 = vmatprep.subr.mxu0 %v4864
          %5371 = vmatpush1.msra.mxu0 %v4863
          %5372 = vmatprep.subr.mxu0 %v4868
          %5373 = vmatpush1.msra.mxu0 %v4867
          %5374 = vmatprep.subr.mxu0 %v4872
          %5375 = vmatpush1.msra.mxu0 %v4871
          %5376 = vmatprep.subr.mxu0 %v4876
          %5377 = vmatpush1.msra.mxu0 %v4875
          %5378 = vmatprep.subr.mxu0 %v4880
          %5379 = vmatpush1.msra.mxu0 %v4879
          %5380 = vmatprep.subr.mxu0 %v4884
          %5381 = vmatpush1.msra.mxu0 %v4883
          %5382 = vmatprep.subr.mxu0 %v4888
          %5383 = vmatpush1.msra.mxu0 %v4887
          %5384 = vmatprep.subr.mxu0 %v4892
          %5385 = vmatpush1.msra.mxu0 %v4891
          %5386 = vmatprep.subr.mxu0 %v4896
          %5387 = vmatpush1.msra.mxu0 %v4895
          %5388 = vmatprep.subr.mxu0 %v4900
          %5389 = vmatpush1.msra.mxu0 %v4899
          %5390 = vmatprep.subr.mxu0 %v4904
          %5391 = vmatpush1.msra.mxu0 %v4903
          %5392 = vmatprep.subr.mxu0 %v4908
          %5393 = vmatpush1.msra.mxu0 %v4907
          %5394 = vmatprep.mubr.f32.mxu0 %v5073
          %5395 = vmatmul.mubr.f32.gmra.mrb[0].mxu0 %v5072
          %v5396 = vpop.f32.mrb[0].mxu0
          %v5397 = vadd.f32 0.0, %v5396
          %v5398 = vpop.f32.mrb[0].mxu0
          %v5399 = vadd.f32 0.0, %v5398
          %5400 = vmatprep.mubr.f32.mxu0 %v5077
          %5401 = vmatmul.mubr.f32.gmra.mrb[0].mxu0 %v5076
          %v5402 = vpop.f32.mrb[0].mxu0
          %v5403 = vadd.f32 0.0, %v5402
          %v5404 = vpop.f32.mrb[0].mxu0
          %v5405 = vadd.f32 0.0, %v5404
          %5406 = vmatprep.mubr.f32.mxu0 %v5081
          %5407 = vmatmul.mubr.f32.gmra.mrb[0].mxu0 %v5080
          %v5408 = vpop.f32.mrb[0].mxu0
          %v5409 = vadd.f32 0.0, %v5408
          %v5410 = vpop.f32.mrb[0].mxu0
          %v5411 = vadd.f32 0.0, %v5410
          %5412 = vmatprep.mubr.f32.mxu0 %v5085
          %5413 = vmatmul.mubr.f32.gmra.mrb[0].mxu0 %v5084
          %v5414 = vpop.f32.mrb[0].mxu0
          %v5415 = vadd.f32 0.0, %v5414
          %v5416 = vpop.f32.mrb[0].mxu0
          %v5417 = vadd.f32 0.0, %v5416
          %5418 = vmatprep.mubr.f32.mxu0 %v5089
          %5419 = vmatmul.mubr.f32.gmra.mrb[0].mxu0 %v5088
          %v5420 = vpop.f32.mrb[0].mxu0
          %v5421 = vadd.f32 0.0, %v5420
          %v5422 = vpop.f32.mrb[0].mxu0
          %v5423 = vadd.f32 0.0, %v5422
          %5424 = vmatprep.mubr.f32.mxu0 %v5093
          %5425 = vmatmul.mubr.f32.gmra.mrb[0].mxu0 %v5092
          %v5426 = vpop.f32.mrb[0].mxu0
          %v5427 = vadd.f32 0.0, %v5426
          %v5428 = vpop.f32.mrb[0].mxu0
          %v5429 = vadd.f32 0.0, %v5428
          %5430 = vmatprep.mubr.f32.mxu0 %v5097
          %5431 = vmatmul.mubr.f32.gmra.mrb[0].mxu0 %v5096
          %v5432 = vpop.f32.mrb[0].mxu0
          %v5433 = vadd.f32 0.0, %v5432
          %v5434 = vpop.f32.mrb[0].mxu0
          %v5435 = vadd.f32 0.0, %v5434
          %5436 = vmatprep.mubr.f32.mxu0 %v5101
          %5437 = vmatmul.mubr.f32.gmra.mrb[0].mxu0 %v5100
          %v5438 = vpop.f32.mrb[0].mxu0
          %v5439 = vadd.f32 0.0, %v5438
          %v5440 = vpop.f32.mrb[0].mxu0
          %v5441 = vadd.f32 0.0, %v5440
          %5442 = vdwg.mxu0
          %5443 = vmatprep.subr.mxu0 %v4912
          %5444 = vmatpush1.msra.mxu0 %v4911
          %5445 = vmatprep.subr.mxu0 %v4916
          %5446 = vmatpush1.msra.mxu0 %v4915
          %5447 = vmatprep.subr.mxu0 %v4920
          %5448 = vmatpush1.msra.mxu0 %v4919
          %5449 = vmatprep.subr.mxu0 %v4924
          %5450 = vmatpush1.msra.mxu0 %v4923
          %5451 = vmatprep.subr.mxu0 %v4928
          %5452 = vmatpush1.msra.mxu0 %v4927
          %5453 = vmatprep.subr.mxu0 %v4932
          %5454 = vmatpush1.msra.mxu0 %v4931
          %5455 = vmatprep.subr.mxu0 %v4936
          %5456 = vmatpush1.msra.mxu0 %v4935
          %5457 = vmatprep.subr.mxu0 %v4940
          %5458 = vmatpush1.msra.mxu0 %v4939
          %5459 = vmatprep.subr.mxu0 %v4944
          %5460 = vmatpush1.msra.mxu0 %v4943
          %5461 = vmatprep.subr.mxu0 %v4948
          %5462 = vmatpush1.msra.mxu0 %v4947
          %5463 = vmatprep.subr.mxu0 %v4952
          %5464 = vmatpush1.msra.mxu0 %v4951
          %5465 = vmatprep.subr.mxu0 %v4956
          %5466 = vmatpush1.msra.mxu0 %v4955
          %5467 = vmatprep.subr.mxu0 %v4960
          %5468 = vmatpush1.msra.mxu0 %v4959
          %5469 = vmatprep.subr.mxu0 %v4964
          %5470 = vmatpush1.msra.mxu0 %v4963
          %5471 = vmatprep.subr.mxu0 %v4968
          %5472 = vmatpush1.msra.mxu0 %v4967
          %5473 = vmatprep.subr.mxu0 %v4972
          %5474 = vmatpush1.msra.mxu0 %v4971
          %5475 = vmatprep.subr.mxu0 %v4976
          %5476 = vmatpush1.msra.mxu0 %v4975
          %5477 = vmatprep.subr.mxu0 %v4980
          %5478 = vmatpush1.msra.mxu0 %v4979
          %5479 = vmatprep.subr.mxu0 %v4984
          %5480 = vmatpush1.msra.mxu0 %v4983
          %5481 = vmatprep.subr.mxu0 %v4988
          %5482 = vmatpush1.msra.mxu0 %v4987
          %5483 = vmatprep.subr.mxu0 %v4992
          %5484 = vmatpush1.msra.mxu0 %v4991
          %5485 = vmatprep.subr.mxu0 %v4996
          %5486 = vmatpush1.msra.mxu0 %v4995
          %5487 = vmatprep.subr.mxu0 %v5000
          %5488 = vmatpush1.msra.mxu0 %v4999
          %5489 = vmatprep.subr.mxu0 %v5004
          %5490 = vmatpush1.msra.mxu0 %v5003
          %5491 = vmatprep.subr.mxu0 %v5008
          %5492 = vmatpush1.msra.mxu0 %v5007
          %5493 = vmatprep.subr.mxu0 %v5012
          %5494 = vmatpush1.msra.mxu0 %v5011
          %5495 = vmatprep.subr.mxu0 %v5016
          %5496 = vmatpush1.msra.mxu0 %v5015
          %5497 = vmatprep.subr.mxu0 %v5020
          %5498 = vmatpush1.msra.mxu0 %v5019
          %5499 = vmatprep.subr.mxu0 %v5024
          %5500 = vmatpush1.msra.mxu0 %v5023
          %5501 = vmatprep.subr.mxu0 %v5028
          %5502 = vmatpush1.msra.mxu0 %v5027
          %5503 = vmatprep.subr.mxu0 %v5032
          %5504 = vmatpush1.msra.mxu0 %v5031
          %5505 = vmatprep.subr.mxu0 %v5036
          %5506 = vmatpush1.msra.mxu0 %v5035
          %5507 = vmatprep.mubr.f32.mxu0 %v5075
          %5508 = vmatmul.mubr.f32.gmra.mrb[0].mxu0 %v5074
          %v5509 = vpop.f32.mrb[0].mxu0
          %v5510 = vadd.f32 %v5397, %v5509
          %v5511 = vpop.f32.mrb[0].mxu0
          %v5512 = vadd.f32 %v5399, %v5511
          %5513 = vmatprep.mubr.f32.mxu0 %v5079
          %5514 = vmatmul.mubr.f32.gmra.mrb[0].mxu0 %v5078
          %v5515 = vpop.f32.mrb[0].mxu0
          %v5516 = vadd.f32 %v5403, %v5515
          %v5517 = vpop.f32.mrb[0].mxu0
          %v5518 = vadd.f32 %v5405, %v5517
          %5519 = vmatprep.mubr.f32.mxu0 %v5083
          %5520 = vmatmul.mubr.f32.gmra.mrb[0].mxu0 %v5082
          %v5521 = vpop.f32.mrb[0].mxu0
          %v5522 = vadd.f32 %v5409, %v5521
          %v5523 = vpop.f32.mrb[0].mxu0
          %v5524 = vadd.f32 %v5411, %v5523
          %5525 = vmatprep.mubr.f32.mxu0 %v5087
          %5526 = vmatmul.mubr.f32.gmra.mrb[0].mxu0 %v5086
          %v5527 = vpop.f32.mrb[0].mxu0
          %v5528 = vadd.f32 %v5415, %v5527
          %v5529 = vpop.f32.mrb[0].mxu0
          %v5530 = vadd.f32 %v5417, %v5529
          %5531 = vmatprep.mubr.f32.mxu0 %v5091
          %5532 = vmatmul.mubr.f32.gmra.mrb[0].mxu0 %v5090
          %v5533 = vpop.f32.mrb[0].mxu0
          %v5534 = vadd.f32 %v5421, %v5533
          %v5535 = vpop.f32.mrb[0].mxu0
          %v5536 = vadd.f32 %v5423, %v5535
          %5537 = vmatprep.mubr.f32.mxu0 %v5095
          %5538 = vmatmul.mubr.f32.gmra.mrb[0].mxu0 %v5094
          %v5539 = vpop.f32.mrb[0].mxu0
          %v5540 = vadd.f32 %v5427, %v5539
          %v5541 = vpop.f32.mrb[0].mxu0
          %v5542 = vadd.f32 %v5429, %v5541
          %5543 = vmatprep.mubr.f32.mxu0 %v5099
          %5544 = vmatmul.mubr.f32.gmra.mrb[0].mxu0 %v5098
          %v5545 = vpop.f32.mrb[0].mxu0
          %v5546 = vadd.f32 %v5433, %v5545
          %v5547 = vpop.f32.mrb[0].mxu0
          %v5548 = vadd.f32 %v5435, %v5547
          %5549 = vmatprep.mubr.f32.mxu0 %v5103
          %5550 = vmatmul.mubr.f32.gmra.mrb[0].mxu0 %v5102
          %v5551 = vpop.f32.mrb[0].mxu0
          %v5552 = vadd.f32 %v5439, %v5551
          %v5553 = vpop.f32.mrb[0].mxu0
          %v5554 = vadd.f32 %v5441, %v5553
          %5555 = vdwg.mxu0
          %v5556 = vadd.f32 %v5037, %v5284
          %v5557 = vadd.f32 %v5038, %v5286
          %v5558 = vadd.f32 %v5039, %v5510
          %v5559 = vadd.f32 %v5040, %v5512
          %v5560 = vadd.f32 %v5041, %v5290
          %v5561 = vadd.f32 %v5042, %v5292
          %v5562 = vadd.f32 %v5043, %v5516
          %v5563 = vadd.f32 %v5044, %v5518
          %v5564 = vadd.f32 %v5045, %v5296
          %v5565 = vadd.f32 %v5046, %v5298
          %v5566 = vadd.f32 %v5047, %v5522
          %v5567 = vadd.f32 %v5048, %v5524
          %v5568 = vadd.f32 %v5049, %v5302
          %v5569 = vadd.f32 %v5050, %v5304
          %v5570 = vadd.f32 %v5051, %v5528
          %v5571 = vadd.f32 %v5052, %v5530
          %v5572 = vadd.f32 %v5053, %v5308
          %v5573 = vadd.f32 %v5054, %v5310
          %v5574 = vadd.f32 %v5055, %v5534
          %v5575 = vadd.f32 %v5056, %v5536
          %v5576 = vadd.f32 %v5057, %v5314
          %v5577 = vadd.f32 %v5058, %v5316
          %v5578 = vadd.f32 %v5059, %v5540
          %v5579 = vadd.f32 %v5060, %v5542
          %v5580 = vadd.f32 %v5061, %v5320
          %v5581 = vadd.f32 %v5062, %v5322
          %v5582 = vadd.f32 %v5063, %v5546
          %v5583 = vadd.f32 %v5064, %v5548
          %v5584 = vadd.f32 %v5065, %v5326
          %v5585 = vadd.f32 %v5066, %v5328
          %v5586 = vadd.f32 %v5067, %v5552
          %v5587 = vadd.f32 %v5068, %v5554
          %5588 = vst [vmem:[#allocation2] sm:$0xff] %v5556
          %5589 = vst [vmem:[#allocation2 + $0x8] sm:$0xff] %v5557
          %5590 = vst [vmem:[#allocation2 + $0x10] sm:$0xff] %v5558
          %5591 = vst [vmem:[#allocation2 + $0x18] sm:$0xff] %v5559
          %5592 = vst [vmem:[#allocation2 + $0x20] sm:$0xff] %v5560
          %5593 = vst [vmem:[#allocation2 + $0x28] sm:$0xff] %v5561
          %5594 = vst [vmem:[#allocation2 + $0x30] sm:$0xff] %v5562
          %5595 = vst [vmem:[#allocation2 + $0x38] sm:$0xff] %v5563
          %5596 = vst [vmem:[#allocation2 + $0x40] sm:$0xff] %v5564
          %5597 = vst [vmem:[#allocation2 + $0x48] sm:$0xff] %v5565
          %5598 = vst [vmem:[#allocation2 + $0x50] sm:$0xff] %v5566
          %5599 = vst [vmem:[#allocation2 + $0x58] sm:$0xff] %v5567
          %5600 = vst [vmem:[#allocation2 + $0x60] sm:$0xff] %v5568
          %5601 = vst [vmem:[#allocation2 + $0x68] sm:$0xff] %v5569
          %5602 = vst [vmem:[#allocation2 + $0x70] sm:$0xff] %v5570
          %5603 = vst [vmem:[#allocation2 + $0x78] sm:$0xff] %v5571
          %5604 = vst [vmem:[#allocation2 + $0x80] sm:$0xff] %v5572
          %5605 = vst [vmem:[#allocation2 + $0x88] sm:$0xff] %v5573
          %5606 = vst [vmem:[#allocation2 + $0x90] sm:$0xff] %v5574
          %5607 = vst [vmem:[#allocation2 + $0x98] sm:$0xff] %v5575
          %5608 = vst [vmem:[#allocation2 + $0xa0] sm:$0xff] %v5576
          %5609 = vst [vmem:[#allocation2 + $0xa8] sm:$0xff] %v5577
          %5610 = vst [vmem:[#allocation2 + $0xb0] sm:$0xff] %v5578
          %5611 = vst [vmem:[#allocation2 + $0xb8] sm:$0xff] %v5579
          %5612 = vst [vmem:[#allocation2 + $0xc0] sm:$0xff] %v5580
          %5613 = vst [vmem:[#allocation2 + $0xc8] sm:$0xff] %v5581
          %5614 = vst [vmem:[#allocation2 + $0xd0] sm:$0xff] %v5582
          %5615 = vst [vmem:[#allocation2 + $0xd8] sm:$0xff] %v5583
          %5616 = vst [vmem:[#allocation2 + $0xe0] sm:$0xff] %v5584
          %5617 = vst [vmem:[#allocation2 + $0xe8] sm:$0xff] %v5585
          %5618 = vst [vmem:[#allocation2 + $0xf0] sm:$0xff] %v5586
          %5619 = vst [vmem:[#allocation2 + $0xf8] sm:$0xff] %v5587
        $region88: #{tpu_custom_call.1} parent=70 // loop_footer
          %s505 = sadd.s32 1, %s501
        $region89: #{tpu_custom_call.1} parent=70 // loop_footer_branch
          %500 = sbr.rel target = $region85
        $region90: #{tpu_custom_call.1} parent=70 // loop_exit
          _
        // Predicated region
        $region91: #{tpu_custom_call.1} parent=70 // pred_check
          %p5620 = pneg %p400
        $region92: #{tpu_custom_call.1} parent=70 // pred_check_branch
          %5622 = sbr.rel (%p5620) target = $region94
        $region93: #{tpu_custom_call.1} parent=70 // pred_region
          %v5623 = vld [vmem:[#allocation2] sm:$0xff]
          %v5624 = vld [vmem:[#allocation2 + $0x8] sm:$0xff]
          %v5625 = vld [vmem:[#allocation2 + $0x10] sm:$0xff]
          %v5626 = vld [vmem:[#allocation2 + $0x18] sm:$0xff]
          %v5627 = vld [vmem:[#allocation2 + $0x20] sm:$0xff]
          %v5628 = vld [vmem:[#allocation2 + $0x28] sm:$0xff]
          %v5629 = vld [vmem:[#allocation2 + $0x30] sm:$0xff]
          %v5630 = vld [vmem:[#allocation2 + $0x38] sm:$0xff]
          %v5631 = vld [vmem:[#allocation2 + $0x40] sm:$0xff]
          %v5632 = vld [vmem:[#allocation2 + $0x48] sm:$0xff]
          %v5633 = vld [vmem:[#allocation2 + $0x50] sm:$0xff]
          %v5634 = vld [vmem:[#allocation2 + $0x58] sm:$0xff]
          %v5635 = vld [vmem:[#allocation2 + $0x60] sm:$0xff]
          %v5636 = vld [vmem:[#allocation2 + $0x68] sm:$0xff]
          %v5637 = vld [vmem:[#allocation2 + $0x70] sm:$0xff]
          %v5638 = vld [vmem:[#allocation2 + $0x78] sm:$0xff]
          %v5639 = vld [vmem:[#allocation2 + $0x80] sm:$0xff]
          %v5640 = vld [vmem:[#allocation2 + $0x88] sm:$0xff]
          %v5641 = vld [vmem:[#allocation2 + $0x90] sm:$0xff]
          %v5642 = vld [vmem:[#allocation2 + $0x98] sm:$0xff]
          %v5643 = vld [vmem:[#allocation2 + $0xa0] sm:$0xff]
          %v5644 = vld [vmem:[#allocation2 + $0xa8] sm:$0xff]
          %v5645 = vld [vmem:[#allocation2 + $0xb0] sm:$0xff]
          %v5646 = vld [vmem:[#allocation2 + $0xb8] sm:$0xff]
          %v5647 = vld [vmem:[#allocation2 + $0xc0] sm:$0xff]
          %v5648 = vld [vmem:[#allocation2 + $0xc8] sm:$0xff]
          %v5649 = vld [vmem:[#allocation2 + $0xd0] sm:$0xff]
          %v5650 = vld [vmem:[#allocation2 + $0xd8] sm:$0xff]
          %v5651 = vld [vmem:[#allocation2 + $0xe0] sm:$0xff]
          %v5652 = vld [vmem:[#allocation2 + $0xe8] sm:$0xff]
          %v5653 = vld [vmem:[#allocation2 + $0xf0] sm:$0xff]
          %v5654 = vld [vmem:[#allocation2 + $0xf8] sm:$0xff]
          %v5655 = vld [vmem:[%s3] sm:$0xff]
          %v5656 = vld [vmem:[%s3 + $0x8] sm:$0xff]
          %v5657 = vld [vmem:[%s3 + $0x10] sm:$0xff]
          %v5658 = vld [vmem:[%s3 + $0x18] sm:$0xff]
          %v5659 = vld [vmem:[%s3 + $0x20] sm:$0xff]
          %v5660 = vld [vmem:[%s3 + $0x28] sm:$0xff]
          %v5661 = vld [vmem:[%s3 + $0x30] sm:$0xff]
          %v5662 = vld [vmem:[%s3 + $0x38] sm:$0xff]
          %5664 = vset.pattern.permute.xlu0 0
          %5665 = vperm.xlu0 %5664, %v5655
          %v5666 = vpop.permute.xlu0 %5665
          %5669 = vset.pattern.permute.xlu0 0
          %5670 = vperm.xlu0 %5669, %v5656
          %v5671 = vpop.permute.xlu0 %5670
          %5674 = vset.pattern.permute.xlu0 0
          %5675 = vperm.xlu0 %5674, %v5657
          %v5676 = vpop.permute.xlu0 %5675
          %5679 = vset.pattern.permute.xlu0 0
          %5680 = vperm.xlu0 %5679, %v5658
          %v5681 = vpop.permute.xlu0 %5680
          %5684 = vset.pattern.permute.xlu0 0
          %5685 = vperm.xlu0 %5684, %v5659
          %v5686 = vpop.permute.xlu0 %5685
          %5689 = vset.pattern.permute.xlu0 0
          %5690 = vperm.xlu0 %5689, %v5660
          %v5691 = vpop.permute.xlu0 %5690
          %5694 = vset.pattern.permute.xlu0 0
          %5695 = vperm.xlu0 %5694, %v5661
          %v5696 = vpop.permute.xlu0 %5695
          %5699 = vset.pattern.permute.xlu0 0
          %5700 = vperm.xlu0 %5699, %v5662
          %v5701 = vpop.permute.xlu0 %5700
          %v5703 = vadd.f32 %v5623, %v5666
          %v5704 = vadd.f32 %v5624, %v5666
          %v5705 = vadd.f32 %v5625, %v5666
          %v5706 = vadd.f32 %v5626, %v5666
          %v5707 = vadd.f32 %v5627, %v5671
          %v5708 = vadd.f32 %v5628, %v5671
          %v5709 = vadd.f32 %v5629, %v5671
          %v5710 = vadd.f32 %v5630, %v5671
          %v5711 = vadd.f32 %v5631, %v5676
          %v5712 = vadd.f32 %v5632, %v5676
          %v5713 = vadd.f32 %v5633, %v5676
          %v5714 = vadd.f32 %v5634, %v5676
          %v5715 = vadd.f32 %v5635, %v5681
          %v5716 = vadd.f32 %v5636, %v5681
          %v5717 = vadd.f32 %v5637, %v5681
          %v5718 = vadd.f32 %v5638, %v5681
          %v5719 = vadd.f32 %v5639, %v5686
          %v5720 = vadd.f32 %v5640, %v5686
          %v5721 = vadd.f32 %v5641, %v5686
          %v5722 = vadd.f32 %v5642, %v5686
          %v5723 = vadd.f32 %v5643, %v5691
          %v5724 = vadd.f32 %v5644, %v5691
          %v5725 = vadd.f32 %v5645, %v5691
          %v5726 = vadd.f32 %v5646, %v5691
          %v5727 = vadd.f32 %v5647, %v5696
          %v5728 = vadd.f32 %v5648, %v5696
          %v5729 = vadd.f32 %v5649, %v5696
          %v5730 = vadd.f32 %v5650, %v5696
          %v5731 = vadd.f32 %v5651, %v5701
          %v5732 = vadd.f32 %v5652, %v5701
          %v5733 = vadd.f32 %v5653, %v5701
          %v5734 = vadd.f32 %v5654, %v5701
          %v5735 = vmax.f32 %v5703, 0.0
          %v5736 = vmax.f32 %v5704, 0.0
          %v5737 = vmax.f32 %v5705, 0.0
          %v5738 = vmax.f32 %v5706, 0.0
          %v5739 = vmax.f32 %v5707, 0.0
          %v5740 = vmax.f32 %v5708, 0.0
          %v5741 = vmax.f32 %v5709, 0.0
          %v5742 = vmax.f32 %v5710, 0.0
          %v5743 = vmax.f32 %v5711, 0.0
          %v5744 = vmax.f32 %v5712, 0.0
          %v5745 = vmax.f32 %v5713, 0.0
          %v5746 = vmax.f32 %v5714, 0.0
          %v5747 = vmax.f32 %v5715, 0.0
          %v5748 = vmax.f32 %v5716, 0.0
          %v5749 = vmax.f32 %v5717, 0.0
          %v5750 = vmax.f32 %v5718, 0.0
          %v5751 = vmax.f32 %v5719, 0.0
          %v5752 = vmax.f32 %v5720, 0.0
          %v5753 = vmax.f32 %v5721, 0.0
          %v5754 = vmax.f32 %v5722, 0.0
          %v5755 = vmax.f32 %v5723, 0.0
          %v5756 = vmax.f32 %v5724, 0.0
          %v5757 = vmax.f32 %v5725, 0.0
          %v5758 = vmax.f32 %v5726, 0.0
          %v5759 = vmax.f32 %v5727, 0.0
          %v5760 = vmax.f32 %v5728, 0.0
          %v5761 = vmax.f32 %v5729, 0.0
          %v5762 = vmax.f32 %v5730, 0.0
          %v5763 = vmax.f32 %v5731, 0.0
          %v5764 = vmax.f32 %v5732, 0.0
          %v5765 = vmax.f32 %v5733, 0.0
          %v5766 = vmax.f32 %v5734, 0.0
          %v5767 = vld [vmem:[%s4] sm:$0xff]
          %v5768 = vld [vmem:[%s4 + $0x8] sm:$0xff]
          %v5769 = vld [vmem:[%s4 + $0x10] sm:$0xff]
          %v5770 = vld [vmem:[%s4 + $0x18] sm:$0xff]
          %v5771 = vld [vmem:[%s4 + $0x20] sm:$0xff]
          %v5772 = vld [vmem:[%s4 + $0x28] sm:$0xff]
          %v5773 = vld [vmem:[%s4 + $0x30] sm:$0xff]
          %v5774 = vld [vmem:[%s4 + $0x38] sm:$0xff]
          %v5775 = vld [vmem:[%s5] sm:$0xff]
          %v5776 = vld [vmem:[%s5 + $0x8] sm:$0xff]
          %v5777 = vld [vmem:[%s5 + $0x10] sm:$0xff]
          %v5778 = vld [vmem:[%s5 + $0x18] sm:$0xff]
          %v5779 = vld [vmem:[%s5 + $0x20] sm:$0xff]
          %v5780 = vld [vmem:[%s5 + $0x28] sm:$0xff]
          %v5781 = vld [vmem:[%s5 + $0x30] sm:$0xff]
          %v5782 = vld [vmem:[%s5 + $0x38] sm:$0xff]
          %5784 = vset.pattern.permute.xlu0 0
          %5785 = vperm.xlu0 %5784, %v5775
          %v5786 = vpop.permute.xlu0 %5785
          %5789 = vset.pattern.permute.xlu0 0
          %5790 = vperm.xlu0 %5789, %v5776
          %v5791 = vpop.permute.xlu0 %5790
          %5794 = vset.pattern.permute.xlu0 0
          %5795 = vperm.xlu0 %5794, %v5777
          %v5796 = vpop.permute.xlu0 %5795
          %5799 = vset.pattern.permute.xlu0 0
          %5800 = vperm.xlu0 %5799, %v5778
          %v5801 = vpop.permute.xlu0 %5800
          %5804 = vset.pattern.permute.xlu0 0
          %5805 = vperm.xlu0 %5804, %v5779
          %v5806 = vpop.permute.xlu0 %5805
          %5809 = vset.pattern.permute.xlu0 0
          %5810 = vperm.xlu0 %5809, %v5780
          %v5811 = vpop.permute.xlu0 %5810
          %5814 = vset.pattern.permute.xlu0 0
          %5815 = vperm.xlu0 %5814, %v5781
          %v5816 = vpop.permute.xlu0 %5815
          %5819 = vset.pattern.permute.xlu0 0
          %5820 = vperm.xlu0 %5819, %v5782
          %v5821 = vpop.permute.xlu0 %5820
          %vm5823 = vcmask 523264
          %v5825 = vsel %vm5823, %v5767, 0
          %v5828 = vsel %vm5823, %v5768, 0
          %v5831 = vsel %vm5823, %v5769, 0
          %v5834 = vsel %vm5823, %v5770, 0
          %v5837 = vsel %vm5823, %v5771, 0
          %v5840 = vsel %vm5823, %v5772, 0
          %v5843 = vsel %vm5823, %v5773, 0
          %v5846 = vsel %vm5823, %v5774, 0
          %5848 = vmatprep.subr.mxu0 %v5736
          %5849 = vmatpush1.msra.mxu0 %v5735
          %5850 = vmatprep.subr.mxu0 %v5740
          %5851 = vmatpush1.msra.mxu0 %v5739
          %5852 = vmatprep.subr.mxu0 %v5744
          %5853 = vmatpush1.msra.mxu0 %v5743
          %5854 = vmatprep.subr.mxu0 %v5748
          %5855 = vmatpush1.msra.mxu0 %v5747
          %5856 = vmatprep.subr.mxu0 %v5752
          %5857 = vmatpush1.msra.mxu0 %v5751
          %5858 = vmatprep.subr.mxu0 %v5756
          %5859 = vmatpush1.msra.mxu0 %v5755
          %5860 = vmatprep.subr.mxu0 %v5760
          %5861 = vmatpush1.msra.mxu0 %v5759
          %5862 = vmatprep.subr.mxu0 %v5764
          %5863 = vmatpush1.msra.mxu0 %v5763
          %5864 = vmatprep.subr.mxu0 0.0
          %5865 = vmatpush1.msra.mxu0 0.0
          %5866 = vmatprep.subr.mxu0 0.0
          %5867 = vmatpush1.msra.mxu0 0.0
          %5868 = vmatprep.subr.mxu0 0.0
          %5869 = vmatpush1.msra.mxu0 0.0
          %5870 = vmatprep.subr.mxu0 0.0
          %5871 = vmatpush1.msra.mxu0 0.0
          %5872 = vmatprep.subr.mxu0 0.0
          %5873 = vmatpush1.msra.mxu0 0.0
          %5874 = vmatprep.subr.mxu0 0.0
          %5875 = vmatpush1.msra.mxu0 0.0
          %5876 = vmatprep.subr.mxu0 0.0
          %5877 = vmatpush1.msra.mxu0 0.0
          %5878 = vmatprep.subr.mxu0 0.0
          %5879 = vmatpush1.msra.mxu0 0.0
          %5880 = vmatprep.subr.mxu0 0.0
          %5881 = vmatpush1.msra.mxu0 0.0
          %5882 = vmatprep.subr.mxu0 0.0
          %5883 = vmatpush1.msra.mxu0 0.0
          %5884 = vmatprep.subr.mxu0 0.0
          %5885 = vmatpush1.msra.mxu0 0.0
          %5886 = vmatprep.subr.mxu0 0.0
          %5887 = vmatpush1.msra.mxu0 0.0
          %5888 = vmatprep.subr.mxu0 0.0
          %5889 = vmatpush1.msra.mxu0 0.0
          %5890 = vmatprep.subr.mxu0 0.0
          %5891 = vmatpush1.msra.mxu0 0.0
          %5892 = vmatprep.subr.mxu0 0.0
          %5893 = vmatpush1.msra.mxu0 0.0
          %5894 = vmatprep.subr.mxu0 0.0
          %5895 = vmatpush1.msra.mxu0 0.0
          %5896 = vmatprep.subr.mxu0 0.0
          %5897 = vmatpush1.msra.mxu0 0.0
          %5898 = vmatprep.subr.mxu0 0.0
          %5899 = vmatpush1.msra.mxu0 0.0
          %5900 = vmatprep.subr.mxu0 0.0
          %5901 = vmatpush1.msra.mxu0 0.0
          %5902 = vmatprep.subr.mxu0 0.0
          %5903 = vmatpush1.msra.mxu0 0.0
          %5904 = vmatprep.subr.mxu0 0.0
          %5905 = vmatpush1.msra.mxu0 0.0
          %5906 = vmatprep.subr.mxu0 0.0
          %5907 = vmatpush1.msra.mxu0 0.0
          %5908 = vmatprep.subr.mxu0 0.0
          %5909 = vmatpush1.msra.mxu0 0.0
          %5910 = vmatprep.subr.mxu0 0.0
          %5911 = vmatpush1.msra.mxu0 0.0
          %5912 = vmatprep.mubr.f32.mxu0 0.0
          %5913 = vmatmul.mubr.f32.gmra.mrb[0].mxu0 %v5825
          %v5914 = vpop.f32.mrb[0].mxu0
          %v5915 = vadd.f32 %v5786, %v5914
          %v5916 = vpop.f32.mrb[0].mxu0
          %v5917 = vadd.f32 %v5786, %v5916
          %5918 = vmatprep.mubr.f32.mxu0 0.0
          %5919 = vmatmul.mubr.f32.gmra.mrb[0].mxu0 %v5828
          %v5920 = vpop.f32.mrb[0].mxu0
          %v5921 = vadd.f32 %v5791, %v5920
          %v5922 = vpop.f32.mrb[0].mxu0
          %v5923 = vadd.f32 %v5791, %v5922
          %5924 = vmatprep.mubr.f32.mxu0 0.0
          %5925 = vmatmul.mubr.f32.gmra.mrb[0].mxu0 %v5831
          %v5926 = vpop.f32.mrb[0].mxu0
          %v5927 = vadd.f32 %v5796, %v5926
          %v5928 = vpop.f32.mrb[0].mxu0
          %v5929 = vadd.f32 %v5796, %v5928
          %5930 = vmatprep.mubr.f32.mxu0 0.0
          %5931 = vmatmul.mubr.f32.gmra.mrb[0].mxu0 %v5834
          %v5932 = vpop.f32.mrb[0].mxu0
          %v5933 = vadd.f32 %v5801, %v5932
          %v5934 = vpop.f32.mrb[0].mxu0
          %v5935 = vadd.f32 %v5801, %v5934
          %5936 = vmatprep.mubr.f32.mxu0 0.0
          %5937 = vmatmul.mubr.f32.gmra.mrb[0].mxu0 %v5837
          %v5938 = vpop.f32.mrb[0].mxu0
          %v5939 = vadd.f32 %v5806, %v5938
          %v5940 = vpop.f32.mrb[0].mxu0
          %v5941 = vadd.f32 %v5806, %v5940
          %5942 = vmatprep.mubr.f32.mxu0 0.0
          %5943 = vmatmul.mubr.f32.gmra.mrb[0].mxu0 %v5840
          %v5944 = vpop.f32.mrb[0].mxu0
          %v5945 = vadd.f32 %v5811, %v5944
          %v5946 = vpop.f32.mrb[0].mxu0
          %v5947 = vadd.f32 %v5811, %v5946
          %5948 = vmatprep.mubr.f32.mxu0 0.0
          %5949 = vmatmul.mubr.f32.gmra.mrb[0].mxu0 %v5843
          %v5950 = vpop.f32.mrb[0].mxu0
          %v5951 = vadd.f32 %v5816, %v5950
          %v5952 = vpop.f32.mrb[0].mxu0
          %v5953 = vadd.f32 %v5816, %v5952
          %5954 = vmatprep.mubr.f32.mxu0 0.0
          %5955 = vmatmul.mubr.f32.gmra.mrb[0].mxu0 %v5846
          %v5956 = vpop.f32.mrb[0].mxu0
          %v5957 = vadd.f32 %v5821, %v5956
          %v5958 = vpop.f32.mrb[0].mxu0
          %v5959 = vadd.f32 %v5821, %v5958
          %5960 = vdwg.mxu0
          %5961 = vmatprep.subr.mxu0 %v5738
          %5962 = vmatpush1.msra.mxu0 %v5737
          %5963 = vmatprep.subr.mxu0 %v5742
          %5964 = vmatpush1.msra.mxu0 %v5741
          %5965 = vmatprep.subr.mxu0 %v5746
          %5966 = vmatpush1.msra.mxu0 %v5745
          %5967 = vmatprep.subr.mxu0 %v5750
          %5968 = vmatpush1.msra.mxu0 %v5749
          %5969 = vmatprep.subr.mxu0 %v5754
          %5970 = vmatpush1.msra.mxu0 %v5753
          %5971 = vmatprep.subr.mxu0 %v5758
          %5972 = vmatpush1.msra.mxu0 %v5757
          %5973 = vmatprep.subr.mxu0 %v5762
          %5974 = vmatpush1.msra.mxu0 %v5761
          %5975 = vmatprep.subr.mxu0 %v5766
          %5976 = vmatpush1.msra.mxu0 %v5765
          %5977 = vmatprep.subr.mxu0 0.0
          %5978 = vmatpush1.msra.mxu0 0.0
          %5979 = vmatprep.subr.mxu0 0.0
          %5980 = vmatpush1.msra.mxu0 0.0
          %5981 = vmatprep.subr.mxu0 0.0
          %5982 = vmatpush1.msra.mxu0 0.0
          %5983 = vmatprep.subr.mxu0 0.0
          %5984 = vmatpush1.msra.mxu0 0.0
          %5985 = vmatprep.subr.mxu0 0.0
          %5986 = vmatpush1.msra.mxu0 0.0
          %5987 = vmatprep.subr.mxu0 0.0
          %5988 = vmatpush1.msra.mxu0 0.0
          %5989 = vmatprep.subr.mxu0 0.0
          %5990 = vmatpush1.msra.mxu0 0.0
          %5991 = vmatprep.subr.mxu0 0.0
          %5992 = vmatpush1.msra.mxu0 0.0
          %5993 = vmatprep.subr.mxu0 0.0
          %5994 = vmatpush1.msra.mxu0 0.0
          %5995 = vmatprep.subr.mxu0 0.0
          %5996 = vmatpush1.msra.mxu0 0.0
          %5997 = vmatprep.subr.mxu0 0.0
          %5998 = vmatpush1.msra.mxu0 0.0
          %5999 = vmatprep.subr.mxu0 0.0
          %6000 = vmatpush1.msra.mxu0 0.0
          %6001 = vmatprep.subr.mxu0 0.0
          %6002 = vmatpush1.msra.mxu0 0.0
          %6003 = vmatprep.subr.mxu0 0.0
          %6004 = vmatpush1.msra.mxu0 0.0
          %6005 = vmatprep.subr.mxu0 0.0
          %6006 = vmatpush1.msra.mxu0 0.0
          %6007 = vmatprep.subr.mxu0 0.0
          %6008 = vmatpush1.msra.mxu0 0.0
          %6009 = vmatprep.subr.mxu0 0.0
          %6010 = vmatpush1.msra.mxu0 0.0
          %6011 = vmatprep.subr.mxu0 0.0
          %6012 = vmatpush1.msra.mxu0 0.0
          %6013 = vmatprep.subr.mxu0 0.0
          %6014 = vmatpush1.msra.mxu0 0.0
          %6015 = vmatprep.subr.mxu0 0.0
          %6016 = vmatpush1.msra.mxu0 0.0
          %6017 = vmatprep.subr.mxu0 0.0
          %6018 = vmatpush1.msra.mxu0 0.0
          %6019 = vmatprep.subr.mxu0 0.0
          %6020 = vmatpush1.msra.mxu0 0.0
          %6021 = vmatprep.subr.mxu0 0.0
          %6022 = vmatpush1.msra.mxu0 0.0
          %6023 = vmatprep.subr.mxu0 0.0
          %6024 = vmatpush1.msra.mxu0 0.0
          %6025 = vmatprep.mubr.f32.mxu0 0.0
          %6026 = vmatmul.mubr.f32.gmra.mrb[0].mxu0 %v5825
          %v6027 = vpop.f32.mrb[0].mxu0
          %v6028 = vadd.f32 %v5786, %v6027
          %v6029 = vpop.f32.mrb[0].mxu0
          %v6030 = vadd.f32 %v5786, %v6029
          %6031 = vmatprep.mubr.f32.mxu0 0.0
          %6032 = vmatmul.mubr.f32.gmra.mrb[0].mxu0 %v5828
          %v6033 = vpop.f32.mrb[0].mxu0
          %v6034 = vadd.f32 %v5791, %v6033
          %v6035 = vpop.f32.mrb[0].mxu0
          %v6036 = vadd.f32 %v5791, %v6035
          %6037 = vmatprep.mubr.f32.mxu0 0.0
          %6038 = vmatmul.mubr.f32.gmra.mrb[0].mxu0 %v5831
          %v6039 = vpop.f32.mrb[0].mxu0
          %v6040 = vadd.f32 %v5796, %v6039
          %v6041 = vpop.f32.mrb[0].mxu0
          %v6042 = vadd.f32 %v5796, %v6041
          %6043 = vmatprep.mubr.f32.mxu0 0.0
          %6044 = vmatmul.mubr.f32.gmra.mrb[0].mxu0 %v5834
          %v6045 = vpop.f32.mrb[0].mxu0
          %v6046 = vadd.f32 %v5801, %v6045
          %v6047 = vpop.f32.mrb[0].mxu0
          %v6048 = vadd.f32 %v5801, %v6047
          %6049 = vmatprep.mubr.f32.mxu0 0.0
          %6050 = vmatmul.mubr.f32.gmra.mrb[0].mxu0 %v5837
          %v6051 = vpop.f32.mrb[0].mxu0
          %v6052 = vadd.f32 %v5806, %v6051
          %v6053 = vpop.f32.mrb[0].mxu0
          %v6054 = vadd.f32 %v5806, %v6053
          %6055 = vmatprep.mubr.f32.mxu0 0.0
          %6056 = vmatmul.mubr.f32.gmra.mrb[0].mxu0 %v5840
          %v6057 = vpop.f32.mrb[0].mxu0
          %v6058 = vadd.f32 %v5811, %v6057
          %v6059 = vpop.f32.mrb[0].mxu0
          %v6060 = vadd.f32 %v5811, %v6059
          %6061 = vmatprep.mubr.f32.mxu0 0.0
          %6062 = vmatmul.mubr.f32.gmra.mrb[0].mxu0 %v5843
          %v6063 = vpop.f32.mrb[0].mxu0
          %v6064 = vadd.f32 %v5816, %v6063
          %v6065 = vpop.f32.mrb[0].mxu0
          %v6066 = vadd.f32 %v5816, %v6065
          %6067 = vmatprep.mubr.f32.mxu0 0.0
          %6068 = vmatmul.mubr.f32.gmra.mrb[0].mxu0 %v5846
          %v6069 = vpop.f32.mrb[0].mxu0
          %v6070 = vadd.f32 %v5821, %v6069
          %v6071 = vpop.f32.mrb[0].mxu0
          %v6072 = vadd.f32 %v5821, %v6071
          %6073 = vdwg.mxu0
          %v6074 = vmax.f32 %v5915, 0.0
          %v6075 = vmax.f32 %v5917, 0.0
          %v6076 = vmax.f32 %v6028, 0.0
          %v6077 = vmax.f32 %v6030, 0.0
          %v6078 = vmax.f32 %v5921, 0.0
          %v6079 = vmax.f32 %v5923, 0.0
          %v6080 = vmax.f32 %v6034, 0.0
          %v6081 = vmax.f32 %v6036, 0.0
          %v6082 = vmax.f32 %v5927, 0.0
          %v6083 = vmax.f32 %v5929, 0.0
          %v6084 = vmax.f32 %v6040, 0.0
          %v6085 = vmax.f32 %v6042, 0.0
          %v6086 = vmax.f32 %v5933, 0.0
          %v6087 = vmax.f32 %v5935, 0.0
          %v6088 = vmax.f32 %v6046, 0.0
          %v6089 = vmax.f32 %v6048, 0.0
          %v6090 = vmax.f32 %v5939, 0.0
          %v6091 = vmax.f32 %v5941, 0.0
          %v6092 = vmax.f32 %v6052, 0.0
          %v6093 = vmax.f32 %v6054, 0.0
          %v6094 = vmax.f32 %v5945, 0.0
          %v6095 = vmax.f32 %v5947, 0.0
          %v6096 = vmax.f32 %v6058, 0.0
          %v6097 = vmax.f32 %v6060, 0.0
          %v6098 = vmax.f32 %v5951, 0.0
          %v6099 = vmax.f32 %v5953, 0.0
          %v6100 = vmax.f32 %v6064, 0.0
          %v6101 = vmax.f32 %v6066, 0.0
          %v6102 = vmax.f32 %v5957, 0.0
          %v6103 = vmax.f32 %v5959, 0.0
          %v6104 = vmax.f32 %v6070, 0.0
          %v6105 = vmax.f32 %v6072, 0.0
          %v6106 = vld [vmem:[%s6] sm:$0x1]
          %v6107 = vld [vmem:[#allocation3] sm:$0x1]
          %6109 = vset.pattern.permute.xlu0 0
          %6110 = vperm.xlu0 %6109, %v6107
          %v6111 = vpop.permute.xlu0 %6110
          %v6113 = vlaneseq
          %v6114 = vshrl.u32 %v6113, 7
          %v6115 = vsub.s32 0, %v6114
          %v6116 = vrot.slane %v6111, %v6115
          %v6118 = vsel %vm5823, %v6106, 0
          %6120 = vmatprep.subr.mxu0 %v6075
          %6121 = vmatpush1.msra.mxu0 %v6074
          %6122 = vmatprep.subr.mxu0 %v6079
          %6123 = vmatpush1.msra.mxu0 %v6078
          %6124 = vmatprep.subr.mxu0 %v6083
          %6125 = vmatpush1.msra.mxu0 %v6082
          %6126 = vmatprep.subr.mxu0 %v6087
          %6127 = vmatpush1.msra.mxu0 %v6086
          %6128 = vmatprep.subr.mxu0 %v6091
          %6129 = vmatpush1.msra.mxu0 %v6090
          %6130 = vmatprep.subr.mxu0 %v6095
          %6131 = vmatpush1.msra.mxu0 %v6094
          %6132 = vmatprep.subr.mxu0 %v6099
          %6133 = vmatpush1.msra.mxu0 %v6098
          %6134 = vmatprep.subr.mxu0 %v6103
          %6135 = vmatpush1.msra.mxu0 %v6102
          %6136 = vmatprep.subr.mxu0 0.0
          %6137 = vmatpush1.msra.mxu0 0.0
          %6138 = vmatprep.subr.mxu0 0.0
          %6139 = vmatpush1.msra.mxu0 0.0
          %6140 = vmatprep.subr.mxu0 0.0
          %6141 = vmatpush1.msra.mxu0 0.0
          %6142 = vmatprep.subr.mxu0 0.0
          %6143 = vmatpush1.msra.mxu0 0.0
          %6144 = vmatprep.subr.mxu0 0.0
          %6145 = vmatpush1.msra.mxu0 0.0
          %6146 = vmatprep.subr.mxu0 0.0
          %6147 = vmatpush1.msra.mxu0 0.0
          %6148 = vmatprep.subr.mxu0 0.0
          %6149 = vmatpush1.msra.mxu0 0.0
          %6150 = vmatprep.subr.mxu0 0.0
          %6151 = vmatpush1.msra.mxu0 0.0
          %6152 = vmatprep.subr.mxu0 0.0
          %6153 = vmatpush1.msra.mxu0 0.0
          %6154 = vmatprep.subr.mxu0 0.0
          %6155 = vmatpush1.msra.mxu0 0.0
          %6156 = vmatprep.subr.mxu0 0.0
          %6157 = vmatpush1.msra.mxu0 0.0
          %6158 = vmatprep.subr.mxu0 0.0
          %6159 = vmatpush1.msra.mxu0 0.0
          %6160 = vmatprep.subr.mxu0 0.0
          %6161 = vmatpush1.msra.mxu0 0.0
          %6162 = vmatprep.subr.mxu0 0.0
          %6163 = vmatpush1.msra.mxu0 0.0
          %6164 = vmatprep.subr.mxu0 0.0
          %6165 = vmatpush1.msra.mxu0 0.0
          %6166 = vmatprep.subr.mxu0 0.0
          %6167 = vmatpush1.msra.mxu0 0.0
          %6168 = vmatprep.subr.mxu0 0.0
          %6169 = vmatpush1.msra.mxu0 0.0
          %6170 = vmatprep.subr.mxu0 0.0
          %6171 = vmatpush1.msra.mxu0 0.0
          %6172 = vmatprep.subr.mxu0 0.0
          %6173 = vmatpush1.msra.mxu0 0.0
          %6174 = vmatprep.subr.mxu0 0.0
          %6175 = vmatpush1.msra.mxu0 0.0
          %6176 = vmatprep.subr.mxu0 0.0
          %6177 = vmatpush1.msra.mxu0 0.0
          %6178 = vmatprep.subr.mxu0 0.0
          %6179 = vmatpush1.msra.mxu0 0.0
          %6180 = vmatprep.subr.mxu0 0.0
          %6181 = vmatpush1.msra.mxu0 0.0
          %6182 = vmatprep.subr.mxu0 0.0
          %6183 = vmatpush1.msra.mxu0 0.0
          %6184 = vmatprep.mubr.f32.mxu0 0.0
          %6185 = vmatmul.mubr.f32.gmra.mrb[0].mxu0 %v6118
          %v6186 = vpop.f32.mrb[0].mxu0
          %v6187 = vadd.f32 %v6116, %v6186
          %v6188 = vpop.f32.mrb[0].mxu0
          %v6189 = vadd.f32 %v6116, %v6188
          %6190 = vdwg.mxu0
          %6191 = vmatprep.subr.mxu0 %v6077
          %6192 = vmatpush1.msra.mxu0 %v6076
          %6193 = vmatprep.subr.mxu0 %v6081
          %6194 = vmatpush1.msra.mxu0 %v6080
          %6195 = vmatprep.subr.mxu0 %v6085
          %6196 = vmatpush1.msra.mxu0 %v6084
          %6197 = vmatprep.subr.mxu0 %v6089
          %6198 = vmatpush1.msra.mxu0 %v6088
          %6199 = vmatprep.subr.mxu0 %v6093
          %6200 = vmatpush1.msra.mxu0 %v6092
          %6201 = vmatprep.subr.mxu0 %v6097
          %6202 = vmatpush1.msra.mxu0 %v6096
          %6203 = vmatprep.subr.mxu0 %v6101
          %6204 = vmatpush1.msra.mxu0 %v6100
          %6205 = vmatprep.subr.mxu0 %v6105
          %6206 = vmatpush1.msra.mxu0 %v6104
          %6207 = vmatprep.subr.mxu0 0.0
          %6208 = vmatpush1.msra.mxu0 0.0
          %6209 = vmatprep.subr.mxu0 0.0
          %6210 = vmatpush1.msra.mxu0 0.0
          %6211 = vmatprep.subr.mxu0 0.0
          %6212 = vmatpush1.msra.mxu0 0.0
          %6213 = vmatprep.subr.mxu0 0.0
          %6214 = vmatpush1.msra.mxu0 0.0
          %6215 = vmatprep.subr.mxu0 0.0
          %6216 = vmatpush1.msra.mxu0 0.0
          %6217 = vmatprep.subr.mxu0 0.0
          %6218 = vmatpush1.msra.mxu0 0.0
          %6219 = vmatprep.subr.mxu0 0.0
          %6220 = vmatpush1.msra.mxu0 0.0
          %6221 = vmatprep.subr.mxu0 0.0
          %6222 = vmatpush1.msra.mxu0 0.0
          %6223 = vmatprep.subr.mxu0 0.0
          %6224 = vmatpush1.msra.mxu0 0.0
          %6225 = vmatprep.subr.mxu0 0.0
          %6226 = vmatpush1.msra.mxu0 0.0
          %6227 = vmatprep.subr.mxu0 0.0
          %6228 = vmatpush1.msra.mxu0 0.0
          %6229 = vmatprep.subr.mxu0 0.0
          %6230 = vmatpush1.msra.mxu0 0.0
          %6231 = vmatprep.subr.mxu0 0.0
          %6232 = vmatpush1.msra.mxu0 0.0
          %6233 = vmatprep.subr.mxu0 0.0
          %6234 = vmatpush1.msra.mxu0 0.0
          %6235 = vmatprep.subr.mxu0 0.0
          %6236 = vmatpush1.msra.mxu0 0.0
          %6237 = vmatprep.subr.mxu0 0.0
          %6238 = vmatpush1.msra.mxu0 0.0
          %6239 = vmatprep.subr.mxu0 0.0
          %6240 = vmatpush1.msra.mxu0 0.0
          %6241 = vmatprep.subr.mxu0 0.0
          %6242 = vmatpush1.msra.mxu0 0.0
          %6243 = vmatprep.subr.mxu0 0.0
          %6244 = vmatpush1.msra.mxu0 0.0
          %6245 = vmatprep.subr.mxu0 0.0
          %6246 = vmatpush1.msra.mxu0 0.0
          %6247 = vmatprep.subr.mxu0 0.0
          %6248 = vmatpush1.msra.mxu0 0.0
          %6249 = vmatprep.subr.mxu0 0.0
          %6250 = vmatpush1.msra.mxu0 0.0
          %6251 = vmatprep.subr.mxu0 0.0
          %6252 = vmatpush1.msra.mxu0 0.0
          %6253 = vmatprep.subr.mxu0 0.0
          %6254 = vmatpush1.msra.mxu0 0.0
          %6255 = vmatprep.mubr.f32.mxu0 0.0
          %6256 = vmatmul.mubr.f32.gmra.mrb[0].mxu0 %v6118
          %v6257 = vpop.f32.mrb[0].mxu0
          %v6258 = vadd.f32 %v6116, %v6257
          %v6259 = vpop.f32.mrb[0].mxu0
          %v6260 = vadd.f32 %v6116, %v6259
          %6261 = vdwg.mxu0
          %v6262 = vmul.f32 %v6187, 2.5
          %v6263 = vmul.f32 %v6189, 2.5
          %v6264 = vmul.f32 %v6258, 2.5
          %v6265 = vmul.f32 %v6260, 2.5
          %v6266 = vadd.f32 %v6262, -0.5
          %v6267 = vadd.f32 %v6263, -0.5
          %v6268 = vadd.f32 %v6264, -0.5
          %v6269 = vadd.f32 %v6265, -0.5
          %v6274 = vcombine.low %v6266, %v6267
          %v6275 = vcombine.low %v6268, %v6269
          %v6277 = vunpack.c.l.s4 1966171168
          %v6278 = vunpack.c.0.s8 %v6277
          %v6279 = vlaneseq
          %v6280 = vshrl.u32 %v6279, 7
          %v6281 = vsub.s32 %v6278, %v6280
          %v6282 = vrot.slane %v6274, %v6281
          %v6284 = vunpack.c.l.s4 1966171168
          %v6285 = vunpack.c.0.s8 %v6284
          %v6286 = vlaneseq
          %v6287 = vshrl.u32 %v6286, 7
          %v6288 = vsub.s32 %v6285, %v6287
          %v6289 = vrot.slane %v6275, %v6288
          %v6290 = vcombine.low %v6282, %v6289
          %v6292 = vunpack.c.l.s4 1966171168
          %v6293 = vunpack.c.0.s8 %v6292
          %v6294 = vlaneseq
          %v6295 = vshrl.u32 %v6294, 7
          %v6296 = vsub.s32 %v6293, %v6295
          %v6297 = vrot.slane %v6290, %v6296
          %v6299 = vlaneseq
          %vm6300 = vcmp.ge.s32.totalorder %v6299, 0
          %vm6301 = vcmp.lt.s32.totalorder %v6299, 512
          %vm6302 = vmand %vm6300, %vm6301
          %6303 = vst.msk [vmem:[%s390] sm:$0xf] %vm6302, %v6297
        $region94: #{tpu_custom_call.1} parent=70 // pred_fallthru
          _
        %s6304 = sand.u32 %s228, 1
        %s6305 = scalar_lea.sflag [#allocation7], %s6304
        %s6306 = sand.u32 %s228, 1
        %s6307 = smul.addr %s6306, 4
        %s6308 = scalar_lea.vmem [#allocation8], %s6307
        // Predicated region
        $region95: #{tpu_custom_call.1} parent=70 // pred_check
          %p6309 = pneg %p238
        $region96: #{tpu_custom_call.1} parent=70 // pred_check_branch
          %6311 = sbr.rel (%p6309) target = $region98
        $region97: #{tpu_custom_call.1} parent=70 // pred_region
          %s6312 = smul.u32 4, %s29
          %s6314 = ssub.s32 64, 64
          %6315 = vsyncadd %s6305, %s6314
          %s6316 = smul.addr %s6312, 16
          %s6317 = scalar_lea.hbm %s8, %s6316
          %s6319 = sshll.u32 %s6308, 4
          %s6320 = int_to_ptr.vmem [resolvable:$true] %s6319
          %6322 = dma.vmem_to_hbm [thread:$0]  %s6320, 64, %s6317, %s6305
        $region98: #{tpu_custom_call.1} parent=70 // pred_fallthru
          _
      $region71: #{tpu_custom_call.1} parent=5 // pred_fallthru
        _
      %p6323 = scmp.le.s32.totalorder 2, %s20
      // Predicated region
      $region99: #{tpu_custom_call.1} parent=5 // pred_check
        %p6324 = pneg %p6323
      $region100: #{tpu_custom_call.1} parent=5 // pred_check_branch
        %6326 = sbr.rel (%p6324) target = $region102
      $region101: #{tpu_custom_call.1} parent=5 // pred_region
        %s6327 = ssub.s32 %s20, 2
        // Predicated region
        $region103: #{tpu_custom_call.1} parent=101 // pred_check
          %p6328 = pneg %p244
        $region104: #{tpu_custom_call.1} parent=101 // pred_check_branch
          %6330 = sbr.rel (%p6328) target = $region106
        $region105: #{tpu_custom_call.1} parent=101 // pred_region
          %s6331 = sand.u32 %s229, 1
          %s6332 = scalar_lea.sflag [#allocation7], %s6331
          %s6333 = sand.u32 %s229, 1
          %s6334 = smul.addr %s6333, 4
          %s6335 = scalar_lea.vmem [#allocation8], %s6334
          %6336 = dma.done %s6332, 64
        $region106: #{tpu_custom_call.1} parent=101 // pred_fallthru
          _
      $region102: #{tpu_custom_call.1} parent=5 // pred_fallthru
        _
    $region6: #{tpu_custom_call.1} parent=1 // loop_footer
      %s24 = sadd.s32 1, %s20
    $region7: #{tpu_custom_call.1} parent=1 // loop_footer_branch
      %19 = sbr.rel target = $region3
    $region8: #{tpu_custom_call.1} parent=1 // loop_exit
      _
    %6337 = vsyncpa [#allocation6], 1
    %s6338 = scalar_lea.sflag [#allocation6], 1
    %6339 = vsyncpa %s6338, 1
    %6340 = vsyncpa [#allocation7], 1
    %s6341 = scalar_lea.sflag [#allocation7], 1
    %6342 = vsyncpa %s6341, 1

</llo_original>
